<compile_context>
chip_gen: v6e
topology: v6e:2x2x1
jax: 0.10.0
libtpu: 0.0.40
codegen_flags: <defaults>
</compile_context>

<pallas_src>
import math

import jax
import jax.numpy as jnp
from jax import lax
from jax.experimental import pallas as pl
from jax.experimental.pallas import tpu as pltpu

# ---------------- Model hyper-parameters (small, consistent with the module) -------------
B = 2            # batch
S = 8            # sequence length
D = 32           # d_model
H = 4            # nhead
HD = D // H      # head dim
F = 64           # dim_feedforward
L = 2            # num_layers
E = 32           # embedding_size (out_emb)
BS = B * S       # flattened batch*seq rows
SCALE = 1.0 / math.sqrt(HD)
LN_EPS = 1e-5


def _layer_norm(x, w, b):
    mu = jnp.mean(x, axis=-1, keepdims=True)
    var = jnp.mean((x - mu) ** 2, axis=-1, keepdims=True)
    return (x - mu) * jax.lax.rsqrt(var + LN_EPS) * w + b


# ---------------- Pallas kernel (whole encoder + pooling + embed layer) -------------------
def triplet_kernel(x_ref, pe_ref,
                   wqkv_ref, bqkv_ref,
                   wo_ref, bo_ref, ln1w_ref, ln1b_ref,
                   w1_ref, b1_ref, w2_ref, b2_ref, ln2w_ref, ln2b_ref,
                   wout_ref, bout_ref, out_ref):
    # Single invocation: everything (weights + activations, < 200 KiB) lives in VMEM.
    x = x_ref[...] + pe_ref[...]                                  # (BS, D), PE pre-tiled

    for l in range(L):                                            # static unroll over layers
        # Fused QKV projection: one (BS, D) @ (D, 3D) matmul for the whole batch.
        qkv = jnp.dot(x, wqkv_ref[l],
                      preferred_element_type=jnp.float32) + bqkv_ref[l]   # (BS, 3D)
        q = qkv[:, 0 * D:1 * D]
        k = qkv[:, 1 * D:2 * D]
        v = qkv[:, 2 * D:3 * D]

        # Per-batch, per-head attention (tiny static loops); head outputs are concatenated
        # and projected with ONE full-width matmul per layer.
        attn_rows = []
        for b in range(B):                                        # static unroll over batch
            r0 = b * S
            qb = q[r0:r0 + S, :]                                  # sublane slices (cheap)
            kb = k[r0:r0 + S, :]
            vb = v[r0:r0 + S, :]
            heads = []
            for h in range(H):                                    # static unroll over heads
                lo = h * HD
                qh = qb[:, lo:lo + HD]
                kh = kb[:, lo:lo + HD]
                vh = vb[:, lo:lo + HD]
                # contract last axes directly (no explicit kh.T / XLU transpose)
                s = lax.dot_general(qh, kh,
                                    dimension_numbers=(((1,), (1,)), ((), ())),
                                    preferred_element_type=jnp.float32) * SCALE
                s = s - jnp.max(s, axis=-1, keepdims=True)        # stable softmax
                p = jnp.exp(s)
                p = p * pl.reciprocal(jnp.sum(p, axis=-1, keepdims=True), approx=True)
                heads.append(jnp.dot(p, vh, preferred_element_type=jnp.float32))
            attn_rows.append(jnp.concatenate(heads, axis=-1))     # (S, D)
        attn = jnp.concatenate(attn_rows, axis=0)                 # (BS, D)
        attn = jnp.dot(attn, wo_ref[l],
                       preferred_element_type=jnp.float32) + bo_ref[l]

        x = _layer_norm(x + attn, ln1w_ref[l], ln1b_ref[l])       # post-norm residual 1

        h1 = jnp.maximum(
            jnp.dot(x, w1_ref[l], preferred_element_type=jnp.float32) + b1_ref[l], 0.0)
        h2 = jnp.dot(h1, w2_ref[l], preferred_element_type=jnp.float32) + b2_ref[l]
        x = _layer_norm(x + h2, ln2w_ref[l], ln2b_ref[l])         # post-norm residual 2

    # torch.max(x, dim=1): per-batch max over its S rows, then the embed Linear.
    pooled = jnp.concatenate(
        [jnp.max(x[b * S:(b + 1) * S, :], axis=0, keepdims=True) for b in range(B)],
        axis=0)                                                   # (B, D)
    out_ref[...] = jnp.dot(pooled, wout_ref[...],
                           preferred_element_type=jnp.float32) + bout_ref[...]


# ---------------- Wrapper ------------------------------------------------------------------
def triplet_forward(x, pe_flat, p):
    """x: (B, S, D); pe_flat: (B*S, D) pre-tiled positional encoding; p: fused params."""
    def full(shape):
        return pl.BlockSpec(shape, lambda i, _n=len(shape): (0,) * _n)

    in_specs = [
        full((BS, D)),                                  # x (flattened batch)
        full((BS, D)),                                  # positional encoding (tiled)
        full((L, D, 3 * D)), full((L, 1, 3 * D)),       # fused Wqkv, bqkv
        full((L, D, D)), full((L, 1, D)),               # Wo, bo
        full((L, 1, D)), full((L, 1, D)),               # LN1 w, b
        full((L, D, F)), full((L, 1, F)),               # FFN W1, b1
        full((L, F, D)), full((L, 1, D)),               # FFN W2, b2
        full((L, 1, D)), full((L, 1, D)),               # LN2 w, b
        full((D, E)), full((1, E)),                     # embed_layer W, b
    ]

    out = pl.pallas_call(
        triplet_kernel,
        out_shape=jax.ShapeDtypeStruct((B, E), jnp.float32),
        grid_spec=pltpu.PrefetchScalarGridSpec(
            num_scalar_prefetch=0,
            grid=(1,),                                  # single step: no per-batch overhead
            in_specs=in_specs,
            out_specs=pl.BlockSpec((B, E), lambda i: (0, 0)),
        ),
        compiler_params=pltpu.CompilerParams(dimension_semantics=("arbitrary",)),
    )(x.reshape(BS, D), pe_flat,
      p["wqkv"], p["bqkv"],
      p["wo"], p["bo"], p["ln1w"], p["ln1b"],
      p["w1"], p["b1"], p["w2"], p["b2"], p["ln2w"], p["ln2b"],
      p["wout"], p["bout"])
    return out                                          # (B, E)


# ---------------- Deterministic parameter init & reference --------------------------------
def make_positional_encoding(seq_len, d_model):
    pos = jnp.arange(seq_len, dtype=jnp.float32)[:, None]
    div = jnp.exp(jnp.arange(0, d_model, 2, dtype=jnp.float32)
                  * (-math.log(10000.0) / d_model))
    pe = jnp.zeros((seq_len, d_model), jnp.float32)
    pe = pe.at[:, 0::2].set(jnp.sin(pos * div))
    pe = pe.at[:, 1::2].set(jnp.cos(pos * div))
    return pe


def make_params(key):
    ks = jax.random.split(key, 14)
    w = lambda k, shape, s=0.05: (s * jax.random.normal(k, shape)).astype(jnp.float32)
    return dict(
        wq=w(ks[0], (L, D, D)), bq=w(ks[1], (L, 1, D)),
        wk=w(ks[2], (L, D, D)), bk=w(ks[3], (L, 1, D)),
        wv=w(ks[4], (L, D, D)), bv=w(ks[5], (L, 1, D)),
        wo=w(ks[6], (L, D, D)), bo=w(ks[7], (L, 1, D)),
        ln1w=jnp.ones((L, 1, D), jnp.float32), ln1b=jnp.zeros((L, 1, D), jnp.float32),
        w1=w(ks[8], (L, D, F)), b1=w(ks[9], (L, 1, F)),
        w2=w(ks[10], (L, F, D)), b2=w(ks[11], (L, 1, D)),
        ln2w=jnp.ones((L, 1, D), jnp.float32), ln2b=jnp.zeros((L, 1, D), jnp.float32),
        wout=w(ks[12], (D, E)), bout=w(ks[13], (1, E)),
    )


def prepare_kernel_params(p):
    """One-time host-side prep: fuse Q/K/V weights into a single (D, 3D) projection."""
    kp = dict(p)
    kp["wqkv"] = jnp.concatenate([p["wq"], p["wk"], p["wv"]], axis=-1)   # (L, D, 3D)
    kp["bqkv"] = jnp.concatenate([p["bq"], p["bk"], p["bv"]], axis=-1)   # (L, 1, 3D)
    return kp


def reference_forward(x, pe, p):
    """Pure-JAX reference mirroring the PyTorch module (eval mode)."""
    x = x + pe[None]
    for l in range(L):
        q = x @ p["wq"][l] + p["bq"][l]
        k = x @ p["wk"][l] + p["bk"][l]
        v = x @ p["wv"][l] + p["bv"][l]
        qh = q.reshape(B, S, H, HD).transpose(0, 2, 1, 3)
        kh = k.reshape(B, S, H, HD).transpose(0, 2, 1, 3)
        vh = v.reshape(B, S, H, HD).transpose(0, 2, 1, 3)
        s = jnp.einsum("bhqd,bhkd->bhqk", qh, kh) * SCALE
        a = jax.nn.softmax(s, axis=-1)
        o = jnp.einsum("bhqk,bhkd->bhqd", a, vh).transpose(0, 2, 1, 3).reshape(B, S, D)
        attn = o @ p["wo"][l] + p["bo"][l]
        x = _layer_norm(x + attn, p["ln1w"][l], p["ln1b"][l])
        h1 = jax.nn.relu(x @ p["w1"][l] + p["b1"][l])
        h2 = h1 @ p["w2"][l] + p["b2"][l]
        x = _layer_norm(x + h2, p["ln2w"][l], p["ln2b"][l])
    pooled = jnp.max(x, axis=1)                       # torch.max(x, dim=1)
    return pooled @ p["wout"] + p["bout"]             # Flatten is a no-op on (B, D)


# TODO(synk): get_attention_maps() (attention-matrix extraction) not implemented; dropout is
# an inference no-op and is omitted.

if __name__ == "__main__":
    key = jax.random.PRNGKey(0)
    kx, kp = jax.random.split(key)
    x = jax.random.normal(kx, (B, S, D), dtype=jnp.float32)
    params = make_params(kp)
    pe = make_positional_encoding(S, D)

    kernel_params = prepare_kernel_params(params)     # one-time QKV fusion
    pe_flat = jnp.tile(pe, (B, 1))                    # one-time PE tiling to (B*S, D)

    out = triplet_forward(x, pe_flat, kernel_params)
    jax.block_until_ready(out)

    ref = reference_forward(x, pe, params)
    assert out.shape == (B, E), out.shape
    assert jnp.allclose(out, ref, atol=1e-3, rtol=1e-3), float(jnp.max(jnp.abs(out - ref)))
    print("KERNEL_OK")
</pallas_src>

<mosaic_0001>
module attributes {stable_mosaic.version = 11 : i64} {
  func.func @triplet_kernel(%arg0: i32, %arg1: memref<16x32xf32, #tpu.memory_space<vmem>>, %arg2: memref<16x32xf32, #tpu.memory_space<vmem>>, %arg3: memref<2x32x96xf32, #tpu.memory_space<vmem>>, %arg4: memref<2x1x96xf32, #tpu.memory_space<vmem>>, %arg5: memref<2x32x32xf32, #tpu.memory_space<vmem>>, %arg6: memref<2x1x32xf32, #tpu.memory_space<vmem>>, %arg7: memref<2x1x32xf32, #tpu.memory_space<vmem>>, %arg8: memref<2x1x32xf32, #tpu.memory_space<vmem>>, %arg9: memref<2x32x64xf32, #tpu.memory_space<vmem>>, %arg10: memref<2x1x64xf32, #tpu.memory_space<vmem>>, %arg11: memref<2x64x32xf32, #tpu.memory_space<vmem>>, %arg12: memref<2x1x32xf32, #tpu.memory_space<vmem>>, %arg13: memref<2x1x32xf32, #tpu.memory_space<vmem>>, %arg14: memref<2x1x32xf32, #tpu.memory_space<vmem>>, %arg15: memref<32x32xf32, #tpu.memory_space<vmem>>, %arg16: memref<1x32xf32, #tpu.memory_space<vmem>>, %arg17: memref<2x32xf32, #tpu.memory_space<vmem>>) attributes {dimension_semantics = [#tpu.dimension_semantics<arbitrary>], iteration_bounds = array<i64: 1>, scalar_prefetch = 0 : i64, scratch_operands = 0 : i64, tpu.core_type = #tpu.core_type<tc>, window_params = [{pipeline_mode = #tpu.pipeline_mode<synchronous>, transform_indices = @transform_0, window_bounds = array<i64: 16, 32>}, {pipeline_mode = #tpu.pipeline_mode<synchronous>, transform_indices = @transform_1, window_bounds = array<i64: 16, 32>}, {pipeline_mode = #tpu.pipeline_mode<synchronous>, transform_indices = @transform_2, window_bounds = array<i64: 2, 32, 96>}, {pipeline_mode = #tpu.pipeline_mode<synchronous>, transform_indices = @transform_3, window_bounds = array<i64: 2, 1, 96>}, {pipeline_mode = #tpu.pipeline_mode<synchronous>, transform_indices = @transform_4, window_bounds = array<i64: 2, 32, 32>}, {pipeline_mode = #tpu.pipeline_mode<synchronous>, transform_indices = @transform_5, window_bounds = array<i64: 2, 1, 32>}, {pipeline_mode = #tpu.pipeline_mode<synchronous>, transform_indices = @transform_6, window_bounds = array<i64: 2, 1, 32>}, {pipeline_mode = #tpu.pipeline_mode<synchronous>, transform_indices = @transform_7, window_bounds = array<i64: 2, 1, 32>}, {pipeline_mode = #tpu.pipeline_mode<synchronous>, transform_indices = @transform_8, window_bounds = array<i64: 2, 32, 64>}, {pipeline_mode = #tpu.pipeline_mode<synchronous>, transform_indices = @transform_9, window_bounds = array<i64: 2, 1, 64>}, {pipeline_mode = #tpu.pipeline_mode<synchronous>, transform_indices = @transform_10, window_bounds = array<i64: 2, 64, 32>}, {pipeline_mode = #tpu.pipeline_mode<synchronous>, transform_indices = @transform_11, window_bounds = array<i64: 2, 1, 32>}, {pipeline_mode = #tpu.pipeline_mode<synchronous>, transform_indices = @transform_12, window_bounds = array<i64: 2, 1, 32>}, {pipeline_mode = #tpu.pipeline_mode<synchronous>, transform_indices = @transform_13, window_bounds = array<i64: 2, 1, 32>}, {pipeline_mode = #tpu.pipeline_mode<synchronous>, transform_indices = @transform_14, window_bounds = array<i64: 32, 32>}, {pipeline_mode = #tpu.pipeline_mode<synchronous>, transform_indices = @transform_15, window_bounds = array<i64: 1, 32>}, {pipeline_mode = #tpu.pipeline_mode<synchronous>, transform_indices = @transform_16, window_bounds = array<i64: 2, 32>}]} {
    %c0 = arith.constant 0 : index
    %c0_0 = arith.constant 0 : index
    %0 = vector.load %arg1[%c0, %c0_0] : memref<16x32xf32, #tpu.memory_space<vmem>>, vector<16x32xf32>
    %c0_1 = arith.constant 0 : index
    %c0_2 = arith.constant 0 : index
    %1 = vector.load %arg2[%c0_1, %c0_2] : memref<16x32xf32, #tpu.memory_space<vmem>>, vector<16x32xf32>
    %2 = arith.addf %0, %1 : vector<16x32xf32>
    %c0_3 = arith.constant 0 : index
    %c0_4 = arith.constant 0 : index
    %c0_5 = arith.constant 0 : index
    %3 = vector.load %arg3[%c0_3, %c0_4, %c0_5] : memref<2x32x96xf32, #tpu.memory_space<vmem>>, vector<1x32x96xf32>
    %4 = vector.shape_cast %3 : vector<1x32x96xf32> to vector<32x96xf32>
    %cst = arith.constant dense<0.000000e+00> : vector<16x96xf32>
    %5 = tpu.matmul %2, %4, %cst {dimension_numbers = #tpu.dot_dimension_numbers<[1], [0], [0], [1], [0, 0, 1, 1], [], []>} : vector<16x32xf32>, vector<32x96xf32>, vector<16x96xf32> -> vector<16x96xf32>
    %c0_6 = arith.constant 0 : index
    %c0_7 = arith.constant 0 : index
    %c0_8 = arith.constant 0 : index
    %6 = vector.load %arg4[%c0_6, %c0_7, %c0_8] : memref<2x1x96xf32, #tpu.memory_space<vmem>>, vector<1x1x96xf32>
    %7 = vector.shape_cast %6 : vector<1x1x96xf32> to vector<1x96xf32>
    %8 = vector.broadcast %7 : vector<1x96xf32> to vector<16x96xf32>
    %9 = arith.addf %5, %8 : vector<16x96xf32>
    %10 = vector.extract_strided_slice %9 {offsets = [0, 0], sizes = [16, 32], strides = [1, 1]} : vector<16x96xf32> to vector<16x32xf32>
    %11 = vector.extract_strided_slice %9 {offsets = [0, 32], sizes = [16, 32], strides = [1, 1]} : vector<16x96xf32> to vector<16x32xf32>
    %12 = vector.extract_strided_slice %9 {offsets = [0, 64], sizes = [16, 32], strides = [1, 1]} : vector<16x96xf32> to vector<16x32xf32>
    %13 = vector.extract_strided_slice %10 {offsets = [0, 0], sizes = [8, 32], strides = [1, 1]} : vector<16x32xf32> to vector<8x32xf32>
    %14 = vector.extract_strided_slice %11 {offsets = [0, 0], sizes = [8, 32], strides = [1, 1]} : vector<16x32xf32> to vector<8x32xf32>
    %15 = vector.extract_strided_slice %12 {offsets = [0, 0], sizes = [8, 32], strides = [1, 1]} : vector<16x32xf32> to vector<8x32xf32>
    %16 = vector.extract_strided_slice %13 {offsets = [0, 0], sizes = [8, 8], strides = [1, 1]} : vector<8x32xf32> to vector<8x8xf32>
    %17 = vector.extract_strided_slice %14 {offsets = [0, 0], sizes = [8, 8], strides = [1, 1]} : vector<8x32xf32> to vector<8x8xf32>
    %18 = vector.extract_strided_slice %15 {offsets = [0, 0], sizes = [8, 8], strides = [1, 1]} : vector<8x32xf32> to vector<8x8xf32>
    %cst_9 = arith.constant dense<0.000000e+00> : vector<8x8xf32>
    %19 = tpu.matmul %16, %17, %cst_9 {dimension_numbers = #tpu.dot_dimension_numbers<[1], [1], [0], [0], [0, 0, 1, 0], [], []>} : vector<8x8xf32>, vector<8x8xf32>, vector<8x8xf32> -> vector<8x8xf32>
    %cst_10 = arith.constant 0.353553385 : f32
    %20 = vector.broadcast %cst_10 : f32 to vector<8x8xf32>
    %21 = arith.mulf %19, %20 : vector<8x8xf32>
    %cst_11 = arith.constant dense<0xFF800000> : vector<8xf32>
    %22 = vector.multi_reduction <maximumf>, %21, %cst_11 [1] : vector<8x8xf32> to vector<8xf32>
    %23 = vector.shape_cast %22 : vector<8xf32> to vector<8x1xf32>
    %24 = vector.broadcast %23 : vector<8x1xf32> to vector<8x8xf32>
    %25 = arith.subf %21, %24 : vector<8x8xf32>
    %26 = math.exp %25 : vector<8x8xf32>
    %cst_12 = arith.constant dense<0.000000e+00> : vector<8xf32>
    %27 = vector.multi_reduction <add>, %26, %cst_12 [1] : vector<8x8xf32> to vector<8xf32>
    %28 = vector.shape_cast %27 : vector<8xf32> to vector<8x1xf32>
    %29 = tpu.reciprocal %28 {approx = true} : vector<8x1xf32> -> vector<8x1xf32>
    %30 = vector.broadcast %29 : vector<8x1xf32> to vector<8x8xf32>
    %31 = arith.mulf %26, %30 : vector<8x8xf32>
    %cst_13 = arith.constant dense<0.000000e+00> : vector<8x8xf32>
    %32 = tpu.matmul %31, %18, %cst_13 {dimension_numbers = #tpu.dot_dimension_numbers<[1], [0], [0], [1], [0, 0, 1, 1], [], []>} : vector<8x8xf32>, vector<8x8xf32>, vector<8x8xf32> -> vector<8x8xf32>
    %33 = vector.extract_strided_slice %13 {offsets = [0, 8], sizes = [8, 8], strides = [1, 1]} : vector<8x32xf32> to vector<8x8xf32>
    %34 = vector.extract_strided_slice %14 {offsets = [0, 8], sizes = [8, 8], strides = [1, 1]} : vector<8x32xf32> to vector<8x8xf32>
    %35 = vector.extract_strided_slice %15 {offsets = [0, 8], sizes = [8, 8], strides = [1, 1]} : vector<8x32xf32> to vector<8x8xf32>
    %cst_14 = arith.constant dense<0.000000e+00> : vector<8x8xf32>
    %36 = tpu.matmul %33, %34, %cst_14 {dimension_numbers = #tpu.dot_dimension_numbers<[1], [1], [0], [0], [0, 0, 1, 0], [], []>} : vector<8x8xf32>, vector<8x8xf32>, vector<8x8xf32> -> vector<8x8xf32>
    %cst_15 = arith.constant 0.353553385 : f32
    %37 = vector.broadcast %cst_15 : f32 to vector<8x8xf32>
    %38 = arith.mulf %36, %37 : vector<8x8xf32>
    %cst_16 = arith.constant dense<0xFF800000> : vector<8xf32>
    %39 = vector.multi_reduction <maximumf>, %38, %cst_16 [1] : vector<8x8xf32> to vector<8xf32>
    %40 = vector.shape_cast %39 : vector<8xf32> to vector<8x1xf32>
    %41 = vector.broadcast %40 : vector<8x1xf32> to vector<8x8xf32>
    %42 = arith.subf %38, %41 : vector<8x8xf32>
    %43 = math.exp %42 : vector<8x8xf32>
    %cst_17 = arith.constant dense<0.000000e+00> : vector<8xf32>
    %44 = vector.multi_reduction <add>, %43, %cst_17 [1] : vector<8x8xf32> to vector<8xf32>
    %45 = vector.shape_cast %44 : vector<8xf32> to vector<8x1xf32>
    %46 = tpu.reciprocal %45 {approx = true} : vector<8x1xf32> -> vector<8x1xf32>
    %47 = vector.broadcast %46 : vector<8x1xf32> to vector<8x8xf32>
    %48 = arith.mulf %43, %47 : vector<8x8xf32>
    %cst_18 = arith.constant dense<0.000000e+00> : vector<8x8xf32>
    %49 = tpu.matmul %48, %35, %cst_18 {dimension_numbers = #tpu.dot_dimension_numbers<[1], [0], [0], [1], [0, 0, 1, 1], [], []>} : vector<8x8xf32>, vector<8x8xf32>, vector<8x8xf32> -> vector<8x8xf32>
    %50 = vector.extract_strided_slice %13 {offsets = [0, 16], sizes = [8, 8], strides = [1, 1]} : vector<8x32xf32> to vector<8x8xf32>
    %51 = vector.extract_strided_slice %14 {offsets = [0, 16], sizes = [8, 8], strides = [1, 1]} : vector<8x32xf32> to vector<8x8xf32>
    %52 = vector.extract_strided_slice %15 {offsets = [0, 16], sizes = [8, 8], strides = [1, 1]} : vector<8x32xf32> to vector<8x8xf32>
    %cst_19 = arith.constant dense<0.000000e+00> : vector<8x8xf32>
    %53 = tpu.matmul %50, %51, %cst_19 {dimension_numbers = #tpu.dot_dimension_numbers<[1], [1], [0], [0], [0, 0, 1, 0], [], []>} : vector<8x8xf32>, vector<8x8xf32>, vector<8x8xf32> -> vector<8x8xf32>
    %cst_20 = arith.constant 0.353553385 : f32
    %54 = vector.broadcast %cst_20 : f32 to vector<8x8xf32>
    %55 = arith.mulf %53, %54 : vector<8x8xf32>
    %cst_21 = arith.constant dense<0xFF800000> : vector<8xf32>
    %56 = vector.multi_reduction <maximumf>, %55, %cst_21 [1] : vector<8x8xf32> to vector<8xf32>
    %57 = vector.shape_cast %56 : vector<8xf32> to vector<8x1xf32>
    %58 = vector.broadcast %57 : vector<8x1xf32> to vector<8x8xf32>
    %59 = arith.subf %55, %58 : vector<8x8xf32>
    %60 = math.exp %59 : vector<8x8xf32>
    %cst_22 = arith.constant dense<0.000000e+00> : vector<8xf32>
    %61 = vector.multi_reduction <add>, %60, %cst_22 [1] : vector<8x8xf32> to vector<8xf32>
    %62 = vector.shape_cast %61 : vector<8xf32> to vector<8x1xf32>
    %63 = tpu.reciprocal %62 {approx = true} : vector<8x1xf32> -> vector<8x1xf32>
    %64 = vector.broadcast %63 : vector<8x1xf32> to vector<8x8xf32>
    %65 = arith.mulf %60, %64 : vector<8x8xf32>
    %cst_23 = arith.constant dense<0.000000e+00> : vector<8x8xf32>
    %66 = tpu.matmul %65, %52, %cst_23 {dimension_numbers = #tpu.dot_dimension_numbers<[1], [0], [0], [1], [0, 0, 1, 1], [], []>} : vector<8x8xf32>, vector<8x8xf32>, vector<8x8xf32> -> vector<8x8xf32>
    %67 = vector.extract_strided_slice %13 {offsets = [0, 24], sizes = [8, 8], strides = [1, 1]} : vector<8x32xf32> to vector<8x8xf32>
    %68 = vector.extract_strided_slice %14 {offsets = [0, 24], sizes = [8, 8], strides = [1, 1]} : vector<8x32xf32> to vector<8x8xf32>
    %69 = vector.extract_strided_slice %15 {offsets = [0, 24], sizes = [8, 8], strides = [1, 1]} : vector<8x32xf32> to vector<8x8xf32>
    %cst_24 = arith.constant dense<0.000000e+00> : vector<8x8xf32>
    %70 = tpu.matmul %67, %68, %cst_24 {dimension_numbers = #tpu.dot_dimension_numbers<[1], [1], [0], [0], [0, 0, 1, 0], [], []>} : vector<8x8xf32>, vector<8x8xf32>, vector<8x8xf32> -> vector<8x8xf32>
    %cst_25 = arith.constant 0.353553385 : f32
    %71 = vector.broadcast %cst_25 : f32 to vector<8x8xf32>
    %72 = arith.mulf %70, %71 : vector<8x8xf32>
    %cst_26 = arith.constant dense<0xFF800000> : vector<8xf32>
    %73 = vector.multi_reduction <maximumf>, %72, %cst_26 [1] : vector<8x8xf32> to vector<8xf32>
    %74 = vector.shape_cast %73 : vector<8xf32> to vector<8x1xf32>
    %75 = vector.broadcast %74 : vector<8x1xf32> to vector<8x8xf32>
    %76 = arith.subf %72, %75 : vector<8x8xf32>
    %77 = math.exp %76 : vector<8x8xf32>
    %cst_27 = arith.constant dense<0.000000e+00> : vector<8xf32>
    %78 = vector.multi_reduction <add>, %77, %cst_27 [1] : vector<8x8xf32> to vector<8xf32>
    %79 = vector.shape_cast %78 : vector<8xf32> to vector<8x1xf32>
    %80 = tpu.reciprocal %79 {approx = true} : vector<8x1xf32> -> vector<8x1xf32>
    %81 = vector.broadcast %80 : vector<8x1xf32> to vector<8x8xf32>
    %82 = arith.mulf %77, %81 : vector<8x8xf32>
    %cst_28 = arith.constant dense<0.000000e+00> : vector<8x8xf32>
    %83 = tpu.matmul %82, %69, %cst_28 {dimension_numbers = #tpu.dot_dimension_numbers<[1], [0], [0], [1], [0, 0, 1, 1], [], []>} : vector<8x8xf32>, vector<8x8xf32>, vector<8x8xf32> -> vector<8x8xf32>
    %84 = tpu.concatenate %32, %49, %66, %83 in 1 : vector<8x8xf32>, vector<8x8xf32>, vector<8x8xf32>, vector<8x8xf32> -> vector<8x32xf32>
    %85 = vector.extract_strided_slice %10 {offsets = [8, 0], sizes = [8, 32], strides = [1, 1]} : vector<16x32xf32> to vector<8x32xf32>
    %86 = vector.extract_strided_slice %11 {offsets = [8, 0], sizes = [8, 32], strides = [1, 1]} : vector<16x32xf32> to vector<8x32xf32>
    %87 = vector.extract_strided_slice %12 {offsets = [8, 0], sizes = [8, 32], strides = [1, 1]} : vector<16x32xf32> to vector<8x32xf32>
    %88 = vector.extract_strided_slice %85 {offsets = [0, 0], sizes = [8, 8], strides = [1, 1]} : vector<8x32xf32> to vector<8x8xf32>
    %89 = vector.extract_strided_slice %86 {offsets = [0, 0], sizes = [8, 8], strides = [1, 1]} : vector<8x32xf32> to vector<8x8xf32>
    %90 = vector.extract_strided_slice %87 {offsets = [0, 0], sizes = [8, 8], strides = [1, 1]} : vector<8x32xf32> to vector<8x8xf32>
    %cst_29 = arith.constant dense<0.000000e+00> : vector<8x8xf32>
    %91 = tpu.matmul %88, %89, %cst_29 {dimension_numbers = #tpu.dot_dimension_numbers<[1], [1], [0], [0], [0, 0, 1, 0], [], []>} : vector<8x8xf32>, vector<8x8xf32>, vector<8x8xf32> -> vector<8x8xf32>
    %cst_30 = arith.constant 0.353553385 : f32
    %92 = vector.broadcast %cst_30 : f32 to vector<8x8xf32>
    %93 = arith.mulf %91, %92 : vector<8x8xf32>
    %cst_31 = arith.constant dense<0xFF800000> : vector<8xf32>
    %94 = vector.multi_reduction <maximumf>, %93, %cst_31 [1] : vector<8x8xf32> to vector<8xf32>
    %95 = vector.shape_cast %94 : vector<8xf32> to vector<8x1xf32>
    %96 = vector.broadcast %95 : vector<8x1xf32> to vector<8x8xf32>
    %97 = arith.subf %93, %96 : vector<8x8xf32>
    %98 = math.exp %97 : vector<8x8xf32>
    %cst_32 = arith.constant dense<0.000000e+00> : vector<8xf32>
    %99 = vector.multi_reduction <add>, %98, %cst_32 [1] : vector<8x8xf32> to vector<8xf32>
    %100 = vector.shape_cast %99 : vector<8xf32> to vector<8x1xf32>
    %101 = tpu.reciprocal %100 {approx = true} : vector<8x1xf32> -> vector<8x1xf32>
    %102 = vector.broadcast %101 : vector<8x1xf32> to vector<8x8xf32>
    %103 = arith.mulf %98, %102 : vector<8x8xf32>
    %cst_33 = arith.constant dense<0.000000e+00> : vector<8x8xf32>
    %104 = tpu.matmul %103, %90, %cst_33 {dimension_numbers = #tpu.dot_dimension_numbers<[1], [0], [0], [1], [0, 0, 1, 1], [], []>} : vector<8x8xf32>, vector<8x8xf32>, vector<8x8xf32> -> vector<8x8xf32>
    %105 = vector.extract_strided_slice %85 {offsets = [0, 8], sizes = [8, 8], strides = [1, 1]} : vector<8x32xf32> to vector<8x8xf32>
    %106 = vector.extract_strided_slice %86 {offsets = [0, 8], sizes = [8, 8], strides = [1, 1]} : vector<8x32xf32> to vector<8x8xf32>
    %107 = vector.extract_strided_slice %87 {offsets = [0, 8], sizes = [8, 8], strides = [1, 1]} : vector<8x32xf32> to vector<8x8xf32>
    %cst_34 = arith.constant dense<0.000000e+00> : vector<8x8xf32>
    %108 = tpu.matmul %105, %106, %cst_34 {dimension_numbers = #tpu.dot_dimension_numbers<[1], [1], [0], [0], [0, 0, 1, 0], [], []>} : vector<8x8xf32>, vector<8x8xf32>, vector<8x8xf32> -> vector<8x8xf32>
    %cst_35 = arith.constant 0.353553385 : f32
    %109 = vector.broadcast %cst_35 : f32 to vector<8x8xf32>
    %110 = arith.mulf %108, %109 : vector<8x8xf32>
    %cst_36 = arith.constant dense<0xFF800000> : vector<8xf32>
    %111 = vector.multi_reduction <maximumf>, %110, %cst_36 [1] : vector<8x8xf32> to vector<8xf32>
    %112 = vector.shape_cast %111 : vector<8xf32> to vector<8x1xf32>
    %113 = vector.broadcast %112 : vector<8x1xf32> to vector<8x8xf32>
    %114 = arith.subf %110, %113 : vector<8x8xf32>
    %115 = math.exp %114 : vector<8x8xf32>
    %cst_37 = arith.constant dense<0.000000e+00> : vector<8xf32>
    %116 = vector.multi_reduction <add>, %115, %cst_37 [1] : vector<8x8xf32> to vector<8xf32>
    %117 = vector.shape_cast %116 : vector<8xf32> to vector<8x1xf32>
    %118 = tpu.reciprocal %117 {approx = true} : vector<8x1xf32> -> vector<8x1xf32>
    %119 = vector.broadcast %118 : vector<8x1xf32> to vector<8x8xf32>
    %120 = arith.mulf %115, %119 : vector<8x8xf32>
    %cst_38 = arith.constant dense<0.000000e+00> : vector<8x8xf32>
    %121 = tpu.matmul %120, %107, %cst_38 {dimension_numbers = #tpu.dot_dimension_numbers<[1], [0], [0], [1], [0, 0, 1, 1], [], []>} : vector<8x8xf32>, vector<8x8xf32>, vector<8x8xf32> -> vector<8x8xf32>
    %122 = vector.extract_strided_slice %85 {offsets = [0, 16], sizes = [8, 8], strides = [1, 1]} : vector<8x32xf32> to vector<8x8xf32>
    %123 = vector.extract_strided_slice %86 {offsets = [0, 16], sizes = [8, 8], strides = [1, 1]} : vector<8x32xf32> to vector<8x8xf32>
    %124 = vector.extract_strided_slice %87 {offsets = [0, 16], sizes = [8, 8], strides = [1, 1]} : vector<8x32xf32> to vector<8x8xf32>
    %cst_39 = arith.constant dense<0.000000e+00> : vector<8x8xf32>
    %125 = tpu.matmul %122, %123, %cst_39 {dimension_numbers = #tpu.dot_dimension_numbers<[1], [1], [0], [0], [0, 0, 1, 0], [], []>} : vector<8x8xf32>, vector<8x8xf32>, vector<8x8xf32> -> vector<8x8xf32>
    %cst_40 = arith.constant 0.353553385 : f32
    %126 = vector.broadcast %cst_40 : f32 to vector<8x8xf32>
    %127 = arith.mulf %125, %126 : vector<8x8xf32>
    %cst_41 = arith.constant dense<0xFF800000> : vector<8xf32>
    %128 = vector.multi_reduction <maximumf>, %127, %cst_41 [1] : vector<8x8xf32> to vector<8xf32>
    %129 = vector.shape_cast %128 : vector<8xf32> to vector<8x1xf32>
    %130 = vector.broadcast %129 : vector<8x1xf32> to vector<8x8xf32>
    %131 = arith.subf %127, %130 : vector<8x8xf32>
    %132 = math.exp %131 : vector<8x8xf32>
    %cst_42 = arith.constant dense<0.000000e+00> : vector<8xf32>
    %133 = vector.multi_reduction <add>, %132, %cst_42 [1] : vector<8x8xf32> to vector<8xf32>
    %134 = vector.shape_cast %133 : vector<8xf32> to vector<8x1xf32>
    %135 = tpu.reciprocal %134 {approx = true} : vector<8x1xf32> -> vector<8x1xf32>
    %136 = vector.broadcast %135 : vector<8x1xf32> to vector<8x8xf32>
    %137 = arith.mulf %132, %136 : vector<8x8xf32>
    %cst_43 = arith.constant dense<0.000000e+00> : vector<8x8xf32>
    %138 = tpu.matmul %137, %124, %cst_43 {dimension_numbers = #tpu.dot_dimension_numbers<[1], [0], [0], [1], [0, 0, 1, 1], [], []>} : vector<8x8xf32>, vector<8x8xf32>, vector<8x8xf32> -> vector<8x8xf32>
    %139 = vector.extract_strided_slice %85 {offsets = [0, 24], sizes = [8, 8], strides = [1, 1]} : vector<8x32xf32> to vector<8x8xf32>
    %140 = vector.extract_strided_slice %86 {offsets = [0, 24], sizes = [8, 8], strides = [1, 1]} : vector<8x32xf32> to vector<8x8xf32>
    %141 = vector.extract_strided_slice %87 {offsets = [0, 24], sizes = [8, 8], strides = [1, 1]} : vector<8x32xf32> to vector<8x8xf32>
    %cst_44 = arith.constant dense<0.000000e+00> : vector<8x8xf32>
    %142 = tpu.matmul %139, %140, %cst_44 {dimension_numbers = #tpu.dot_dimension_numbers<[1], [1], [0], [0], [0, 0, 1, 0], [], []>} : vector<8x8xf32>, vector<8x8xf32>, vector<8x8xf32> -> vector<8x8xf32>
    %cst_45 = arith.constant 0.353553385 : f32
    %143 = vector.broadcast %cst_45 : f32 to vector<8x8xf32>
    %144 = arith.mulf %142, %143 : vector<8x8xf32>
    %cst_46 = arith.constant dense<0xFF800000> : vector<8xf32>
    %145 = vector.multi_reduction <maximumf>, %144, %cst_46 [1] : vector<8x8xf32> to vector<8xf32>
    %146 = vector.shape_cast %145 : vector<8xf32> to vector<8x1xf32>
    %147 = vector.broadcast %146 : vector<8x1xf32> to vector<8x8xf32>
    %148 = arith.subf %144, %147 : vector<8x8xf32>
    %149 = math.exp %148 : vector<8x8xf32>
    %cst_47 = arith.constant dense<0.000000e+00> : vector<8xf32>
    %150 = vector.multi_reduction <add>, %149, %cst_47 [1] : vector<8x8xf32> to vector<8xf32>
    %151 = vector.shape_cast %150 : vector<8xf32> to vector<8x1xf32>
    %152 = tpu.reciprocal %151 {approx = true} : vector<8x1xf32> -> vector<8x1xf32>
    %153 = vector.broadcast %152 : vector<8x1xf32> to vector<8x8xf32>
    %154 = arith.mulf %149, %153 : vector<8x8xf32>
    %cst_48 = arith.constant dense<0.000000e+00> : vector<8x8xf32>
    %155 = tpu.matmul %154, %141, %cst_48 {dimension_numbers = #tpu.dot_dimension_numbers<[1], [0], [0], [1], [0, 0, 1, 1], [], []>} : vector<8x8xf32>, vector<8x8xf32>, vector<8x8xf32> -> vector<8x8xf32>
    %156 = tpu.concatenate %104, %121, %138, %155 in 1 : vector<8x8xf32>, vector<8x8xf32>, vector<8x8xf32>, vector<8x8xf32> -> vector<8x32xf32>
    %157 = tpu.concatenate %84, %156 in 0 : vector<8x32xf32>, vector<8x32xf32> -> vector<16x32xf32>
    %c0_49 = arith.constant 0 : index
    %c0_50 = arith.constant 0 : index
    %c0_51 = arith.constant 0 : index
    %158 = vector.load %arg5[%c0_49, %c0_50, %c0_51] : memref<2x32x32xf32, #tpu.memory_space<vmem>>, vector<1x32x32xf32>
    %159 = vector.shape_cast %158 : vector<1x32x32xf32> to vector<32x32xf32>
    %cst_52 = arith.constant dense<0.000000e+00> : vector<16x32xf32>
    %160 = tpu.matmul %157, %159, %cst_52 {dimension_numbers = #tpu.dot_dimension_numbers<[1], [0], [0], [1], [0, 0, 1, 1], [], []>} : vector<16x32xf32>, vector<32x32xf32>, vector<16x32xf32> -> vector<16x32xf32>
    %c0_53 = arith.constant 0 : index
    %c0_54 = arith.constant 0 : index
    %c0_55 = arith.constant 0 : index
    %161 = vector.load %arg6[%c0_53, %c0_54, %c0_55] : memref<2x1x32xf32, #tpu.memory_space<vmem>>, vector<1x1x32xf32>
    %162 = vector.shape_cast %161 : vector<1x1x32xf32> to vector<1x32xf32>
    %163 = vector.broadcast %162 : vector<1x32xf32> to vector<16x32xf32>
    %164 = arith.addf %160, %163 : vector<16x32xf32>
    %165 = arith.addf %2, %164 : vector<16x32xf32>
    %c0_56 = arith.constant 0 : index
    %c0_57 = arith.constant 0 : index
    %c0_58 = arith.constant 0 : index
    %166 = vector.load %arg7[%c0_56, %c0_57, %c0_58] : memref<2x1x32xf32, #tpu.memory_space<vmem>>, vector<1x1x32xf32>
    %167 = vector.shape_cast %166 : vector<1x1x32xf32> to vector<1x32xf32>
    %c0_59 = arith.constant 0 : index
    %c0_60 = arith.constant 0 : index
    %c0_61 = arith.constant 0 : index
    %168 = vector.load %arg8[%c0_59, %c0_60, %c0_61] : memref<2x1x32xf32, #tpu.memory_space<vmem>>, vector<1x1x32xf32>
    %169 = vector.shape_cast %168 : vector<1x1x32xf32> to vector<1x32xf32>
    %cst_62 = arith.constant dense<0.000000e+00> : vector<16xf32>
    %170 = vector.multi_reduction <add>, %165, %cst_62 [1] : vector<16x32xf32> to vector<16xf32>
    %171 = vector.shape_cast %170 : vector<16xf32> to vector<16x1xf32>
    %cst_63 = arith.constant 3.200000e+01 : f32
    %172 = vector.broadcast %cst_63 : f32 to vector<16x1xf32>
    %173 = arith.divf %171, %172 : vector<16x1xf32>
    %174 = vector.broadcast %173 : vector<16x1xf32> to vector<16x32xf32>
    %175 = arith.subf %165, %174 : vector<16x32xf32>
    %176 = arith.mulf %175, %175 : vector<16x32xf32>
    %cst_64 = arith.constant dense<0.000000e+00> : vector<16xf32>
    %177 = vector.multi_reduction <add>, %176, %cst_64 [1] : vector<16x32xf32> to vector<16xf32>
    %178 = vector.shape_cast %177 : vector<16xf32> to vector<16x1xf32>
    %cst_65 = arith.constant 3.200000e+01 : f32
    %179 = vector.broadcast %cst_65 : f32 to vector<16x1xf32>
    %180 = arith.divf %178, %179 : vector<16x1xf32>
    %181 = vector.broadcast %173 : vector<16x1xf32> to vector<16x32xf32>
    %182 = arith.subf %165, %181 : vector<16x32xf32>
    %cst_66 = arith.constant 9.99999974E-6 : f32
    %183 = vector.broadcast %cst_66 : f32 to vector<16x1xf32>
    %184 = arith.addf %180, %183 : vector<16x1xf32>
    %185 = math.rsqrt %184 : vector<16x1xf32>
    %186 = vector.broadcast %185 : vector<16x1xf32> to vector<16x32xf32>
    %187 = arith.mulf %182, %186 : vector<16x32xf32>
    %188 = vector.broadcast %167 : vector<1x32xf32> to vector<16x32xf32>
    %189 = arith.mulf %187, %188 : vector<16x32xf32>
    %190 = vector.broadcast %169 : vector<1x32xf32> to vector<16x32xf32>
    %191 = arith.addf %189, %190 : vector<16x32xf32>
    %c0_67 = arith.constant 0 : index
    %c0_68 = arith.constant 0 : index
    %c0_69 = arith.constant 0 : index
    %192 = vector.load %arg9[%c0_67, %c0_68, %c0_69] : memref<2x32x64xf32, #tpu.memory_space<vmem>>, vector<1x32x64xf32>
    %193 = vector.shape_cast %192 : vector<1x32x64xf32> to vector<32x64xf32>
    %cst_70 = arith.constant dense<0.000000e+00> : vector<16x64xf32>
    %194 = tpu.matmul %191, %193, %cst_70 {dimension_numbers = #tpu.dot_dimension_numbers<[1], [0], [0], [1], [0, 0, 1, 1], [], []>} : vector<16x32xf32>, vector<32x64xf32>, vector<16x64xf32> -> vector<16x64xf32>
    %c0_71 = arith.constant 0 : index
    %c0_72 = arith.constant 0 : index
    %c0_73 = arith.constant 0 : index
    %195 = vector.load %arg10[%c0_71, %c0_72, %c0_73] : memref<2x1x64xf32, #tpu.memory_space<vmem>>, vector<1x1x64xf32>
    %196 = vector.shape_cast %195 : vector<1x1x64xf32> to vector<1x64xf32>
    %197 = vector.broadcast %196 : vector<1x64xf32> to vector<16x64xf32>
    %198 = arith.addf %194, %197 : vector<16x64xf32>
    %cst_74 = arith.constant 0.000000e+00 : f32
    %199 = vector.broadcast %cst_74 : f32 to vector<16x64xf32>
    %200 = arith.maximumf %198, %199 : vector<16x64xf32>
    %c0_75 = arith.constant 0 : index
    %c0_76 = arith.constant 0 : index
    %c0_77 = arith.constant 0 : index
    %201 = vector.load %arg11[%c0_75, %c0_76, %c0_77] : memref<2x64x32xf32, #tpu.memory_space<vmem>>, vector<1x64x32xf32>
    %202 = vector.shape_cast %201 : vector<1x64x32xf32> to vector<64x32xf32>
    %cst_78 = arith.constant dense<0.000000e+00> : vector<16x32xf32>
    %203 = tpu.matmul %200, %202, %cst_78 {dimension_numbers = #tpu.dot_dimension_numbers<[1], [0], [0], [1], [0, 0, 1, 1], [], []>} : vector<16x64xf32>, vector<64x32xf32>, vector<16x32xf32> -> vector<16x32xf32>
    %c0_79 = arith.constant 0 : index
    %c0_80 = arith.constant 0 : index
    %c0_81 = arith.constant 0 : index
    %204 = vector.load %arg12[%c0_79, %c0_80, %c0_81] : memref<2x1x32xf32, #tpu.memory_space<vmem>>, vector<1x1x32xf32>
    %205 = vector.shape_cast %204 : vector<1x1x32xf32> to vector<1x32xf32>
    %206 = vector.broadcast %205 : vector<1x32xf32> to vector<16x32xf32>
    %207 = arith.addf %203, %206 : vector<16x32xf32>
    %208 = arith.addf %191, %207 : vector<16x32xf32>
    %c0_82 = arith.constant 0 : index
    %c0_83 = arith.constant 0 : index
    %c0_84 = arith.constant 0 : index
    %209 = vector.load %arg13[%c0_82, %c0_83, %c0_84] : memref<2x1x32xf32, #tpu.memory_space<vmem>>, vector<1x1x32xf32>
    %210 = vector.shape_cast %209 : vector<1x1x32xf32> to vector<1x32xf32>
    %c0_85 = arith.constant 0 : index
    %c0_86 = arith.constant 0 : index
    %c0_87 = arith.constant 0 : index
    %211 = vector.load %arg14[%c0_85, %c0_86, %c0_87] : memref<2x1x32xf32, #tpu.memory_space<vmem>>, vector<1x1x32xf32>
    %212 = vector.shape_cast %211 : vector<1x1x32xf32> to vector<1x32xf32>
    %cst_88 = arith.constant dense<0.000000e+00> : vector<16xf32>
    %213 = vector.multi_reduction <add>, %208, %cst_88 [1] : vector<16x32xf32> to vector<16xf32>
    %214 = vector.shape_cast %213 : vector<16xf32> to vector<16x1xf32>
    %cst_89 = arith.constant 3.200000e+01 : f32
    %215 = vector.broadcast %cst_89 : f32 to vector<16x1xf32>
    %216 = arith.divf %214, %215 : vector<16x1xf32>
    %217 = vector.broadcast %216 : vector<16x1xf32> to vector<16x32xf32>
    %218 = arith.subf %208, %217 : vector<16x32xf32>
    %219 = arith.mulf %218, %218 : vector<16x32xf32>
    %cst_90 = arith.constant dense<0.000000e+00> : vector<16xf32>
    %220 = vector.multi_reduction <add>, %219, %cst_90 [1] : vector<16x32xf32> to vector<16xf32>
    %221 = vector.shape_cast %220 : vector<16xf32> to vector<16x1xf32>
    %cst_91 = arith.constant 3.200000e+01 : f32
    %222 = vector.broadcast %cst_91 : f32 to vector<16x1xf32>
    %223 = arith.divf %221, %222 : vector<16x1xf32>
    %224 = vector.broadcast %216 : vector<16x1xf32> to vector<16x32xf32>
    %225 = arith.subf %208, %224 : vector<16x32xf32>
    %cst_92 = arith.constant 9.99999974E-6 : f32
    %226 = vector.broadcast %cst_92 : f32 to vector<16x1xf32>
    %227 = arith.addf %223, %226 : vector<16x1xf32>
    %228 = math.rsqrt %227 : vector<16x1xf32>
    %229 = vector.broadcast %228 : vector<16x1xf32> to vector<16x32xf32>
    %230 = arith.mulf %225, %229 : vector<16x32xf32>
    %231 = vector.broadcast %210 : vector<1x32xf32> to vector<16x32xf32>
    %232 = arith.mulf %230, %231 : vector<16x32xf32>
    %233 = vector.broadcast %212 : vector<1x32xf32> to vector<16x32xf32>
    %234 = arith.addf %232, %233 : vector<16x32xf32>
    %c1 = arith.constant 1 : index
    %c0_93 = arith.constant 0 : index
    %c0_94 = arith.constant 0 : index
    %235 = vector.load %arg3[%c1, %c0_93, %c0_94] : memref<2x32x96xf32, #tpu.memory_space<vmem>>, vector<1x32x96xf32>
    %236 = vector.shape_cast %235 : vector<1x32x96xf32> to vector<32x96xf32>
    %cst_95 = arith.constant dense<0.000000e+00> : vector<16x96xf32>
    %237 = tpu.matmul %234, %236, %cst_95 {dimension_numbers = #tpu.dot_dimension_numbers<[1], [0], [0], [1], [0, 0, 1, 1], [], []>} : vector<16x32xf32>, vector<32x96xf32>, vector<16x96xf32> -> vector<16x96xf32>
    %c1_96 = arith.constant 1 : index
    %c0_97 = arith.constant 0 : index
    %c0_98 = arith.constant 0 : index
    %238 = vector.load %arg4[%c1_96, %c0_97, %c0_98] : memref<2x1x96xf32, #tpu.memory_space<vmem>>, vector<1x1x96xf32>
    %239 = vector.shape_cast %238 : vector<1x1x96xf32> to vector<1x96xf32>
    %240 = vector.broadcast %239 : vector<1x96xf32> to vector<16x96xf32>
    %241 = arith.addf %237, %240 : vector<16x96xf32>
    %242 = vector.extract_strided_slice %241 {offsets = [0, 0], sizes = [16, 32], strides = [1, 1]} : vector<16x96xf32> to vector<16x32xf32>
    %243 = vector.extract_strided_slice %241 {offsets = [0, 32], sizes = [16, 32], strides = [1, 1]} : vector<16x96xf32> to vector<16x32xf32>
    %244 = vector.extract_strided_slice %241 {offsets = [0, 64], sizes = [16, 32], strides = [1, 1]} : vector<16x96xf32> to vector<16x32xf32>
    %245 = vector.extract_strided_slice %242 {offsets = [0, 0], sizes = [8, 32], strides = [1, 1]} : vector<16x32xf32> to vector<8x32xf32>
    %246 = vector.extract_strided_slice %243 {offsets = [0, 0], sizes = [8, 32], strides = [1, 1]} : vector<16x32xf32> to vector<8x32xf32>
    %247 = vector.extract_strided_slice %244 {offsets = [0, 0], sizes = [8, 32], strides = [1, 1]} : vector<16x32xf32> to vector<8x32xf32>
    %248 = vector.extract_strided_slice %245 {offsets = [0, 0], sizes = [8, 8], strides = [1, 1]} : vector<8x32xf32> to vector<8x8xf32>
    %249 = vector.extract_strided_slice %246 {offsets = [0, 0], sizes = [8, 8], strides = [1, 1]} : vector<8x32xf32> to vector<8x8xf32>
    %250 = vector.extract_strided_slice %247 {offsets = [0, 0], sizes = [8, 8], strides = [1, 1]} : vector<8x32xf32> to vector<8x8xf32>
    %cst_99 = arith.constant dense<0.000000e+00> : vector<8x8xf32>
    %251 = tpu.matmul %248, %249, %cst_99 {dimension_numbers = #tpu.dot_dimension_numbers<[1], [1], [0], [0], [0, 0, 1, 0], [], []>} : vector<8x8xf32>, vector<8x8xf32>, vector<8x8xf32> -> vector<8x8xf32>
    %cst_100 = arith.constant 0.353553385 : f32
    %252 = vector.broadcast %cst_100 : f32 to vector<8x8xf32>
    %253 = arith.mulf %251, %252 : vector<8x8xf32>
    %cst_101 = arith.constant dense<0xFF800000> : vector<8xf32>
    %254 = vector.multi_reduction <maximumf>, %253, %cst_101 [1] : vector<8x8xf32> to vector<8xf32>
    %255 = vector.shape_cast %254 : vector<8xf32> to vector<8x1xf32>
    %256 = vector.broadcast %255 : vector<8x1xf32> to vector<8x8xf32>
    %257 = arith.subf %253, %256 : vector<8x8xf32>
    %258 = math.exp %257 : vector<8x8xf32>
    %cst_102 = arith.constant dense<0.000000e+00> : vector<8xf32>
    %259 = vector.multi_reduction <add>, %258, %cst_102 [1] : vector<8x8xf32> to vector<8xf32>
    %260 = vector.shape_cast %259 : vector<8xf32> to vector<8x1xf32>
    %261 = tpu.reciprocal %260 {approx = true} : vector<8x1xf32> -> vector<8x1xf32>
    %262 = vector.broadcast %261 : vector<8x1xf32> to vector<8x8xf32>
    %263 = arith.mulf %258, %262 : vector<8x8xf32>
    %cst_103 = arith.constant dense<0.000000e+00> : vector<8x8xf32>
    %264 = tpu.matmul %263, %250, %cst_103 {dimension_numbers = #tpu.dot_dimension_numbers<[1], [0], [0], [1], [0, 0, 1, 1], [], []>} : vector<8x8xf32>, vector<8x8xf32>, vector<8x8xf32> -> vector<8x8xf32>
    %265 = vector.extract_strided_slice %245 {offsets = [0, 8], sizes = [8, 8], strides = [1, 1]} : vector<8x32xf32> to vector<8x8xf32>
    %266 = vector.extract_strided_slice %246 {offsets = [0, 8], sizes = [8, 8], strides = [1, 1]} : vector<8x32xf32> to vector<8x8xf32>
    %267 = vector.extract_strided_slice %247 {offsets = [0, 8], sizes = [8, 8], strides = [1, 1]} : vector<8x32xf32> to vector<8x8xf32>
    %cst_104 = arith.constant dense<0.000000e+00> : vector<8x8xf32>
    %268 = tpu.matmul %265, %266, %cst_104 {dimension_numbers = #tpu.dot_dimension_numbers<[1], [1], [0], [0], [0, 0, 1, 0], [], []>} : vector<8x8xf32>, vector<8x8xf32>, vector<8x8xf32> -> vector<8x8xf32>
    %cst_105 = arith.constant 0.353553385 : f32
    %269 = vector.broadcast %cst_105 : f32 to vector<8x8xf32>
    %270 = arith.mulf %268, %269 : vector<8x8xf32>
    %cst_106 = arith.constant dense<0xFF800000> : vector<8xf32>
    %271 = vector.multi_reduction <maximumf>, %270, %cst_106 [1] : vector<8x8xf32> to vector<8xf32>
    %272 = vector.shape_cast %271 : vector<8xf32> to vector<8x1xf32>
    %273 = vector.broadcast %272 : vector<8x1xf32> to vector<8x8xf32>
    %274 = arith.subf %270, %273 : vector<8x8xf32>
    %275 = math.exp %274 : vector<8x8xf32>
    %cst_107 = arith.constant dense<0.000000e+00> : vector<8xf32>
    %276 = vector.multi_reduction <add>, %275, %cst_107 [1] : vector<8x8xf32> to vector<8xf32>
    %277 = vector.shape_cast %276 : vector<8xf32> to vector<8x1xf32>
    %278 = tpu.reciprocal %277 {approx = true} : vector<8x1xf32> -> vector<8x1xf32>
    %279 = vector.broadcast %278 : vector<8x1xf32> to vector<8x8xf32>
    %280 = arith.mulf %275, %279 : vector<8x8xf32>
    %cst_108 = arith.constant dense<0.000000e+00> : vector<8x8xf32>
    %281 = tpu.matmul %280, %267, %cst_108 {dimension_numbers = #tpu.dot_dimension_numbers<[1], [0], [0], [1], [0, 0, 1, 1], [], []>} : vector<8x8xf32>, vector<8x8xf32>, vector<8x8xf32> -> vector<8x8xf32>
    %282 = vector.extract_strided_slice %245 {offsets = [0, 16], sizes = [8, 8], strides = [1, 1]} : vector<8x32xf32> to vector<8x8xf32>
    %283 = vector.extract_strided_slice %246 {offsets = [0, 16], sizes = [8, 8], strides = [1, 1]} : vector<8x32xf32> to vector<8x8xf32>
    %284 = vector.extract_strided_slice %247 {offsets = [0, 16], sizes = [8, 8], strides = [1, 1]} : vector<8x32xf32> to vector<8x8xf32>
    %cst_109 = arith.constant dense<0.000000e+00> : vector<8x8xf32>
    %285 = tpu.matmul %282, %283, %cst_109 {dimension_numbers = #tpu.dot_dimension_numbers<[1], [1], [0], [0], [0, 0, 1, 0], [], []>} : vector<8x8xf32>, vector<8x8xf32>, vector<8x8xf32> -> vector<8x8xf32>
    %cst_110 = arith.constant 0.353553385 : f32
    %286 = vector.broadcast %cst_110 : f32 to vector<8x8xf32>
    %287 = arith.mulf %285, %286 : vector<8x8xf32>
    %cst_111 = arith.constant dense<0xFF800000> : vector<8xf32>
    %288 = vector.multi_reduction <maximumf>, %287, %cst_111 [1] : vector<8x8xf32> to vector<8xf32>
    %289 = vector.shape_cast %288 : vector<8xf32> to vector<8x1xf32>
    %290 = vector.broadcast %289 : vector<8x1xf32> to vector<8x8xf32>
    %291 = arith.subf %287, %290 : vector<8x8xf32>
    %292 = math.exp %291 : vector<8x8xf32>
    %cst_112 = arith.constant dense<0.000000e+00> : vector<8xf32>
    %293 = vector.multi_reduction <add>, %292, %cst_112 [1] : vector<8x8xf32> to vector<8xf32>
    %294 = vector.shape_cast %293 : vector<8xf32> to vector<8x1xf32>
    %295 = tpu.reciprocal %294 {approx = true} : vector<8x1xf32> -> vector<8x1xf32>
    %296 = vector.broadcast %295 : vector<8x1xf32> to vector<8x8xf32>
    %297 = arith.mulf %292, %296 : vector<8x8xf32>
    %cst_113 = arith.constant dense<0.000000e+00> : vector<8x8xf32>
    %298 = tpu.matmul %297, %284, %cst_113 {dimension_numbers = #tpu.dot_dimension_numbers<[1], [0], [0], [1], [0, 0, 1, 1], [], []>} : vector<8x8xf32>, vector<8x8xf32>, vector<8x8xf32> -> vector<8x8xf32>
    %299 = vector.extract_strided_slice %245 {offsets = [0, 24], sizes = [8, 8], strides = [1, 1]} : vector<8x32xf32> to vector<8x8xf32>
    %300 = vector.extract_strided_slice %246 {offsets = [0, 24], sizes = [8, 8], strides = [1, 1]} : vector<8x32xf32> to vector<8x8xf32>
    %301 = vector.extract_strided_slice %247 {offsets = [0, 24], sizes = [8, 8], strides = [1, 1]} : vector<8x32xf32> to vector<8x8xf32>
    %cst_114 = arith.constant dense<0.000000e+00> : vector<8x8xf32>
    %302 = tpu.matmul %299, %300, %cst_114 {dimension_numbers = #tpu.dot_dimension_numbers<[1], [1], [0], [0], [0, 0, 1, 0], [], []>} : vector<8x8xf32>, vector<8x8xf32>, vector<8x8xf32> -> vector<8x8xf32>
    %cst_115 = arith.constant 0.353553385 : f32
    %303 = vector.broadcast %cst_115 : f32 to vector<8x8xf32>
    %304 = arith.mulf %302, %303 : vector<8x8xf32>
    %cst_116 = arith.constant dense<0xFF800000> : vector<8xf32>
    %305 = vector.multi_reduction <maximumf>, %304, %cst_116 [1] : vector<8x8xf32> to vector<8xf32>
    %306 = vector.shape_cast %305 : vector<8xf32> to vector<8x1xf32>
    %307 = vector.broadcast %306 : vector<8x1xf32> to vector<8x8xf32>
    %308 = arith.subf %304, %307 : vector<8x8xf32>
    %309 = math.exp %308 : vector<8x8xf32>
    %cst_117 = arith.constant dense<0.000000e+00> : vector<8xf32>
    %310 = vector.multi_reduction <add>, %309, %cst_117 [1] : vector<8x8xf32> to vector<8xf32>
    %311 = vector.shape_cast %310 : vector<8xf32> to vector<8x1xf32>
    %312 = tpu.reciprocal %311 {approx = true} : vector<8x1xf32> -> vector<8x1xf32>
    %313 = vector.broadcast %312 : vector<8x1xf32> to vector<8x8xf32>
    %314 = arith.mulf %309, %313 : vector<8x8xf32>
    %cst_118 = arith.constant dense<0.000000e+00> : vector<8x8xf32>
    %315 = tpu.matmul %314, %301, %cst_118 {dimension_numbers = #tpu.dot_dimension_numbers<[1], [0], [0], [1], [0, 0, 1, 1], [], []>} : vector<8x8xf32>, vector<8x8xf32>, vector<8x8xf32> -> vector<8x8xf32>
    %316 = tpu.concatenate %264, %281, %298, %315 in 1 : vector<8x8xf32>, vector<8x8xf32>, vector<8x8xf32>, vector<8x8xf32> -> vector<8x32xf32>
    %317 = vector.extract_strided_slice %242 {offsets = [8, 0], sizes = [8, 32], strides = [1, 1]} : vector<16x32xf32> to vector<8x32xf32>
    %318 = vector.extract_strided_slice %243 {offsets = [8, 0], sizes = [8, 32], strides = [1, 1]} : vector<16x32xf32> to vector<8x32xf32>
    %319 = vector.extract_strided_slice %244 {offsets = [8, 0], sizes = [8, 32], strides = [1, 1]} : vector<16x32xf32> to vector<8x32xf32>
    %320 = vector.extract_strided_slice %317 {offsets = [0, 0], sizes = [8, 8], strides = [1, 1]} : vector<8x32xf32> to vector<8x8xf32>
    %321 = vector.extract_strided_slice %318 {offsets = [0, 0], sizes = [8, 8], strides = [1, 1]} : vector<8x32xf32> to vector<8x8xf32>
    %322 = vector.extract_strided_slice %319 {offsets = [0, 0], sizes = [8, 8], strides = [1, 1]} : vector<8x32xf32> to vector<8x8xf32>
    %cst_119 = arith.constant dense<0.000000e+00> : vector<8x8xf32>
    %323 = tpu.matmul %320, %321, %cst_119 {dimension_numbers = #tpu.dot_dimension_numbers<[1], [1], [0], [0], [0, 0, 1, 0], [], []>} : vector<8x8xf32>, vector<8x8xf32>, vector<8x8xf32> -> vector<8x8xf32>
    %cst_120 = arith.constant 0.353553385 : f32
    %324 = vector.broadcast %cst_120 : f32 to vector<8x8xf32>
    %325 = arith.mulf %323, %324 : vector<8x8xf32>
    %cst_121 = arith.constant dense<0xFF800000> : vector<8xf32>
    %326 = vector.multi_reduction <maximumf>, %325, %cst_121 [1] : vector<8x8xf32> to vector<8xf32>
    %327 = vector.shape_cast %326 : vector<8xf32> to vector<8x1xf32>
    %328 = vector.broadcast %327 : vector<8x1xf32> to vector<8x8xf32>
    %329 = arith.subf %325, %328 : vector<8x8xf32>
    %330 = math.exp %329 : vector<8x8xf32>
    %cst_122 = arith.constant dense<0.000000e+00> : vector<8xf32>
    %331 = vector.multi_reduction <add>, %330, %cst_122 [1] : vector<8x8xf32> to vector<8xf32>
    %332 = vector.shape_cast %331 : vector<8xf32> to vector<8x1xf32>
    %333 = tpu.reciprocal %332 {approx = true} : vector<8x1xf32> -> vector<8x1xf32>
    %334 = vector.broadcast %333 : vector<8x1xf32> to vector<8x8xf32>
    %335 = arith.mulf %330, %334 : vector<8x8xf32>
    %cst_123 = arith.constant dense<0.000000e+00> : vector<8x8xf32>
    %336 = tpu.matmul %335, %322, %cst_123 {dimension_numbers = #tpu.dot_dimension_numbers<[1], [0], [0], [1], [0, 0, 1, 1], [], []>} : vector<8x8xf32>, vector<8x8xf32>, vector<8x8xf32> -> vector<8x8xf32>
    %337 = vector.extract_strided_slice %317 {offsets = [0, 8], sizes = [8, 8], strides = [1, 1]} : vector<8x32xf32> to vector<8x8xf32>
    %338 = vector.extract_strided_slice %318 {offsets = [0, 8], sizes = [8, 8], strides = [1, 1]} : vector<8x32xf32> to vector<8x8xf32>
    %339 = vector.extract_strided_slice %319 {offsets = [0, 8], sizes = [8, 8], strides = [1, 1]} : vector<8x32xf32> to vector<8x8xf32>
    %cst_124 = arith.constant dense<0.000000e+00> : vector<8x8xf32>
    %340 = tpu.matmul %337, %338, %cst_124 {dimension_numbers = #tpu.dot_dimension_numbers<[1], [1], [0], [0], [0, 0, 1, 0], [], []>} : vector<8x8xf32>, vector<8x8xf32>, vector<8x8xf32> -> vector<8x8xf32>
    %cst_125 = arith.constant 0.353553385 : f32
    %341 = vector.broadcast %cst_125 : f32 to vector<8x8xf32>
    %342 = arith.mulf %340, %341 : vector<8x8xf32>
    %cst_126 = arith.constant dense<0xFF800000> : vector<8xf32>
    %343 = vector.multi_reduction <maximumf>, %342, %cst_126 [1] : vector<8x8xf32> to vector<8xf32>
    %344 = vector.shape_cast %343 : vector<8xf32> to vector<8x1xf32>
    %345 = vector.broadcast %344 : vector<8x1xf32> to vector<8x8xf32>
    %346 = arith.subf %342, %345 : vector<8x8xf32>
    %347 = math.exp %346 : vector<8x8xf32>
    %cst_127 = arith.constant dense<0.000000e+00> : vector<8xf32>
    %348 = vector.multi_reduction <add>, %347, %cst_127 [1] : vector<8x8xf32> to vector<8xf32>
    %349 = vector.shape_cast %348 : vector<8xf32> to vector<8x1xf32>
    %350 = tpu.reciprocal %349 {approx = true} : vector<8x1xf32> -> vector<8x1xf32>
    %351 = vector.broadcast %350 : vector<8x1xf32> to vector<8x8xf32>
    %352 = arith.mulf %347, %351 : vector<8x8xf32>
    %cst_128 = arith.constant dense<0.000000e+00> : vector<8x8xf32>
    %353 = tpu.matmul %352, %339, %cst_128 {dimension_numbers = #tpu.dot_dimension_numbers<[1], [0], [0], [1], [0, 0, 1, 1], [], []>} : vector<8x8xf32>, vector<8x8xf32>, vector<8x8xf32> -> vector<8x8xf32>
    %354 = vector.extract_strided_slice %317 {offsets = [0, 16], sizes = [8, 8], strides = [1, 1]} : vector<8x32xf32> to vector<8x8xf32>
    %355 = vector.extract_strided_slice %318 {offsets = [0, 16], sizes = [8, 8], strides = [1, 1]} : vector<8x32xf32> to vector<8x8xf32>
    %356 = vector.extract_strided_slice %319 {offsets = [0, 16], sizes = [8, 8], strides = [1, 1]} : vector<8x32xf32> to vector<8x8xf32>
    %cst_129 = arith.constant dense<0.000000e+00> : vector<8x8xf32>
    %357 = tpu.matmul %354, %355, %cst_129 {dimension_numbers = #tpu.dot_dimension_numbers<[1], [1], [0], [0], [0, 0, 1, 0], [], []>} : vector<8x8xf32>, vector<8x8xf32>, vector<8x8xf32> -> vector<8x8xf32>
    %cst_130 = arith.constant 0.353553385 : f32
    %358 = vector.broadcast %cst_130 : f32 to vector<8x8xf32>
    %359 = arith.mulf %357, %358 : vector<8x8xf32>
    %cst_131 = arith.constant dense<0xFF800000> : vector<8xf32>
    %360 = vector.multi_reduction <maximumf>, %359, %cst_131 [1] : vector<8x8xf32> to vector<8xf32>
    %361 = vector.shape_cast %360 : vector<8xf32> to vector<8x1xf32>
    %362 = vector.broadcast %361 : vector<8x1xf32> to vector<8x8xf32>
    %363 = arith.subf %359, %362 : vector<8x8xf32>
    %364 = math.exp %363 : vector<8x8xf32>
    %cst_132 = arith.constant dense<0.000000e+00> : vector<8xf32>
    %365 = vector.multi_reduction <add>, %364, %cst_132 [1] : vector<8x8xf32> to vector<8xf32>
    %366 = vector.shape_cast %365 : vector<8xf32> to vector<8x1xf32>
    %367 = tpu.reciprocal %366 {approx = true} : vector<8x1xf32> -> vector<8x1xf32>
    %368 = vector.broadcast %367 : vector<8x1xf32> to vector<8x8xf32>
    %369 = arith.mulf %364, %368 : vector<8x8xf32>
    %cst_133 = arith.constant dense<0.000000e+00> : vector<8x8xf32>
    %370 = tpu.matmul %369, %356, %cst_133 {dimension_numbers = #tpu.dot_dimension_numbers<[1], [0], [0], [1], [0, 0, 1, 1], [], []>} : vector<8x8xf32>, vector<8x8xf32>, vector<8x8xf32> -> vector<8x8xf32>
    %371 = vector.extract_strided_slice %317 {offsets = [0, 24], sizes = [8, 8], strides = [1, 1]} : vector<8x32xf32> to vector<8x8xf32>
    %372 = vector.extract_strided_slice %318 {offsets = [0, 24], sizes = [8, 8], strides = [1, 1]} : vector<8x32xf32> to vector<8x8xf32>
    %373 = vector.extract_strided_slice %319 {offsets = [0, 24], sizes = [8, 8], strides = [1, 1]} : vector<8x32xf32> to vector<8x8xf32>
    %cst_134 = arith.constant dense<0.000000e+00> : vector<8x8xf32>
    %374 = tpu.matmul %371, %372, %cst_134 {dimension_numbers = #tpu.dot_dimension_numbers<[1], [1], [0], [0], [0, 0, 1, 0], [], []>} : vector<8x8xf32>, vector<8x8xf32>, vector<8x8xf32> -> vector<8x8xf32>
    %cst_135 = arith.constant 0.353553385 : f32
    %375 = vector.broadcast %cst_135 : f32 to vector<8x8xf32>
    %376 = arith.mulf %374, %375 : vector<8x8xf32>
    %cst_136 = arith.constant dense<0xFF800000> : vector<8xf32>
    %377 = vector.multi_reduction <maximumf>, %376, %cst_136 [1] : vector<8x8xf32> to vector<8xf32>
    %378 = vector.shape_cast %377 : vector<8xf32> to vector<8x1xf32>
    %379 = vector.broadcast %378 : vector<8x1xf32> to vector<8x8xf32>
    %380 = arith.subf %376, %379 : vector<8x8xf32>
    %381 = math.exp %380 : vector<8x8xf32>
    %cst_137 = arith.constant dense<0.000000e+00> : vector<8xf32>
    %382 = vector.multi_reduction <add>, %381, %cst_137 [1] : vector<8x8xf32> to vector<8xf32>
    %383 = vector.shape_cast %382 : vector<8xf32> to vector<8x1xf32>
    %384 = tpu.reciprocal %383 {approx = true} : vector<8x1xf32> -> vector<8x1xf32>
    %385 = vector.broadcast %384 : vector<8x1xf32> to vector<8x8xf32>
    %386 = arith.mulf %381, %385 : vector<8x8xf32>
    %cst_138 = arith.constant dense<0.000000e+00> : vector<8x8xf32>
    %387 = tpu.matmul %386, %373, %cst_138 {dimension_numbers = #tpu.dot_dimension_numbers<[1], [0], [0], [1], [0, 0, 1, 1], [], []>} : vector<8x8xf32>, vector<8x8xf32>, vector<8x8xf32> -> vector<8x8xf32>
    %388 = tpu.concatenate %336, %353, %370, %387 in 1 : vector<8x8xf32>, vector<8x8xf32>, vector<8x8xf32>, vector<8x8xf32> -> vector<8x32xf32>
    %389 = tpu.concatenate %316, %388 in 0 : vector<8x32xf32>, vector<8x32xf32> -> vector<16x32xf32>
    %c1_139 = arith.constant 1 : index
    %c0_140 = arith.constant 0 : index
    %c0_141 = arith.constant 0 : index
    %390 = vector.load %arg5[%c1_139, %c0_140, %c0_141] : memref<2x32x32xf32, #tpu.memory_space<vmem>>, vector<1x32x32xf32>
    %391 = vector.shape_cast %390 : vector<1x32x32xf32> to vector<32x32xf32>
    %cst_142 = arith.constant dense<0.000000e+00> : vector<16x32xf32>
    %392 = tpu.matmul %389, %391, %cst_142 {dimension_numbers = #tpu.dot_dimension_numbers<[1], [0], [0], [1], [0, 0, 1, 1], [], []>} : vector<16x32xf32>, vector<32x32xf32>, vector<16x32xf32> -> vector<16x32xf32>
    %c1_143 = arith.constant 1 : index
    %c0_144 = arith.constant 0 : index
    %c0_145 = arith.constant 0 : index
    %393 = vector.load %arg6[%c1_143, %c0_144, %c0_145] : memref<2x1x32xf32, #tpu.memory_space<vmem>>, vector<1x1x32xf32>
    %394 = vector.shape_cast %393 : vector<1x1x32xf32> to vector<1x32xf32>
    %395 = vector.broadcast %394 : vector<1x32xf32> to vector<16x32xf32>
    %396 = arith.addf %392, %395 : vector<16x32xf32>
    %397 = arith.addf %234, %396 : vector<16x32xf32>
    %c1_146 = arith.constant 1 : index
    %c0_147 = arith.constant 0 : index
    %c0_148 = arith.constant 0 : index
    %398 = vector.load %arg7[%c1_146, %c0_147, %c0_148] : memref<2x1x32xf32, #tpu.memory_space<vmem>>, vector<1x1x32xf32>
    %399 = vector.shape_cast %398 : vector<1x1x32xf32> to vector<1x32xf32>
    %c1_149 = arith.constant 1 : index
    %c0_150 = arith.constant 0 : index
    %c0_151 = arith.constant 0 : index
    %400 = vector.load %arg8[%c1_149, %c0_150, %c0_151] : memref<2x1x32xf32, #tpu.memory_space<vmem>>, vector<1x1x32xf32>
    %401 = vector.shape_cast %400 : vector<1x1x32xf32> to vector<1x32xf32>
    %cst_152 = arith.constant dense<0.000000e+00> : vector<16xf32>
    %402 = vector.multi_reduction <add>, %397, %cst_152 [1] : vector<16x32xf32> to vector<16xf32>
    %403 = vector.shape_cast %402 : vector<16xf32> to vector<16x1xf32>
    %cst_153 = arith.constant 3.200000e+01 : f32
    %404 = vector.broadcast %cst_153 : f32 to vector<16x1xf32>
    %405 = arith.divf %403, %404 : vector<16x1xf32>
    %406 = vector.broadcast %405 : vector<16x1xf32> to vector<16x32xf32>
    %407 = arith.subf %397, %406 : vector<16x32xf32>
    %408 = arith.mulf %407, %407 : vector<16x32xf32>
    %cst_154 = arith.constant dense<0.000000e+00> : vector<16xf32>
    %409 = vector.multi_reduction <add>, %408, %cst_154 [1] : vector<16x32xf32> to vector<16xf32>
    %410 = vector.shape_cast %409 : vector<16xf32> to vector<16x1xf32>
    %cst_155 = arith.constant 3.200000e+01 : f32
    %411 = vector.broadcast %cst_155 : f32 to vector<16x1xf32>
    %412 = arith.divf %410, %411 : vector<16x1xf32>
    %413 = vector.broadcast %405 : vector<16x1xf32> to vector<16x32xf32>
    %414 = arith.subf %397, %413 : vector<16x32xf32>
    %cst_156 = arith.constant 9.99999974E-6 : f32
    %415 = vector.broadcast %cst_156 : f32 to vector<16x1xf32>
    %416 = arith.addf %412, %415 : vector<16x1xf32>
    %417 = math.rsqrt %416 : vector<16x1xf32>
    %418 = vector.broadcast %417 : vector<16x1xf32> to vector<16x32xf32>
    %419 = arith.mulf %414, %418 : vector<16x32xf32>
    %420 = vector.broadcast %399 : vector<1x32xf32> to vector<16x32xf32>
    %421 = arith.mulf %419, %420 : vector<16x32xf32>
    %422 = vector.broadcast %401 : vector<1x32xf32> to vector<16x32xf32>
    %423 = arith.addf %421, %422 : vector<16x32xf32>
    %c1_157 = arith.constant 1 : index
    %c0_158 = arith.constant 0 : index
    %c0_159 = arith.constant 0 : index
    %424 = vector.load %arg9[%c1_157, %c0_158, %c0_159] : memref<2x32x64xf32, #tpu.memory_space<vmem>>, vector<1x32x64xf32>
    %425 = vector.shape_cast %424 : vector<1x32x64xf32> to vector<32x64xf32>
    %cst_160 = arith.constant dense<0.000000e+00> : vector<16x64xf32>
    %426 = tpu.matmul %423, %425, %cst_160 {dimension_numbers = #tpu.dot_dimension_numbers<[1], [0], [0], [1], [0, 0, 1, 1], [], []>} : vector<16x32xf32>, vector<32x64xf32>, vector<16x64xf32> -> vector<16x64xf32>
    %c1_161 = arith.constant 1 : index
    %c0_162 = arith.constant 0 : index
    %c0_163 = arith.constant 0 : index
    %427 = vector.load %arg10[%c1_161, %c0_162, %c0_163] : memref<2x1x64xf32, #tpu.memory_space<vmem>>, vector<1x1x64xf32>
    %428 = vector.shape_cast %427 : vector<1x1x64xf32> to vector<1x64xf32>
    %429 = vector.broadcast %428 : vector<1x64xf32> to vector<16x64xf32>
    %430 = arith.addf %426, %429 : vector<16x64xf32>
    %cst_164 = arith.constant 0.000000e+00 : f32
    %431 = vector.broadcast %cst_164 : f32 to vector<16x64xf32>
    %432 = arith.maximumf %430, %431 : vector<16x64xf32>
    %c1_165 = arith.constant 1 : index
    %c0_166 = arith.constant 0 : index
    %c0_167 = arith.constant 0 : index
    %433 = vector.load %arg11[%c1_165, %c0_166, %c0_167] : memref<2x64x32xf32, #tpu.memory_space<vmem>>, vector<1x64x32xf32>
    %434 = vector.shape_cast %433 : vector<1x64x32xf32> to vector<64x32xf32>
    %cst_168 = arith.constant dense<0.000000e+00> : vector<16x32xf32>
    %435 = tpu.matmul %432, %434, %cst_168 {dimension_numbers = #tpu.dot_dimension_numbers<[1], [0], [0], [1], [0, 0, 1, 1], [], []>} : vector<16x64xf32>, vector<64x32xf32>, vector<16x32xf32> -> vector<16x32xf32>
    %c1_169 = arith.constant 1 : index
    %c0_170 = arith.constant 0 : index
    %c0_171 = arith.constant 0 : index
    %436 = vector.load %arg12[%c1_169, %c0_170, %c0_171] : memref<2x1x32xf32, #tpu.memory_space<vmem>>, vector<1x1x32xf32>
    %437 = vector.shape_cast %436 : vector<1x1x32xf32> to vector<1x32xf32>
    %438 = vector.broadcast %437 : vector<1x32xf32> to vector<16x32xf32>
    %439 = arith.addf %435, %438 : vector<16x32xf32>
    %440 = arith.addf %423, %439 : vector<16x32xf32>
    %c1_172 = arith.constant 1 : index
    %c0_173 = arith.constant 0 : index
    %c0_174 = arith.constant 0 : index
    %441 = vector.load %arg13[%c1_172, %c0_173, %c0_174] : memref<2x1x32xf32, #tpu.memory_space<vmem>>, vector<1x1x32xf32>
    %442 = vector.shape_cast %441 : vector<1x1x32xf32> to vector<1x32xf32>
    %c1_175 = arith.constant 1 : index
    %c0_176 = arith.constant 0 : index
    %c0_177 = arith.constant 0 : index
    %443 = vector.load %arg14[%c1_175, %c0_176, %c0_177] : memref<2x1x32xf32, #tpu.memory_space<vmem>>, vector<1x1x32xf32>
    %444 = vector.shape_cast %443 : vector<1x1x32xf32> to vector<1x32xf32>
    %cst_178 = arith.constant dense<0.000000e+00> : vector<16xf32>
    %445 = vector.multi_reduction <add>, %440, %cst_178 [1] : vector<16x32xf32> to vector<16xf32>
    %446 = vector.shape_cast %445 : vector<16xf32> to vector<16x1xf32>
    %cst_179 = arith.constant 3.200000e+01 : f32
    %447 = vector.broadcast %cst_179 : f32 to vector<16x1xf32>
    %448 = arith.divf %446, %447 : vector<16x1xf32>
    %449 = vector.broadcast %448 : vector<16x1xf32> to vector<16x32xf32>
    %450 = arith.subf %440, %449 : vector<16x32xf32>
    %451 = arith.mulf %450, %450 : vector<16x32xf32>
    %cst_180 = arith.constant dense<0.000000e+00> : vector<16xf32>
    %452 = vector.multi_reduction <add>, %451, %cst_180 [1] : vector<16x32xf32> to vector<16xf32>
    %453 = vector.shape_cast %452 : vector<16xf32> to vector<16x1xf32>
    %cst_181 = arith.constant 3.200000e+01 : f32
    %454 = vector.broadcast %cst_181 : f32 to vector<16x1xf32>
    %455 = arith.divf %453, %454 : vector<16x1xf32>
    %456 = vector.broadcast %448 : vector<16x1xf32> to vector<16x32xf32>
    %457 = arith.subf %440, %456 : vector<16x32xf32>
    %cst_182 = arith.constant 9.99999974E-6 : f32
    %458 = vector.broadcast %cst_182 : f32 to vector<16x1xf32>
    %459 = arith.addf %455, %458 : vector<16x1xf32>
    %460 = math.rsqrt %459 : vector<16x1xf32>
    %461 = vector.broadcast %460 : vector<16x1xf32> to vector<16x32xf32>
    %462 = arith.mulf %457, %461 : vector<16x32xf32>
    %463 = vector.broadcast %442 : vector<1x32xf32> to vector<16x32xf32>
    %464 = arith.mulf %462, %463 : vector<16x32xf32>
    %465 = vector.broadcast %444 : vector<1x32xf32> to vector<16x32xf32>
    %466 = arith.addf %464, %465 : vector<16x32xf32>
    %467 = vector.extract_strided_slice %466 {offsets = [0, 0], sizes = [8, 32], strides = [1, 1]} : vector<16x32xf32> to vector<8x32xf32>
    %cst_183 = arith.constant dense<0xFF800000> : vector<32xf32>
    %468 = vector.multi_reduction <maximumf>, %467, %cst_183 [0] : vector<8x32xf32> to vector<32xf32>
    %469 = vector.shape_cast %468 : vector<32xf32> to vector<1x32xf32>
    %470 = vector.extract_strided_slice %466 {offsets = [8, 0], sizes = [8, 32], strides = [1, 1]} : vector<16x32xf32> to vector<8x32xf32>
    %cst_184 = arith.constant dense<0xFF800000> : vector<32xf32>
    %471 = vector.multi_reduction <maximumf>, %470, %cst_184 [0] : vector<8x32xf32> to vector<32xf32>
    %472 = vector.shape_cast %471 : vector<32xf32> to vector<1x32xf32>
    %473 = tpu.concatenate %469, %472 in 0 : vector<1x32xf32>, vector<1x32xf32> -> vector<2x32xf32>
    %c0_185 = arith.constant 0 : index
    %c0_186 = arith.constant 0 : index
    %474 = vector.load %arg15[%c0_185, %c0_186] : memref<32x32xf32, #tpu.memory_space<vmem>>, vector<32x32xf32>
    %cst_187 = arith.constant dense<0.000000e+00> : vector<2x32xf32>
    %475 = tpu.matmul %473, %474, %cst_187 {dimension_numbers = #tpu.dot_dimension_numbers<[1], [0], [0], [1], [0, 0, 1, 1], [], []>} : vector<2x32xf32>, vector<32x32xf32>, vector<2x32xf32> -> vector<2x32xf32>
    %c0_188 = arith.constant 0 : index
    %c0_189 = arith.constant 0 : index
    %476 = vector.load %arg16[%c0_188, %c0_189] : memref<1x32xf32, #tpu.memory_space<vmem>>, vector<1x32xf32>
    %477 = vector.broadcast %476 : vector<1x32xf32> to vector<2x32xf32>
    %478 = arith.addf %475, %477 : vector<2x32xf32>
    %c0_190 = arith.constant 0 : index
    %c0_191 = arith.constant 0 : index
    %479 = vector.load %arg17[%c0_190, %c0_191] : memref<2x32xf32, #tpu.memory_space<vmem>>, vector<2x32xf32>
    tpu.vector_store %arg17[%c0_190, %c0_191], %478 {strides = array<i32>} : memref<2x32xf32, #tpu.memory_space<vmem>>, vector<2x32xf32>,
    return
  }
  func.func @transform_0(%arg0: i32) -> (i32, i32) {
    %c0_i32 = arith.constant 0 : i32
    %c0_i32_0 = arith.constant 0 : i32
    %c0_i32_1 = arith.constant 0 : i32
    return %c0_i32, %c0_i32_0 : i32, i32
  }
  func.func @transform_1(%arg0: i32) -> (i32, i32) {
    %c0_i32 = arith.constant 0 : i32
    %c0_i32_0 = arith.constant 0 : i32
    %c0_i32_1 = arith.constant 0 : i32
    return %c0_i32, %c0_i32_0 : i32, i32
  }
  func.func @transform_2(%arg0: i32) -> (i32, i32, i32) {
    %c0_i32 = arith.constant 0 : i32
    %c0_i32_0 = arith.constant 0 : i32
    %c0_i32_1 = arith.constant 0 : i32
    %c0_i32_2 = arith.constant 0 : i32
    return %c0_i32, %c0_i32_0, %c0_i32_1 : i32, i32, i32
  }
  func.func @transform_3(%arg0: i32) -> (i32, i32, i32) {
    %c0_i32 = arith.constant 0 : i32
    %c0_i32_0 = arith.constant 0 : i32
    %c0_i32_1 = arith.constant 0 : i32
    %c0_i32_2 = arith.constant 0 : i32
    return %c0_i32, %c0_i32_0, %c0_i32_1 : i32, i32, i32
  }
  func.func @transform_4(%arg0: i32) -> (i32, i32, i32) {
    %c0_i32 = arith.constant 0 : i32
    %c0_i32_0 = arith.constant 0 : i32
    %c0_i32_1 = arith.constant 0 : i32
    %c0_i32_2 = arith.constant 0 : i32
    return %c0_i32, %c0_i32_0, %c0_i32_1 : i32, i32, i32
  }
  func.func @transform_5(%arg0: i32) -> (i32, i32, i32) {
    %c0_i32 = arith.constant 0 : i32
    %c0_i32_0 = arith.constant 0 : i32
    %c0_i32_1 = arith.constant 0 : i32
    %c0_i32_2 = arith.constant 0 : i32
    return %c0_i32, %c0_i32_0, %c0_i32_1 : i32, i32, i32
  }
  func.func @transform_6(%arg0: i32) -> (i32, i32, i32) {
    %c0_i32 = arith.constant 0 : i32
    %c0_i32_0 = arith.constant 0 : i32
    %c0_i32_1 = arith.constant 0 : i32
    %c0_i32_2 = arith.constant 0 : i32
    return %c0_i32, %c0_i32_0, %c0_i32_1 : i32, i32, i32
  }
  func.func @transform_7(%arg0: i32) -> (i32, i32, i32) {
    %c0_i32 = arith.constant 0 : i32
    %c0_i32_0 = arith.constant 0 : i32
    %c0_i32_1 = arith.constant 0 : i32
    %c0_i32_2 = arith.constant 0 : i32
    return %c0_i32, %c0_i32_0, %c0_i32_1 : i32, i32, i32
  }
  func.func @transform_8(%arg0: i32) -> (i32, i32, i32) {
    %c0_i32 = arith.constant 0 : i32
    %c0_i32_0 = arith.constant 0 : i32
    %c0_i32_1 = arith.constant 0 : i32
    %c0_i32_2 = arith.constant 0 : i32
    return %c0_i32, %c0_i32_0, %c0_i32_1 : i32, i32, i32
  }
  func.func @transform_9(%arg0: i32) -> (i32, i32, i32) {
    %c0_i32 = arith.constant 0 : i32
    %c0_i32_0 = arith.constant 0 : i32
    %c0_i32_1 = arith.constant 0 : i32
    %c0_i32_2 = arith.constant 0 : i32
    return %c0_i32, %c0_i32_0, %c0_i32_1 : i32, i32, i32
  }
  func.func @transform_10(%arg0: i32) -> (i32, i32, i32) {
    %c0_i32 = arith.constant 0 : i32
    %c0_i32_0 = arith.constant 0 : i32
    %c0_i32_1 = arith.constant 0 : i32
    %c0_i32_2 = arith.constant 0 : i32
    return %c0_i32, %c0_i32_0, %c0_i32_1 : i32, i32, i32
  }
  func.func @transform_11(%arg0: i32) -> (i32, i32, i32) {
    %c0_i32 = arith.constant 0 : i32
    %c0_i32_0 = arith.constant 0 : i32
    %c0_i32_1 = arith.constant 0 : i32
    %c0_i32_2 = arith.constant 0 : i32
    return %c0_i32, %c0_i32_0, %c0_i32_1 : i32, i32, i32
  }
  func.func @transform_12(%arg0: i32) -> (i32, i32, i32) {
    %c0_i32 = arith.constant 0 : i32
    %c0_i32_0 = arith.constant 0 : i32
    %c0_i32_1 = arith.constant 0 : i32
    %c0_i32_2 = arith.constant 0 : i32
    return %c0_i32, %c0_i32_0, %c0_i32_1 : i32, i32, i32
  }
  func.func @transform_13(%arg0: i32) -> (i32, i32, i32) {
    %c0_i32 = arith.constant 0 : i32
    %c0_i32_0 = arith.constant 0 : i32
    %c0_i32_1 = arith.constant 0 : i32
    %c0_i32_2 = arith.constant 0 : i32
    return %c0_i32, %c0_i32_0, %c0_i32_1 : i32, i32, i32
  }
  func.func @transform_14(%arg0: i32) -> (i32, i32) {
    %c0_i32 = arith.constant 0 : i32
    %c0_i32_0 = arith.constant 0 : i32
    %c0_i32_1 = arith.constant 0 : i32
    return %c0_i32, %c0_i32_0 : i32, i32
  }
  func.func @transform_15(%arg0: i32) -> (i32, i32) {
    %c0_i32 = arith.constant 0 : i32
    %c0_i32_0 = arith.constant 0 : i32
    %c0_i32_1 = arith.constant 0 : i32
    return %c0_i32, %c0_i32_0 : i32, i32
  }
  func.func @transform_16(%arg0: i32) -> (i32, i32) {
    %c0_i32 = arith.constant 0 : i32
    %c0_i32_0 = arith.constant 0 : i32
    %c0_i32_1 = arith.constant 0 : i32
    return %c0_i32, %c0_i32_0 : i32, i32
  }
}

</mosaic_0001>

<llo_original>
// kernel: tpu_custom_call.1
$region0: #{tpu_custom_call.1}
  #allocation0 [shape = 'u32[]', space=smem, size = 0x4, offset = 0x4, fixed_abs, tag = 'smem constant byte address 0x4 - core index']
  #allocation1 [shape = 'u32[144,128]{1,0:T(1,128)}', space=vmem, size = 0x12000, scoped, tag = 'internal scratch']
  %s0 = inlined_call_operand.hbm [shape: f32[16,32], index: 0, kind: input, shape index: {}]
  %s1 = inlined_call_operand.hbm [shape: f32[16,32], index: 1, kind: input, shape index: {}]
  %s2 = inlined_call_operand.vmem [shape: f32[2,32,96], index: 2, kind: input, shape index: {}]
  %s3 = inlined_call_operand.vmem [shape: f32[2,1,96], index: 3, kind: input, shape index: {}]
  %s4 = inlined_call_operand.vmem [shape: f32[2,32,32], index: 4, kind: input, shape index: {}]
  %s5 = inlined_call_operand.vmem [shape: f32[2,1,32], index: 5, kind: input, shape index: {}]
  %s6 = inlined_call_operand.vmem [shape: f32[2,1,32], index: 6, kind: input, shape index: {}]
  %s7 = inlined_call_operand.vmem [shape: f32[2,1,32], index: 7, kind: input, shape index: {}]
  %s8 = inlined_call_operand.vmem [shape: f32[2,32,64], index: 8, kind: input, shape index: {}]
  %s9 = inlined_call_operand.vmem [shape: f32[2,1,64], index: 9, kind: input, shape index: {}]
  %s10 = inlined_call_operand.vmem [shape: f32[2,64,32], index: 10, kind: input, shape index: {}]
  %s11 = inlined_call_operand.vmem [shape: f32[2,1,32], index: 11, kind: input, shape index: {}]
  %s12 = inlined_call_operand.vmem [shape: f32[2,1,32], index: 12, kind: input, shape index: {}]
  %s13 = inlined_call_operand.vmem [shape: f32[2,1,32], index: 13, kind: input, shape index: {}]
  %s14 = inlined_call_operand.hbm [shape: f32[32,32], index: 14, kind: input, shape index: {}]
  %s15 = inlined_call_operand.vmem [shape: f32[1,32], index: 15, kind: input, shape index: {}]
  %s16 = inlined_call_operand.hbm [shape: f32[2,32], index: 16, kind: output, shape index: {}]
  %s17 = sld [smem:[#allocation0]]
  $region86: #{tpu_custom_call.1} parent=0
    _
  %s19 = ssub.s32 1, %s17
  %s20 = scalar_select 0, %s19, %s17
  $region1: #{tpu_custom_call.1} parent=0
    #allocation2 [shape = 'u8[8192]{0}', space=vmem, size = 0x2000, scoped, tag = 'input window, operand 0, single buffered']
    #allocation3 [shape = 's32[1]{0}', space=sflag, size = 0x4, scoped, tag = 'scoped memory for tpu_custom_call.1']
    #allocation4 [shape = 's32[1]{0}', space=sflag, size = 0x4, scoped, tag = 'scoped memory for tpu_custom_call.1']
    #allocation5 [shape = 'u8[8192]{0}', space=vmem, size = 0x2000, scoped, tag = 'input window, operand 1, single buffered']
    #allocation6 [shape = 's32[1]{0}', space=sflag, size = 0x4, scoped, tag = 'scoped memory for tpu_custom_call.1']
    #allocation7 [shape = 'u8[16384]{0}', space=vmem, size = 0x4000, scoped, tag = 'input window, operand 14, single buffered']
    #allocation8 [shape = 'u8[1024]{0}', space=vmem, size = 0x400, scoped, tag = 'output window, operand 0, single buffered']
    %21 = vsyncpa [#allocation3], 0
    %22 = vsyncpa [#allocation6], 0
    %23 = vsyncpa [#allocation4], 0
    // Predicated region
    $region2: #{tpu_custom_call.1} parent=1 // pred_check
      _
    $region3: #{tpu_custom_call.1} parent=1 // pred_check_branch
      %25 = sbr.rel (0) target = $region5
    $region4: #{tpu_custom_call.1} parent=1 // pred_region
      %s27 = ssub.s32 256, 256
      %28 = vsyncadd [#allocation3], %s27
      %s29 = sshll.u32 [#allocation2], 4
      %s30 = int_to_ptr.vmem [resolvable:$true] %s29
      %35 = dma.hbm_to_vmem [thread:$0]  %s0, 256, %s30, [#allocation3], 128, 128, 8
    $region5: #{tpu_custom_call.1} parent=1 // pred_fallthru
      _
    // Predicated region
    $region6: #{tpu_custom_call.1} parent=1 // pred_check
      _
    $region7: #{tpu_custom_call.1} parent=1 // pred_check_branch
      %37 = sbr.rel (0) target = $region9
    $region8: #{tpu_custom_call.1} parent=1 // pred_region
      %s39 = ssub.s32 256, 256
      %40 = vsyncadd [#allocation6], %s39
      %s41 = sshll.u32 [#allocation5], 4
      %s42 = int_to_ptr.vmem [resolvable:$true] %s41
      %47 = dma.hbm_to_vmem [thread:$0]  %s1, 256, %s42, [#allocation6], 128, 128, 8
    $region9: #{tpu_custom_call.1} parent=1 // pred_fallthru
      _
    // Predicated region
    $region10: #{tpu_custom_call.1} parent=1 // pred_check
      _
    $region11: #{tpu_custom_call.1} parent=1 // pred_check_branch
      %49 = sbr.rel (0) target = $region13
    $region12: #{tpu_custom_call.1} parent=1 // pred_region
      _
    $region13: #{tpu_custom_call.1} parent=1 // pred_fallthru
      _
    // Predicated region
    $region14: #{tpu_custom_call.1} parent=1 // pred_check
      _
    $region15: #{tpu_custom_call.1} parent=1 // pred_check_branch
      %51 = sbr.rel (0) target = $region17
    $region16: #{tpu_custom_call.1} parent=1 // pred_region
      _
    $region17: #{tpu_custom_call.1} parent=1 // pred_fallthru
      _
    // Predicated region
    $region18: #{tpu_custom_call.1} parent=1 // pred_check
      _
    $region19: #{tpu_custom_call.1} parent=1 // pred_check_branch
      %53 = sbr.rel (0) target = $region21
    $region20: #{tpu_custom_call.1} parent=1 // pred_region
      _
    $region21: #{tpu_custom_call.1} parent=1 // pred_fallthru
      _
    // Predicated region
    $region22: #{tpu_custom_call.1} parent=1 // pred_check
      _
    $region23: #{tpu_custom_call.1} parent=1 // pred_check_branch
      %55 = sbr.rel (0) target = $region25
    $region24: #{tpu_custom_call.1} parent=1 // pred_region
      _
    $region25: #{tpu_custom_call.1} parent=1 // pred_fallthru
      _
    // Predicated region
    $region26: #{tpu_custom_call.1} parent=1 // pred_check
      _
    $region27: #{tpu_custom_call.1} parent=1 // pred_check_branch
      %57 = sbr.rel (0) target = $region29
    $region28: #{tpu_custom_call.1} parent=1 // pred_region
      _
    $region29: #{tpu_custom_call.1} parent=1 // pred_fallthru
      _
    // Predicated region
    $region30: #{tpu_custom_call.1} parent=1 // pred_check
      _
    $region31: #{tpu_custom_call.1} parent=1 // pred_check_branch
      %59 = sbr.rel (0) target = $region33
    $region32: #{tpu_custom_call.1} parent=1 // pred_region
      _
    $region33: #{tpu_custom_call.1} parent=1 // pred_fallthru
      _
    // Predicated region
    $region34: #{tpu_custom_call.1} parent=1 // pred_check
      _
    $region35: #{tpu_custom_call.1} parent=1 // pred_check_branch
      %61 = sbr.rel (0) target = $region37
    $region36: #{tpu_custom_call.1} parent=1 // pred_region
      _
    $region37: #{tpu_custom_call.1} parent=1 // pred_fallthru
      _
    // Predicated region
    $region38: #{tpu_custom_call.1} parent=1 // pred_check
      _
    $region39: #{tpu_custom_call.1} parent=1 // pred_check_branch
      %63 = sbr.rel (0) target = $region41
    $region40: #{tpu_custom_call.1} parent=1 // pred_region
      _
    $region41: #{tpu_custom_call.1} parent=1 // pred_fallthru
      _
    // Predicated region
    $region42: #{tpu_custom_call.1} parent=1 // pred_check
      _
    $region43: #{tpu_custom_call.1} parent=1 // pred_check_branch
      %65 = sbr.rel (0) target = $region45
    $region44: #{tpu_custom_call.1} parent=1 // pred_region
      _
    $region45: #{tpu_custom_call.1} parent=1 // pred_fallthru
      _
    // Predicated region
    $region46: #{tpu_custom_call.1} parent=1 // pred_check
      _
    $region47: #{tpu_custom_call.1} parent=1 // pred_check_branch
      %67 = sbr.rel (0) target = $region49
    $region48: #{tpu_custom_call.1} parent=1 // pred_region
      _
    $region49: #{tpu_custom_call.1} parent=1 // pred_fallthru
      _
    // Predicated region
    $region50: #{tpu_custom_call.1} parent=1 // pred_check
      _
    $region51: #{tpu_custom_call.1} parent=1 // pred_check_branch
      %69 = sbr.rel (0) target = $region53
    $region52: #{tpu_custom_call.1} parent=1 // pred_region
      _
    $region53: #{tpu_custom_call.1} parent=1 // pred_fallthru
      _
    // Predicated region
    $region54: #{tpu_custom_call.1} parent=1 // pred_check
      _
    $region55: #{tpu_custom_call.1} parent=1 // pred_check_branch
      %71 = sbr.rel (0) target = $region57
    $region56: #{tpu_custom_call.1} parent=1 // pred_region
      _
    $region57: #{tpu_custom_call.1} parent=1 // pred_fallthru
      _
    // Predicated region
    $region58: #{tpu_custom_call.1} parent=1 // pred_check
      _
    $region59: #{tpu_custom_call.1} parent=1 // pred_check_branch
      %73 = sbr.rel (0) target = $region61
    $region60: #{tpu_custom_call.1} parent=1 // pred_region
      %s75 = ssub.s32 512, 512
      %76 = vsyncadd [#allocation6], %s75
      %s77 = sshll.u32 [#allocation7], 4
      %s78 = int_to_ptr.vmem [resolvable:$true] %s77
      %83 = dma.hbm_to_vmem [thread:$0]  %s14, 512, %s78, [#allocation6], 128, 128, 8
    $region61: #{tpu_custom_call.1} parent=1 // pred_fallthru
      _
    // Predicated region
    $region62: #{tpu_custom_call.1} parent=1 // pred_check
      _
    $region63: #{tpu_custom_call.1} parent=1 // pred_check_branch
      %85 = sbr.rel (0) target = $region65
    $region64: #{tpu_custom_call.1} parent=1 // pred_region
      _
    $region65: #{tpu_custom_call.1} parent=1 // pred_fallthru
      _
    // Predicated region
    $region66: #{tpu_custom_call.1} parent=1 // pred_check
      _
    $region67: #{tpu_custom_call.1} parent=1 // pred_check_branch
      %87 = sbr.rel (0) target = $region69
    $region68: #{tpu_custom_call.1} parent=1 // pred_region
      %88 = dma.done [#allocation3], 256
    $region69: #{tpu_custom_call.1} parent=1 // pred_fallthru
      _
    // Predicated region
    $region70: #{tpu_custom_call.1} parent=1 // pred_check
      _
    $region71: #{tpu_custom_call.1} parent=1 // pred_check_branch
      %90 = sbr.rel (0) target = $region73
    $region72: #{tpu_custom_call.1} parent=1 // pred_region
      %91 = dma.done [#allocation6], 256
    $region73: #{tpu_custom_call.1} parent=1 // pred_fallthru
      _
    // Predicated region
    $region74: #{tpu_custom_call.1} parent=1 // pred_check
      _
    $region75: #{tpu_custom_call.1} parent=1 // pred_check_branch
      %93 = sbr.rel (0) target = $region77
    $region76: #{tpu_custom_call.1} parent=1 // pred_region
      %94 = dma.done [#allocation6], 512
    $region77: #{tpu_custom_call.1} parent=1 // pred_fallthru
      _
    %v95 = vld [vmem:[#allocation2] sm:$0xff]
    %v96 = vld [vmem:[#allocation2 + $0x8] sm:$0xff]
    %v97 = vld [vmem:[#allocation5] sm:$0xff]
    %v98 = vld [vmem:[#allocation5 + $0x8] sm:$0xff]
    %v99 = vadd.f32 %v95, %v97
    %v100 = vadd.f32 %v96, %v98
    %v101 = vld [vmem:[%s2] sm:$0xff]
    %v102 = vld [vmem:[%s2 + $0x8] sm:$0xff]
    %v103 = vld [vmem:[%s2 + $0x10] sm:$0xff]
    %v104 = vld [vmem:[%s2 + $0x18] sm:$0xff]
    %v105 = vld [vmem:[%s3] sm:$0x1]
    %v107 = vlaneseq
    %v108 = vshrl.u32 %v107, 7
    %v109 = vsub.s32 0, %v108
    %v110 = vrot.slane %v105, %v109
    %vm112 = vcmask 261120
    %v114 = vsel %vm112, %v99, 0
    %v117 = vsel %vm112, %v100, 0
    %119 = vmatprep.subr.mxu0 0.0
    %120 = vmatpush1.msra.mxu0 0.0
    %121 = vmatprep.subr.mxu0 0.0
    %122 = vmatpush1.msra.mxu0 0.0
    %123 = vmatprep.subr.mxu0 0.0
    %124 = vmatpush1.msra.mxu0 0.0
    %125 = vmatprep.subr.mxu0 0.0
    %126 = vmatpush1.msra.mxu0 0.0
    %127 = vmatprep.subr.mxu0 0.0
    %128 = vmatpush1.msra.mxu0 0.0
    %129 = vmatprep.subr.mxu0 0.0
    %130 = vmatpush1.msra.mxu0 0.0
    %131 = vmatprep.subr.mxu0 0.0
    %132 = vmatpush1.msra.mxu0 0.0
    %133 = vmatprep.subr.mxu0 0.0
    %134 = vmatpush1.msra.mxu0 0.0
    %135 = vmatprep.subr.mxu0 0.0
    %136 = vmatpush1.msra.mxu0 0.0
    %137 = vmatprep.subr.mxu0 0.0
    %138 = vmatpush1.msra.mxu0 0.0
    %139 = vmatprep.subr.mxu0 0.0
    %140 = vmatpush1.msra.mxu0 0.0
    %141 = vmatprep.subr.mxu0 0.0
    %142 = vmatpush1.msra.mxu0 0.0
    %143 = vmatprep.subr.mxu0 0.0
    %144 = vmatpush1.msra.mxu0 %v104
    %145 = vmatprep.subr.mxu0 0.0
    %146 = vmatpush1.msra.mxu0 %v103
    %147 = vmatprep.subr.mxu0 0.0
    %148 = vmatpush1.msra.mxu0 %v102
    %149 = vmatprep.subr.mxu0 0.0
    %150 = vmatpush1.msra.mxu0 %v101
    %151 = vmatprep.subr.mxu0 0.0
    %152 = vmatpush2.msra.mxu0 0.0
    %153 = vmatprep.subr.mxu0 0.0
    %154 = vmatpush2.msra.mxu0 0.0
    %155 = vmatprep.subr.mxu0 0.0
    %156 = vmatpush2.msra.mxu0 0.0
    %157 = vmatprep.subr.mxu0 0.0
    %158 = vmatpush2.msra.mxu0 0.0
    %159 = vmatprep.subr.mxu0 0.0
    %160 = vmatpush2.msra.mxu0 0.0
    %161 = vmatprep.subr.mxu0 0.0
    %162 = vmatpush2.msra.mxu0 0.0
    %163 = vmatprep.subr.mxu0 0.0
    %164 = vmatpush2.msra.mxu0 0.0
    %165 = vmatprep.subr.mxu0 0.0
    %166 = vmatpush2.msra.mxu0 0.0
    %167 = vmatprep.subr.mxu0 0.0
    %168 = vmatpush2.msra.mxu0 0.0
    %169 = vmatprep.subr.mxu0 0.0
    %170 = vmatpush2.msra.mxu0 0.0
    %171 = vmatprep.subr.mxu0 0.0
    %172 = vmatpush2.msra.mxu0 0.0
    %173 = vmatprep.subr.mxu0 0.0
    %174 = vmatpush2.msra.mxu0 0.0
    %175 = vmatprep.subr.mxu0 0.0
    %176 = vmatpush2.msra.mxu0 0.0
    %177 = vmatprep.subr.mxu0 0.0
    %178 = vmatpush2.msra.mxu0 0.0
    %179 = vmatprep.subr.mxu0 0.0
    %180 = vmatpush2.msra.mxu0 0.0
    %181 = vmatprep.subr.mxu0 0.0
    %182 = vmatpush2.msra.mxu0 0.0
    %183 = vmatprep.mubr.f32.mxu0 0.0
    %184 = vmatmul.mubr.f32.gmra.mxu0 %v114
    %v185 = vpop.f32.mrf.mxu0
    %v186 = vadd.f32 %v110, %v185
    %v187 = vpop.f32.mrf.mxu0
    %188 = vmatprep.mubr.f32.mxu0 0.0
    %189 = vmatmul.mubr.f32.gmra.mxu0 %v117
    %v190 = vpop.f32.mrf.mxu0
    %v191 = vadd.f32 %v110, %v190
    %v192 = vpop.f32.mrf.mxu0
    %193 = vdwg.mxu0
    %195 = vrot.lane.b32.xlu0 %v186, 96
    %v196 = vpop.permute.xlu0 %195
    %vm197 = vcmask 64512
    %v198 = vsel %vm197, %v186, 0
    %v200 = vsel %vm197, %v196, 0
    %202 = vmatprep.subr.mxu0 0.0
    %203 = vmatpush1.xpose.msra.mxu0 0.0
    %204 = vmatprep.subr.mxu0 0.0
    %205 = vmatpush1.xpose.msra.mxu0 0.0
    %206 = vmatprep.subr.mxu0 0.0
    %207 = vmatpush1.xpose.msra.mxu0 0.0
    %208 = vmatprep.subr.mxu0 0.0
    %209 = vmatpush1.xpose.msra.mxu0 0.0
    %210 = vmatprep.subr.mxu0 0.0
    %211 = vmatpush1.xpose.msra.mxu0 0.0
    %212 = vmatprep.subr.mxu0 0.0
    %213 = vmatpush1.xpose.msra.mxu0 0.0
    %214 = vmatprep.subr.mxu0 0.0
    %215 = vmatpush1.xpose.msra.mxu0 0.0
    %216 = vmatprep.subr.mxu0 0.0
    %217 = vmatpush1.xpose.msra.mxu0 0.0
    %218 = vmatprep.subr.mxu0 0.0
    %219 = vmatpush1.xpose.msra.mxu0 0.0
    %220 = vmatprep.subr.mxu0 0.0
    %221 = vmatpush1.xpose.msra.mxu0 0.0
    %222 = vmatprep.subr.mxu0 0.0
    %223 = vmatpush1.xpose.msra.mxu0 0.0
    %224 = vmatprep.subr.mxu0 0.0
    %225 = vmatpush1.xpose.msra.mxu0 0.0
    %226 = vmatprep.subr.mxu0 0.0
    %227 = vmatpush1.xpose.msra.mxu0 0.0
    %228 = vmatprep.subr.mxu0 0.0
    %229 = vmatpush1.xpose.msra.mxu0 0.0
    %230 = vmatprep.subr.mxu0 0.0
    %231 = vmatpush1.xpose.msra.mxu0 0.0
    %232 = vmatprep.subr.mxu0 0.0
    %233 = vmatpush1.xpose.msra.mxu0 %v200
    %234 = vmatprep.subr.mxu0 0.0
    %235 = vmatpush2.xpose.msra.mxu0 0.0
    %236 = vmatprep.subr.mxu0 0.0
    %237 = vmatpush2.xpose.msra.mxu0 0.0
    %238 = vmatprep.subr.mxu0 0.0
    %239 = vmatpush2.xpose.msra.mxu0 0.0
    %240 = vmatprep.subr.mxu0 0.0
    %241 = vmatpush2.xpose.msra.mxu0 0.0
    %242 = vmatprep.subr.mxu0 0.0
    %243 = vmatpush2.xpose.msra.mxu0 0.0
    %244 = vmatprep.subr.mxu0 0.0
    %245 = vmatpush2.xpose.msra.mxu0 0.0
    %246 = vmatprep.subr.mxu0 0.0
    %247 = vmatpush2.xpose.msra.mxu0 0.0
    %248 = vmatprep.subr.mxu0 0.0
    %249 = vmatpush2.xpose.msra.mxu0 0.0
    %250 = vmatprep.subr.mxu0 0.0
    %251 = vmatpush2.xpose.msra.mxu0 0.0
    %252 = vmatprep.subr.mxu0 0.0
    %253 = vmatpush2.xpose.msra.mxu0 0.0
    %254 = vmatprep.subr.mxu0 0.0
    %255 = vmatpush2.xpose.msra.mxu0 0.0
    %256 = vmatprep.subr.mxu0 0.0
    %257 = vmatpush2.xpose.msra.mxu0 0.0
    %258 = vmatprep.subr.mxu0 0.0
    %259 = vmatpush2.xpose.msra.mxu0 0.0
    %260 = vmatprep.subr.mxu0 0.0
    %261 = vmatpush2.xpose.msra.mxu0 0.0
    %262 = vmatprep.subr.mxu0 0.0
    %263 = vmatpush2.xpose.msra.mxu0 0.0
    %264 = vmatprep.subr.mxu0 0.0
    %265 = vmatpush2.xpose.msra.mxu0 0.0
    %266 = vmatprep.mubr.f32.mxu0 0.0
    %267 = vmatmul.mubr.f32.gmra.mxu0 %v198
    %v268 = vpop.f32.mrf.mxu0
    %v269 = vadd.f32 0.0, %v268
    %v270 = vpop.f32.mrf.mxu0
    %271 = vdwg.mxu0
    %v272 = vmul.f32 %v269, 0.35355338
    %v273 = vsel %vm197, %v272, -inf
    %274 = vmax.xlane.f32.xlu0 %v273
    %v275 = vpop.xlane.xlu0 %274
    %v276 = vsub.f32 %v272, %v275
    %v277 = vmul.f32 %v276, 1.442695
    %v278 = vpow.pop %v277
    %v279 = vsel %vm197, %v278, 0.0
    %280 = vadd.xlane.f32.xlu0 %v279
    %v281 = vpop.xlane.xlu0 %280
    %v282 = vrcp.pop %v281
    %v283 = vmul.f32 %v278, %v282
    %284 = vrot.lane.b32.xlu0 %v186, 64
    %v285 = vpop.permute.xlu0 %284
    %v288 = vsel %vm197, %v283, 0
    %290 = vmatprep.subr.mxu0 0.0
    %291 = vmatpush1.msra.mxu0 0.0
    %292 = vmatprep.subr.mxu0 0.0
    %293 = vmatpush1.msra.mxu0 0.0
    %294 = vmatprep.subr.mxu0 0.0
    %295 = vmatpush1.msra.mxu0 0.0
    %296 = vmatprep.subr.mxu0 0.0
    %297 = vmatpush1.msra.mxu0 0.0
    %298 = vmatprep.subr.mxu0 0.0
    %299 = vmatpush1.msra.mxu0 0.0
    %300 = vmatprep.subr.mxu0 0.0
    %301 = vmatpush1.msra.mxu0 0.0
    %302 = vmatprep.subr.mxu0 0.0
    %303 = vmatpush1.msra.mxu0 0.0
    %304 = vmatprep.subr.mxu0 0.0
    %305 = vmatpush1.msra.mxu0 0.0
    %306 = vmatprep.subr.mxu0 0.0
    %307 = vmatpush1.msra.mxu0 0.0
    %308 = vmatprep.subr.mxu0 0.0
    %309 = vmatpush1.msra.mxu0 0.0
    %310 = vmatprep.subr.mxu0 0.0
    %311 = vmatpush1.msra.mxu0 0.0
    %312 = vmatprep.subr.mxu0 0.0
    %313 = vmatpush1.msra.mxu0 0.0
    %314 = vmatprep.subr.mxu0 0.0
    %315 = vmatpush1.msra.mxu0 0.0
    %316 = vmatprep.subr.mxu0 0.0
    %317 = vmatpush1.msra.mxu0 0.0
    %318 = vmatprep.subr.mxu0 0.0
    %319 = vmatpush1.msra.mxu0 0.0
    %320 = vmatprep.subr.mxu0 0.0
    %321 = vmatpush1.msra.mxu0 %v285
    %322 = vmatprep.subr.mxu0 0.0
    %323 = vmatpush2.msra.mxu0 0.0
    %324 = vmatprep.subr.mxu0 0.0
    %325 = vmatpush2.msra.mxu0 0.0
    %326 = vmatprep.subr.mxu0 0.0
    %327 = vmatpush2.msra.mxu0 0.0
    %328 = vmatprep.subr.mxu0 0.0
    %329 = vmatpush2.msra.mxu0 0.0
    %330 = vmatprep.subr.mxu0 0.0
    %331 = vmatpush2.msra.mxu0 0.0
    %332 = vmatprep.subr.mxu0 0.0
    %333 = vmatpush2.msra.mxu0 0.0
    %334 = vmatprep.subr.mxu0 0.0
    %335 = vmatpush2.msra.mxu0 0.0
    %336 = vmatprep.subr.mxu0 0.0
    %337 = vmatpush2.msra.mxu0 0.0
    %338 = vmatprep.subr.mxu0 0.0
    %339 = vmatpush2.msra.mxu0 0.0
    %340 = vmatprep.subr.mxu0 0.0
    %341 = vmatpush2.msra.mxu0 0.0
    %342 = vmatprep.subr.mxu0 0.0
    %343 = vmatpush2.msra.mxu0 0.0
    %344 = vmatprep.subr.mxu0 0.0
    %345 = vmatpush2.msra.mxu0 0.0
    %346 = vmatprep.subr.mxu0 0.0
    %347 = vmatpush2.msra.mxu0 0.0
    %348 = vmatprep.subr.mxu0 0.0
    %349 = vmatpush2.msra.mxu0 0.0
    %350 = vmatprep.subr.mxu0 0.0
    %351 = vmatpush2.msra.mxu0 0.0
    %352 = vmatprep.subr.mxu0 0.0
    %353 = vmatpush2.msra.mxu0 0.0
    %354 = vmatprep.mubr.f32.mxu0 0.0
    %355 = vmatmul.mubr.f32.gmra.mxu0 %v288
    %v356 = vpop.f32.mrf.mxu0
    %v357 = vadd.f32 0.0, %v356
    %v358 = vpop.f32.mrf.mxu0
    %359 = vdwg.mxu0
    %360 = vrot.lane.b32.xlu0 %v186, 120
    %v361 = vpop.permute.xlu0 %360
    %362 = vrot.lane.b32.xlu0 %v186, 88
    %v363 = vpop.permute.xlu0 %362
    %v364 = vsel %vm197, %v361, 0
    %v366 = vsel %vm197, %v363, 0
    %368 = vmatprep.subr.mxu0 0.0
    %369 = vmatpush1.xpose.msra.mxu0 0.0
    %370 = vmatprep.subr.mxu0 0.0
    %371 = vmatpush1.xpose.msra.mxu0 0.0
    %372 = vmatprep.subr.mxu0 0.0
    %373 = vmatpush1.xpose.msra.mxu0 0.0
    %374 = vmatprep.subr.mxu0 0.0
    %375 = vmatpush1.xpose.msra.mxu0 0.0
    %376 = vmatprep.subr.mxu0 0.0
    %377 = vmatpush1.xpose.msra.mxu0 0.0
    %378 = vmatprep.subr.mxu0 0.0
    %379 = vmatpush1.xpose.msra.mxu0 0.0
    %380 = vmatprep.subr.mxu0 0.0
    %381 = vmatpush1.xpose.msra.mxu0 0.0
    %382 = vmatprep.subr.mxu0 0.0
    %383 = vmatpush1.xpose.msra.mxu0 0.0
    %384 = vmatprep.subr.mxu0 0.0
    %385 = vmatpush1.xpose.msra.mxu0 0.0
    %386 = vmatprep.subr.mxu0 0.0
    %387 = vmatpush1.xpose.msra.mxu0 0.0
    %388 = vmatprep.subr.mxu0 0.0
    %389 = vmatpush1.xpose.msra.mxu0 0.0
    %390 = vmatprep.subr.mxu0 0.0
    %391 = vmatpush1.xpose.msra.mxu0 0.0
    %392 = vmatprep.subr.mxu0 0.0
    %393 = vmatpush1.xpose.msra.mxu0 0.0
    %394 = vmatprep.subr.mxu0 0.0
    %395 = vmatpush1.xpose.msra.mxu0 0.0
    %396 = vmatprep.subr.mxu0 0.0
    %397 = vmatpush1.xpose.msra.mxu0 0.0
    %398 = vmatprep.subr.mxu0 0.0
    %399 = vmatpush1.xpose.msra.mxu0 %v366
    %400 = vmatprep.subr.mxu0 0.0
    %401 = vmatpush2.xpose.msra.mxu0 0.0
    %402 = vmatprep.subr.mxu0 0.0
    %403 = vmatpush2.xpose.msra.mxu0 0.0
    %404 = vmatprep.subr.mxu0 0.0
    %405 = vmatpush2.xpose.msra.mxu0 0.0
    %406 = vmatprep.subr.mxu0 0.0
    %407 = vmatpush2.xpose.msra.mxu0 0.0
    %408 = vmatprep.subr.mxu0 0.0
    %409 = vmatpush2.xpose.msra.mxu0 0.0
    %410 = vmatprep.subr.mxu0 0.0
    %411 = vmatpush2.xpose.msra.mxu0 0.0
    %412 = vmatprep.subr.mxu0 0.0
    %413 = vmatpush2.xpose.msra.mxu0 0.0
    %414 = vmatprep.subr.mxu0 0.0
    %415 = vmatpush2.xpose.msra.mxu0 0.0
    %416 = vmatprep.subr.mxu0 0.0
    %417 = vmatpush2.xpose.msra.mxu0 0.0
    %418 = vmatprep.subr.mxu0 0.0
    %419 = vmatpush2.xpose.msra.mxu0 0.0
    %420 = vmatprep.subr.mxu0 0.0
    %421 = vmatpush2.xpose.msra.mxu0 0.0
    %422 = vmatprep.subr.mxu0 0.0
    %423 = vmatpush2.xpose.msra.mxu0 0.0
    %424 = vmatprep.subr.mxu0 0.0
    %425 = vmatpush2.xpose.msra.mxu0 0.0
    %426 = vmatprep.subr.mxu0 0.0
    %427 = vmatpush2.xpose.msra.mxu0 0.0
    %428 = vmatprep.subr.mxu0 0.0
    %429 = vmatpush2.xpose.msra.mxu0 0.0
    %430 = vmatprep.subr.mxu0 0.0
    %431 = vmatpush2.xpose.msra.mxu0 0.0
    %432 = vmatprep.mubr.f32.mxu0 0.0
    %433 = vmatmul.mubr.f32.gmra.mxu0 %v364
    %v434 = vpop.f32.mrf.mxu0
    %v435 = vadd.f32 0.0, %v434
    %v436 = vpop.f32.mrf.mxu0
    %437 = vdwg.mxu0
    %v438 = vmul.f32 %v435, 0.35355338
    %v439 = vsel %vm197, %v438, -inf
    %440 = vmax.xlane.f32.xlu0 %v439
    %v441 = vpop.xlane.xlu0 %440
    %v442 = vsub.f32 %v438, %v441
    %v443 = vmul.f32 %v442, 1.442695
    %v444 = vpow.pop %v443
    %v445 = vsel %vm197, %v444, 0.0
    %446 = vadd.xlane.f32.xlu0 %v445
    %v447 = vpop.xlane.xlu0 %446
    %v448 = vrcp.pop %v447
    %v449 = vmul.f32 %v444, %v448
    %450 = vrot.lane.b32.xlu0 %v186, 56
    %v451 = vpop.permute.xlu0 %450
    %v454 = vsel %vm197, %v449, 0
    %456 = vmatprep.subr.mxu0 0.0
    %457 = vmatpush1.msra.mxu0 0.0
    %458 = vmatprep.subr.mxu0 0.0
    %459 = vmatpush1.msra.mxu0 0.0
    %460 = vmatprep.subr.mxu0 0.0
    %461 = vmatpush1.msra.mxu0 0.0
    %462 = vmatprep.subr.mxu0 0.0
    %463 = vmatpush1.msra.mxu0 0.0
    %464 = vmatprep.subr.mxu0 0.0
    %465 = vmatpush1.msra.mxu0 0.0
    %466 = vmatprep.subr.mxu0 0.0
    %467 = vmatpush1.msra.mxu0 0.0
    %468 = vmatprep.subr.mxu0 0.0
    %469 = vmatpush1.msra.mxu0 0.0
    %470 = vmatprep.subr.mxu0 0.0
    %471 = vmatpush1.msra.mxu0 0.0
    %472 = vmatprep.subr.mxu0 0.0
    %473 = vmatpush1.msra.mxu0 0.0
    %474 = vmatprep.subr.mxu0 0.0
    %475 = vmatpush1.msra.mxu0 0.0
    %476 = vmatprep.subr.mxu0 0.0
    %477 = vmatpush1.msra.mxu0 0.0
    %478 = vmatprep.subr.mxu0 0.0
    %479 = vmatpush1.msra.mxu0 0.0
    %480 = vmatprep.subr.mxu0 0.0
    %481 = vmatpush1.msra.mxu0 0.0
    %482 = vmatprep.subr.mxu0 0.0
    %483 = vmatpush1.msra.mxu0 0.0
    %484 = vmatprep.subr.mxu0 0.0
    %485 = vmatpush1.msra.mxu0 0.0
    %486 = vmatprep.subr.mxu0 0.0
    %487 = vmatpush1.msra.mxu0 %v451
    %488 = vmatprep.subr.mxu0 0.0
    %489 = vmatpush2.msra.mxu0 0.0
    %490 = vmatprep.subr.mxu0 0.0
    %491 = vmatpush2.msra.mxu0 0.0
    %492 = vmatprep.subr.mxu0 0.0
    %493 = vmatpush2.msra.mxu0 0.0
    %494 = vmatprep.subr.mxu0 0.0
    %495 = vmatpush2.msra.mxu0 0.0
    %496 = vmatprep.subr.mxu0 0.0
    %497 = vmatpush2.msra.mxu0 0.0
    %498 = vmatprep.subr.mxu0 0.0
    %499 = vmatpush2.msra.mxu0 0.0
    %500 = vmatprep.subr.mxu0 0.0
    %501 = vmatpush2.msra.mxu0 0.0
    %502 = vmatprep.subr.mxu0 0.0
    %503 = vmatpush2.msra.mxu0 0.0
    %504 = vmatprep.subr.mxu0 0.0
    %505 = vmatpush2.msra.mxu0 0.0
    %506 = vmatprep.subr.mxu0 0.0
    %507 = vmatpush2.msra.mxu0 0.0
    %508 = vmatprep.subr.mxu0 0.0
    %509 = vmatpush2.msra.mxu0 0.0
    %510 = vmatprep.subr.mxu0 0.0
    %511 = vmatpush2.msra.mxu0 0.0
    %512 = vmatprep.subr.mxu0 0.0
    %513 = vmatpush2.msra.mxu0 0.0
    %514 = vmatprep.subr.mxu0 0.0
    %515 = vmatpush2.msra.mxu0 0.0
    %516 = vmatprep.subr.mxu0 0.0
    %517 = vmatpush2.msra.mxu0 0.0
    %518 = vmatprep.subr.mxu0 0.0
    %519 = vmatpush2.msra.mxu0 0.0
    %520 = vmatprep.mubr.f32.mxu0 0.0
    %521 = vmatmul.mubr.f32.gmra.mxu0 %v454
    %v522 = vpop.f32.mrf.mxu0
    %v523 = vadd.f32 0.0, %v522
    %v524 = vpop.f32.mrf.mxu0
    %525 = vdwg.mxu0
    %526 = vrot.lane.b32.xlu0 %v186, 112
    %v527 = vpop.permute.xlu0 %526
    %528 = vrot.lane.b32.xlu0 %v186, 80
    %v529 = vpop.permute.xlu0 %528
    %v530 = vsel %vm197, %v527, 0
    %v532 = vsel %vm197, %v529, 0
    %534 = vmatprep.subr.mxu0 0.0
    %535 = vmatpush1.xpose.msra.mxu0 0.0
    %536 = vmatprep.subr.mxu0 0.0
    %537 = vmatpush1.xpose.msra.mxu0 0.0
    %538 = vmatprep.subr.mxu0 0.0
    %539 = vmatpush1.xpose.msra.mxu0 0.0
    %540 = vmatprep.subr.mxu0 0.0
    %541 = vmatpush1.xpose.msra.mxu0 0.0
    %542 = vmatprep.subr.mxu0 0.0
    %543 = vmatpush1.xpose.msra.mxu0 0.0
    %544 = vmatprep.subr.mxu0 0.0
    %545 = vmatpush1.xpose.msra.mxu0 0.0
    %546 = vmatprep.subr.mxu0 0.0
    %547 = vmatpush1.xpose.msra.mxu0 0.0
    %548 = vmatprep.subr.mxu0 0.0
    %549 = vmatpush1.xpose.msra.mxu0 0.0
    %550 = vmatprep.subr.mxu0 0.0
    %551 = vmatpush1.xpose.msra.mxu0 0.0
    %552 = vmatprep.subr.mxu0 0.0
    %553 = vmatpush1.xpose.msra.mxu0 0.0
    %554 = vmatprep.subr.mxu0 0.0
    %555 = vmatpush1.xpose.msra.mxu0 0.0
    %556 = vmatprep.subr.mxu0 0.0
    %557 = vmatpush1.xpose.msra.mxu0 0.0
    %558 = vmatprep.subr.mxu0 0.0
    %559 = vmatpush1.xpose.msra.mxu0 0.0
    %560 = vmatprep.subr.mxu0 0.0
    %561 = vmatpush1.xpose.msra.mxu0 0.0
    %562 = vmatprep.subr.mxu0 0.0
    %563 = vmatpush1.xpose.msra.mxu0 0.0
    %564 = vmatprep.subr.mxu0 0.0
    %565 = vmatpush1.xpose.msra.mxu0 %v532
    %566 = vmatprep.subr.mxu0 0.0
    %567 = vmatpush2.xpose.msra.mxu0 0.0
    %568 = vmatprep.subr.mxu0 0.0
    %569 = vmatpush2.xpose.msra.mxu0 0.0
    %570 = vmatprep.subr.mxu0 0.0
    %571 = vmatpush2.xpose.msra.mxu0 0.0
    %572 = vmatprep.subr.mxu0 0.0
    %573 = vmatpush2.xpose.msra.mxu0 0.0
    %574 = vmatprep.subr.mxu0 0.0
    %575 = vmatpush2.xpose.msra.mxu0 0.0
    %576 = vmatprep.subr.mxu0 0.0
    %577 = vmatpush2.xpose.msra.mxu0 0.0
    %578 = vmatprep.subr.mxu0 0.0
    %579 = vmatpush2.xpose.msra.mxu0 0.0
    %580 = vmatprep.subr.mxu0 0.0
    %581 = vmatpush2.xpose.msra.mxu0 0.0
    %582 = vmatprep.subr.mxu0 0.0
    %583 = vmatpush2.xpose.msra.mxu0 0.0
    %584 = vmatprep.subr.mxu0 0.0
    %585 = vmatpush2.xpose.msra.mxu0 0.0
    %586 = vmatprep.subr.mxu0 0.0
    %587 = vmatpush2.xpose.msra.mxu0 0.0
    %588 = vmatprep.subr.mxu0 0.0
    %589 = vmatpush2.xpose.msra.mxu0 0.0
    %590 = vmatprep.subr.mxu0 0.0
    %591 = vmatpush2.xpose.msra.mxu0 0.0
    %592 = vmatprep.subr.mxu0 0.0
    %593 = vmatpush2.xpose.msra.mxu0 0.0
    %594 = vmatprep.subr.mxu0 0.0
    %595 = vmatpush2.xpose.msra.mxu0 0.0
    %596 = vmatprep.subr.mxu0 0.0
    %597 = vmatpush2.xpose.msra.mxu0 0.0
    %598 = vmatprep.mubr.f32.mxu0 0.0
    %599 = vmatmul.mubr.f32.gmra.mxu0 %v530
    %v600 = vpop.f32.mrf.mxu0
    %v601 = vadd.f32 0.0, %v600
    %v602 = vpop.f32.mrf.mxu0
    %603 = vdwg.mxu0
    %v604 = vmul.f32 %v601, 0.35355338
    %v605 = vsel %vm197, %v604, -inf
    %606 = vmax.xlane.f32.xlu0 %v605
    %v607 = vpop.xlane.xlu0 %606
    %v608 = vsub.f32 %v604, %v607
    %v609 = vmul.f32 %v608, 1.442695
    %v610 = vpow.pop %v609
    %v611 = vsel %vm197, %v610, 0.0
    %612 = vadd.xlane.f32.xlu0 %v611
    %v613 = vpop.xlane.xlu0 %612
    %v614 = vrcp.pop %v613
    %v615 = vmul.f32 %v610, %v614
    %616 = vrot.lane.b32.xlu0 %v186, 48
    %v617 = vpop.permute.xlu0 %616
    %v620 = vsel %vm197, %v615, 0
    %622 = vmatprep.subr.mxu0 0.0
    %623 = vmatpush1.msra.mxu0 0.0
    %624 = vmatprep.subr.mxu0 0.0
    %625 = vmatpush1.msra.mxu0 0.0
    %626 = vmatprep.subr.mxu0 0.0
    %627 = vmatpush1.msra.mxu0 0.0
    %628 = vmatprep.subr.mxu0 0.0
    %629 = vmatpush1.msra.mxu0 0.0
    %630 = vmatprep.subr.mxu0 0.0
    %631 = vmatpush1.msra.mxu0 0.0
    %632 = vmatprep.subr.mxu0 0.0
    %633 = vmatpush1.msra.mxu0 0.0
    %634 = vmatprep.subr.mxu0 0.0
    %635 = vmatpush1.msra.mxu0 0.0
    %636 = vmatprep.subr.mxu0 0.0
    %637 = vmatpush1.msra.mxu0 0.0
    %638 = vmatprep.subr.mxu0 0.0
    %639 = vmatpush1.msra.mxu0 0.0
    %640 = vmatprep.subr.mxu0 0.0
    %641 = vmatpush1.msra.mxu0 0.0
    %642 = vmatprep.subr.mxu0 0.0
    %643 = vmatpush1.msra.mxu0 0.0
    %644 = vmatprep.subr.mxu0 0.0
    %645 = vmatpush1.msra.mxu0 0.0
    %646 = vmatprep.subr.mxu0 0.0
    %647 = vmatpush1.msra.mxu0 0.0
    %648 = vmatprep.subr.mxu0 0.0
    %649 = vmatpush1.msra.mxu0 0.0
    %650 = vmatprep.subr.mxu0 0.0
    %651 = vmatpush1.msra.mxu0 0.0
    %652 = vmatprep.subr.mxu0 0.0
    %653 = vmatpush1.msra.mxu0 %v617
    %654 = vmatprep.subr.mxu0 0.0
    %655 = vmatpush2.msra.mxu0 0.0
    %656 = vmatprep.subr.mxu0 0.0
    %657 = vmatpush2.msra.mxu0 0.0
    %658 = vmatprep.subr.mxu0 0.0
    %659 = vmatpush2.msra.mxu0 0.0
    %660 = vmatprep.subr.mxu0 0.0
    %661 = vmatpush2.msra.mxu0 0.0
    %662 = vmatprep.subr.mxu0 0.0
    %663 = vmatpush2.msra.mxu0 0.0
    %664 = vmatprep.subr.mxu0 0.0
    %665 = vmatpush2.msra.mxu0 0.0
    %666 = vmatprep.subr.mxu0 0.0
    %667 = vmatpush2.msra.mxu0 0.0
    %668 = vmatprep.subr.mxu0 0.0
    %669 = vmatpush2.msra.mxu0 0.0
    %670 = vmatprep.subr.mxu0 0.0
    %671 = vmatpush2.msra.mxu0 0.0
    %672 = vmatprep.subr.mxu0 0.0
    %673 = vmatpush2.msra.mxu0 0.0
    %674 = vmatprep.subr.mxu0 0.0
    %675 = vmatpush2.msra.mxu0 0.0
    %676 = vmatprep.subr.mxu0 0.0
    %677 = vmatpush2.msra.mxu0 0.0
    %678 = vmatprep.subr.mxu0 0.0
    %679 = vmatpush2.msra.mxu0 0.0
    %680 = vmatprep.subr.mxu0 0.0
    %681 = vmatpush2.msra.mxu0 0.0
    %682 = vmatprep.subr.mxu0 0.0
    %683 = vmatpush2.msra.mxu0 0.0
    %684 = vmatprep.subr.mxu0 0.0
    %685 = vmatpush2.msra.mxu0 0.0
    %686 = vmatprep.mubr.f32.mxu0 0.0
    %687 = vmatmul.mubr.f32.gmra.mxu0 %v620
    %v688 = vpop.f32.mrf.mxu0
    %v689 = vadd.f32 0.0, %v688
    %v690 = vpop.f32.mrf.mxu0
    %691 = vdwg.mxu0
    %692 = vrot.lane.b32.xlu0 %v186, 104
    %v693 = vpop.permute.xlu0 %692
    %694 = vrot.lane.b32.xlu0 %v186, 72
    %v695 = vpop.permute.xlu0 %694
    %v696 = vsel %vm197, %v693, 0
    %v698 = vsel %vm197, %v695, 0
    %700 = vmatprep.subr.mxu0 0.0
    %701 = vmatpush1.xpose.msra.mxu0 0.0
    %702 = vmatprep.subr.mxu0 0.0
    %703 = vmatpush1.xpose.msra.mxu0 0.0
    %704 = vmatprep.subr.mxu0 0.0
    %705 = vmatpush1.xpose.msra.mxu0 0.0
    %706 = vmatprep.subr.mxu0 0.0
    %707 = vmatpush1.xpose.msra.mxu0 0.0
    %708 = vmatprep.subr.mxu0 0.0
    %709 = vmatpush1.xpose.msra.mxu0 0.0
    %710 = vmatprep.subr.mxu0 0.0
    %711 = vmatpush1.xpose.msra.mxu0 0.0
    %712 = vmatprep.subr.mxu0 0.0
    %713 = vmatpush1.xpose.msra.mxu0 0.0
    %714 = vmatprep.subr.mxu0 0.0
    %715 = vmatpush1.xpose.msra.mxu0 0.0
    %716 = vmatprep.subr.mxu0 0.0
    %717 = vmatpush1.xpose.msra.mxu0 0.0
    %718 = vmatprep.subr.mxu0 0.0
    %719 = vmatpush1.xpose.msra.mxu0 0.0
    %720 = vmatprep.subr.mxu0 0.0
    %721 = vmatpush1.xpose.msra.mxu0 0.0
    %722 = vmatprep.subr.mxu0 0.0
    %723 = vmatpush1.xpose.msra.mxu0 0.0
    %724 = vmatprep.subr.mxu0 0.0
    %725 = vmatpush1.xpose.msra.mxu0 0.0
    %726 = vmatprep.subr.mxu0 0.0
    %727 = vmatpush1.xpose.msra.mxu0 0.0
    %728 = vmatprep.subr.mxu0 0.0
    %729 = vmatpush1.xpose.msra.mxu0 0.0
    %730 = vmatprep.subr.mxu0 0.0
    %731 = vmatpush1.xpose.msra.mxu0 %v698
    %732 = vmatprep.subr.mxu0 0.0
    %733 = vmatpush2.xpose.msra.mxu0 0.0
    %734 = vmatprep.subr.mxu0 0.0
    %735 = vmatpush2.xpose.msra.mxu0 0.0
    %736 = vmatprep.subr.mxu0 0.0
    %737 = vmatpush2.xpose.msra.mxu0 0.0
    %738 = vmatprep.subr.mxu0 0.0
    %739 = vmatpush2.xpose.msra.mxu0 0.0
    %740 = vmatprep.subr.mxu0 0.0
    %741 = vmatpush2.xpose.msra.mxu0 0.0
    %742 = vmatprep.subr.mxu0 0.0
    %743 = vmatpush2.xpose.msra.mxu0 0.0
    %744 = vmatprep.subr.mxu0 0.0
    %745 = vmatpush2.xpose.msra.mxu0 0.0
    %746 = vmatprep.subr.mxu0 0.0
    %747 = vmatpush2.xpose.msra.mxu0 0.0
    %748 = vmatprep.subr.mxu0 0.0
    %749 = vmatpush2.xpose.msra.mxu0 0.0
    %750 = vmatprep.subr.mxu0 0.0
    %751 = vmatpush2.xpose.msra.mxu0 0.0
    %752 = vmatprep.subr.mxu0 0.0
    %753 = vmatpush2.xpose.msra.mxu0 0.0
    %754 = vmatprep.subr.mxu0 0.0
    %755 = vmatpush2.xpose.msra.mxu0 0.0
    %756 = vmatprep.subr.mxu0 0.0
    %757 = vmatpush2.xpose.msra.mxu0 0.0
    %758 = vmatprep.subr.mxu0 0.0
    %759 = vmatpush2.xpose.msra.mxu0 0.0
    %760 = vmatprep.subr.mxu0 0.0
    %761 = vmatpush2.xpose.msra.mxu0 0.0
    %762 = vmatprep.subr.mxu0 0.0
    %763 = vmatpush2.xpose.msra.mxu0 0.0
    %764 = vmatprep.mubr.f32.mxu0 0.0
    %765 = vmatmul.mubr.f32.gmra.mxu0 %v696
    %v766 = vpop.f32.mrf.mxu0
    %v767 = vadd.f32 0.0, %v766
    %v768 = vpop.f32.mrf.mxu0
    %769 = vdwg.mxu0
    %v770 = vmul.f32 %v767, 0.35355338
    %v771 = vsel %vm197, %v770, -inf
    %772 = vmax.xlane.f32.xlu0 %v771
    %v773 = vpop.xlane.xlu0 %772
    %v774 = vsub.f32 %v770, %v773
    %v775 = vmul.f32 %v774, 1.442695
    %v776 = vpow.pop %v775
    %v777 = vsel %vm197, %v776, 0.0
    %778 = vadd.xlane.f32.xlu0 %v777
    %v779 = vpop.xlane.xlu0 %778
    %v780 = vrcp.pop %v779
    %v781 = vmul.f32 %v776, %v780
    %782 = vrot.lane.b32.xlu0 %v186, 40
    %v783 = vpop.permute.xlu0 %782
    %v786 = vsel %vm197, %v781, 0
    %788 = vmatprep.subr.mxu0 0.0
    %789 = vmatpush1.msra.mxu0 0.0
    %790 = vmatprep.subr.mxu0 0.0
    %791 = vmatpush1.msra.mxu0 0.0
    %792 = vmatprep.subr.mxu0 0.0
    %793 = vmatpush1.msra.mxu0 0.0
    %794 = vmatprep.subr.mxu0 0.0
    %795 = vmatpush1.msra.mxu0 0.0
    %796 = vmatprep.subr.mxu0 0.0
    %797 = vmatpush1.msra.mxu0 0.0
    %798 = vmatprep.subr.mxu0 0.0
    %799 = vmatpush1.msra.mxu0 0.0
    %800 = vmatprep.subr.mxu0 0.0
    %801 = vmatpush1.msra.mxu0 0.0
    %802 = vmatprep.subr.mxu0 0.0
    %803 = vmatpush1.msra.mxu0 0.0
    %804 = vmatprep.subr.mxu0 0.0
    %805 = vmatpush1.msra.mxu0 0.0
    %806 = vmatprep.subr.mxu0 0.0
    %807 = vmatpush1.msra.mxu0 0.0
    %808 = vmatprep.subr.mxu0 0.0
    %809 = vmatpush1.msra.mxu0 0.0
    %810 = vmatprep.subr.mxu0 0.0
    %811 = vmatpush1.msra.mxu0 0.0
    %812 = vmatprep.subr.mxu0 0.0
    %813 = vmatpush1.msra.mxu0 0.0
    %814 = vmatprep.subr.mxu0 0.0
    %815 = vmatpush1.msra.mxu0 0.0
    %816 = vmatprep.subr.mxu0 0.0
    %817 = vmatpush1.msra.mxu0 0.0
    %818 = vmatprep.subr.mxu0 0.0
    %819 = vmatpush1.msra.mxu0 %v783
    %820 = vmatprep.subr.mxu0 0.0
    %821 = vmatpush2.msra.mxu0 0.0
    %822 = vmatprep.subr.mxu0 0.0
    %823 = vmatpush2.msra.mxu0 0.0
    %824 = vmatprep.subr.mxu0 0.0
    %825 = vmatpush2.msra.mxu0 0.0
    %826 = vmatprep.subr.mxu0 0.0
    %827 = vmatpush2.msra.mxu0 0.0
    %828 = vmatprep.subr.mxu0 0.0
    %829 = vmatpush2.msra.mxu0 0.0
    %830 = vmatprep.subr.mxu0 0.0
    %831 = vmatpush2.msra.mxu0 0.0
    %832 = vmatprep.subr.mxu0 0.0
    %833 = vmatpush2.msra.mxu0 0.0
    %834 = vmatprep.subr.mxu0 0.0
    %835 = vmatpush2.msra.mxu0 0.0
    %836 = vmatprep.subr.mxu0 0.0
    %837 = vmatpush2.msra.mxu0 0.0
    %838 = vmatprep.subr.mxu0 0.0
    %839 = vmatpush2.msra.mxu0 0.0
    %840 = vmatprep.subr.mxu0 0.0
    %841 = vmatpush2.msra.mxu0 0.0
    %842 = vmatprep.subr.mxu0 0.0
    %843 = vmatpush2.msra.mxu0 0.0
    %844 = vmatprep.subr.mxu0 0.0
    %845 = vmatpush2.msra.mxu0 0.0
    %846 = vmatprep.subr.mxu0 0.0
    %847 = vmatpush2.msra.mxu0 0.0
    %848 = vmatprep.subr.mxu0 0.0
    %849 = vmatpush2.msra.mxu0 0.0
    %850 = vmatprep.subr.mxu0 0.0
    %851 = vmatpush2.msra.mxu0 0.0
    %852 = vmatprep.mubr.f32.mxu0 0.0
    %853 = vmatmul.mubr.f32.gmra.mxu0 %v786
    %v854 = vpop.f32.mrf.mxu0
    %v855 = vadd.f32 0.0, %v854
    %v856 = vpop.f32.mrf.mxu0
    %857 = vdwg.mxu0
    %859 = vrot.lane.b32.xlu0 %v523, 8
    %v860 = vpop.permute.xlu0 %859
    %863 = vrot.lane.b32.xlu0 %v689, 16
    %v864 = vpop.permute.xlu0 %863
    %867 = vrot.lane.b32.xlu0 %v855, 24
    %v868 = vpop.permute.xlu0 %867
    %v870 = vsel %vm197, %v357, %v860
    %vm871 = vcmask 130048
    %v872 = vsel %vm871, %v870, %v864
    %vm873 = vcmask 195584
    %v874 = vsel %vm873, %v872, %v868
    %876 = vrot.lane.b32.xlu0 %v191, 96
    %v877 = vpop.permute.xlu0 %876
    %v878 = vsel %vm197, %v191, 0
    %v880 = vsel %vm197, %v877, 0
    %882 = vmatprep.subr.mxu0 0.0
    %883 = vmatpush1.xpose.msra.mxu0 0.0
    %884 = vmatprep.subr.mxu0 0.0
    %885 = vmatpush1.xpose.msra.mxu0 0.0
    %886 = vmatprep.subr.mxu0 0.0
    %887 = vmatpush1.xpose.msra.mxu0 0.0
    %888 = vmatprep.subr.mxu0 0.0
    %889 = vmatpush1.xpose.msra.mxu0 0.0
    %890 = vmatprep.subr.mxu0 0.0
    %891 = vmatpush1.xpose.msra.mxu0 0.0
    %892 = vmatprep.subr.mxu0 0.0
    %893 = vmatpush1.xpose.msra.mxu0 0.0
    %894 = vmatprep.subr.mxu0 0.0
    %895 = vmatpush1.xpose.msra.mxu0 0.0
    %896 = vmatprep.subr.mxu0 0.0
    %897 = vmatpush1.xpose.msra.mxu0 0.0
    %898 = vmatprep.subr.mxu0 0.0
    %899 = vmatpush1.xpose.msra.mxu0 0.0
    %900 = vmatprep.subr.mxu0 0.0
    %901 = vmatpush1.xpose.msra.mxu0 0.0
    %902 = vmatprep.subr.mxu0 0.0
    %903 = vmatpush1.xpose.msra.mxu0 0.0
    %904 = vmatprep.subr.mxu0 0.0
    %905 = vmatpush1.xpose.msra.mxu0 0.0
    %906 = vmatprep.subr.mxu0 0.0
    %907 = vmatpush1.xpose.msra.mxu0 0.0
    %908 = vmatprep.subr.mxu0 0.0
    %909 = vmatpush1.xpose.msra.mxu0 0.0
    %910 = vmatprep.subr.mxu0 0.0
    %911 = vmatpush1.xpose.msra.mxu0 0.0
    %912 = vmatprep.subr.mxu0 0.0
    %913 = vmatpush1.xpose.msra.mxu0 %v880
    %914 = vmatprep.subr.mxu0 0.0
    %915 = vmatpush2.xpose.msra.mxu0 0.0
    %916 = vmatprep.subr.mxu0 0.0
    %917 = vmatpush2.xpose.msra.mxu0 0.0
    %918 = vmatprep.subr.mxu0 0.0
    %919 = vmatpush2.xpose.msra.mxu0 0.0
    %920 = vmatprep.subr.mxu0 0.0
    %921 = vmatpush2.xpose.msra.mxu0 0.0
    %922 = vmatprep.subr.mxu0 0.0
    %923 = vmatpush2.xpose.msra.mxu0 0.0
    %924 = vmatprep.subr.mxu0 0.0
    %925 = vmatpush2.xpose.msra.mxu0 0.0
    %926 = vmatprep.subr.mxu0 0.0
    %927 = vmatpush2.xpose.msra.mxu0 0.0
    %928 = vmatprep.subr.mxu0 0.0
    %929 = vmatpush2.xpose.msra.mxu0 0.0
    %930 = vmatprep.subr.mxu0 0.0
    %931 = vmatpush2.xpose.msra.mxu0 0.0
    %932 = vmatprep.subr.mxu0 0.0
    %933 = vmatpush2.xpose.msra.mxu0 0.0
    %934 = vmatprep.subr.mxu0 0.0
    %935 = vmatpush2.xpose.msra.mxu0 0.0
    %936 = vmatprep.subr.mxu0 0.0
    %937 = vmatpush2.xpose.msra.mxu0 0.0
    %938 = vmatprep.subr.mxu0 0.0
    %939 = vmatpush2.xpose.msra.mxu0 0.0
    %940 = vmatprep.subr.mxu0 0.0
    %941 = vmatpush2.xpose.msra.mxu0 0.0
    %942 = vmatprep.subr.mxu0 0.0
    %943 = vmatpush2.xpose.msra.mxu0 0.0
    %944 = vmatprep.subr.mxu0 0.0
    %945 = vmatpush2.xpose.msra.mxu0 0.0
    %946 = vmatprep.mubr.f32.mxu0 0.0
    %947 = vmatmul.mubr.f32.gmra.mxu0 %v878
    %v948 = vpop.f32.mrf.mxu0
    %v949 = vadd.f32 0.0, %v948
    %v950 = vpop.f32.mrf.mxu0
    %951 = vdwg.mxu0
    %v952 = vmul.f32 %v949, 0.35355338
    %v953 = vsel %vm197, %v952, -inf
    %954 = vmax.xlane.f32.xlu0 %v953
    %v955 = vpop.xlane.xlu0 %954
    %v956 = vsub.f32 %v952, %v955
    %v957 = vmul.f32 %v956, 1.442695
    %v958 = vpow.pop %v957
    %v959 = vsel %vm197, %v958, 0.0
    %960 = vadd.xlane.f32.xlu0 %v959
    %v961 = vpop.xlane.xlu0 %960
    %v962 = vrcp.pop %v961
    %v963 = vmul.f32 %v958, %v962
    %964 = vrot.lane.b32.xlu0 %v191, 64
    %v965 = vpop.permute.xlu0 %964
    %v968 = vsel %vm197, %v963, 0
    %970 = vmatprep.subr.mxu0 0.0
    %971 = vmatpush1.msra.mxu0 0.0
    %972 = vmatprep.subr.mxu0 0.0
    %973 = vmatpush1.msra.mxu0 0.0
    %974 = vmatprep.subr.mxu0 0.0
    %975 = vmatpush1.msra.mxu0 0.0
    %976 = vmatprep.subr.mxu0 0.0
    %977 = vmatpush1.msra.mxu0 0.0
    %978 = vmatprep.subr.mxu0 0.0
    %979 = vmatpush1.msra.mxu0 0.0
    %980 = vmatprep.subr.mxu0 0.0
    %981 = vmatpush1.msra.mxu0 0.0
    %982 = vmatprep.subr.mxu0 0.0
    %983 = vmatpush1.msra.mxu0 0.0
    %984 = vmatprep.subr.mxu0 0.0
    %985 = vmatpush1.msra.mxu0 0.0
    %986 = vmatprep.subr.mxu0 0.0
    %987 = vmatpush1.msra.mxu0 0.0
    %988 = vmatprep.subr.mxu0 0.0
    %989 = vmatpush1.msra.mxu0 0.0
    %990 = vmatprep.subr.mxu0 0.0
    %991 = vmatpush1.msra.mxu0 0.0
    %992 = vmatprep.subr.mxu0 0.0
    %993 = vmatpush1.msra.mxu0 0.0
    %994 = vmatprep.subr.mxu0 0.0
    %995 = vmatpush1.msra.mxu0 0.0
    %996 = vmatprep.subr.mxu0 0.0
    %997 = vmatpush1.msra.mxu0 0.0
    %998 = vmatprep.subr.mxu0 0.0
    %999 = vmatpush1.msra.mxu0 0.0
    %1000 = vmatprep.subr.mxu0 0.0
    %1001 = vmatpush1.msra.mxu0 %v965
    %1002 = vmatprep.subr.mxu0 0.0
    %1003 = vmatpush2.msra.mxu0 0.0
    %1004 = vmatprep.subr.mxu0 0.0
    %1005 = vmatpush2.msra.mxu0 0.0
    %1006 = vmatprep.subr.mxu0 0.0
    %1007 = vmatpush2.msra.mxu0 0.0
    %1008 = vmatprep.subr.mxu0 0.0
    %1009 = vmatpush2.msra.mxu0 0.0
    %1010 = vmatprep.subr.mxu0 0.0
    %1011 = vmatpush2.msra.mxu0 0.0
    %1012 = vmatprep.subr.mxu0 0.0
    %1013 = vmatpush2.msra.mxu0 0.0
    %1014 = vmatprep.subr.mxu0 0.0
    %1015 = vmatpush2.msra.mxu0 0.0
    %1016 = vmatprep.subr.mxu0 0.0
    %1017 = vmatpush2.msra.mxu0 0.0
    %1018 = vmatprep.subr.mxu0 0.0
    %1019 = vmatpush2.msra.mxu0 0.0
    %1020 = vmatprep.subr.mxu0 0.0
    %1021 = vmatpush2.msra.mxu0 0.0
    %1022 = vmatprep.subr.mxu0 0.0
    %1023 = vmatpush2.msra.mxu0 0.0
    %1024 = vmatprep.subr.mxu0 0.0
    %1025 = vmatpush2.msra.mxu0 0.0
    %1026 = vmatprep.subr.mxu0 0.0
    %1027 = vmatpush2.msra.mxu0 0.0
    %1028 = vmatprep.subr.mxu0 0.0
    %1029 = vmatpush2.msra.mxu0 0.0
    %1030 = vmatprep.subr.mxu0 0.0
    %1031 = vmatpush2.msra.mxu0 0.0
    %1032 = vmatprep.subr.mxu0 0.0
    %1033 = vmatpush2.msra.mxu0 0.0
    %1034 = vmatprep.mubr.f32.mxu0 0.0
    %1035 = vmatmul.mubr.f32.gmra.mxu0 %v968
    %v1036 = vpop.f32.mrf.mxu0
    %v1037 = vadd.f32 0.0, %v1036
    %v1038 = vpop.f32.mrf.mxu0
    %1039 = vdwg.mxu0
    %1040 = vrot.lane.b32.xlu0 %v191, 120
    %v1041 = vpop.permute.xlu0 %1040
    %1042 = vrot.lane.b32.xlu0 %v191, 88
    %v1043 = vpop.permute.xlu0 %1042
    %v1044 = vsel %vm197, %v1041, 0
    %v1046 = vsel %vm197, %v1043, 0
    %1048 = vmatprep.subr.mxu0 0.0
    %1049 = vmatpush1.xpose.msra.mxu0 0.0
    %1050 = vmatprep.subr.mxu0 0.0
    %1051 = vmatpush1.xpose.msra.mxu0 0.0
    %1052 = vmatprep.subr.mxu0 0.0
    %1053 = vmatpush1.xpose.msra.mxu0 0.0
    %1054 = vmatprep.subr.mxu0 0.0
    %1055 = vmatpush1.xpose.msra.mxu0 0.0
    %1056 = vmatprep.subr.mxu0 0.0
    %1057 = vmatpush1.xpose.msra.mxu0 0.0
    %1058 = vmatprep.subr.mxu0 0.0
    %1059 = vmatpush1.xpose.msra.mxu0 0.0
    %1060 = vmatprep.subr.mxu0 0.0
    %1061 = vmatpush1.xpose.msra.mxu0 0.0
    %1062 = vmatprep.subr.mxu0 0.0
    %1063 = vmatpush1.xpose.msra.mxu0 0.0
    %1064 = vmatprep.subr.mxu0 0.0
    %1065 = vmatpush1.xpose.msra.mxu0 0.0
    %1066 = vmatprep.subr.mxu0 0.0
    %1067 = vmatpush1.xpose.msra.mxu0 0.0
    %1068 = vmatprep.subr.mxu0 0.0
    %1069 = vmatpush1.xpose.msra.mxu0 0.0
    %1070 = vmatprep.subr.mxu0 0.0
    %1071 = vmatpush1.xpose.msra.mxu0 0.0
    %1072 = vmatprep.subr.mxu0 0.0
    %1073 = vmatpush1.xpose.msra.mxu0 0.0
    %1074 = vmatprep.subr.mxu0 0.0
    %1075 = vmatpush1.xpose.msra.mxu0 0.0
    %1076 = vmatprep.subr.mxu0 0.0
    %1077 = vmatpush1.xpose.msra.mxu0 0.0
    %1078 = vmatprep.subr.mxu0 0.0
    %1079 = vmatpush1.xpose.msra.mxu0 %v1046
    %1080 = vmatprep.subr.mxu0 0.0
    %1081 = vmatpush2.xpose.msra.mxu0 0.0
    %1082 = vmatprep.subr.mxu0 0.0
    %1083 = vmatpush2.xpose.msra.mxu0 0.0
    %1084 = vmatprep.subr.mxu0 0.0
    %1085 = vmatpush2.xpose.msra.mxu0 0.0
    %1086 = vmatprep.subr.mxu0 0.0
    %1087 = vmatpush2.xpose.msra.mxu0 0.0
    %1088 = vmatprep.subr.mxu0 0.0
    %1089 = vmatpush2.xpose.msra.mxu0 0.0
    %1090 = vmatprep.subr.mxu0 0.0
    %1091 = vmatpush2.xpose.msra.mxu0 0.0
    %1092 = vmatprep.subr.mxu0 0.0
    %1093 = vmatpush2.xpose.msra.mxu0 0.0
    %1094 = vmatprep.subr.mxu0 0.0
    %1095 = vmatpush2.xpose.msra.mxu0 0.0
    %1096 = vmatprep.subr.mxu0 0.0
    %1097 = vmatpush2.xpose.msra.mxu0 0.0
    %1098 = vmatprep.subr.mxu0 0.0
    %1099 = vmatpush2.xpose.msra.mxu0 0.0
    %1100 = vmatprep.subr.mxu0 0.0
    %1101 = vmatpush2.xpose.msra.mxu0 0.0
    %1102 = vmatprep.subr.mxu0 0.0
    %1103 = vmatpush2.xpose.msra.mxu0 0.0
    %1104 = vmatprep.subr.mxu0 0.0
    %1105 = vmatpush2.xpose.msra.mxu0 0.0
    %1106 = vmatprep.subr.mxu0 0.0
    %1107 = vmatpush2.xpose.msra.mxu0 0.0
    %1108 = vmatprep.subr.mxu0 0.0
    %1109 = vmatpush2.xpose.msra.mxu0 0.0
    %1110 = vmatprep.subr.mxu0 0.0
    %1111 = vmatpush2.xpose.msra.mxu0 0.0
    %1112 = vmatprep.mubr.f32.mxu0 0.0
    %1113 = vmatmul.mubr.f32.gmra.mxu0 %v1044
    %v1114 = vpop.f32.mrf.mxu0
    %v1115 = vadd.f32 0.0, %v1114
    %v1116 = vpop.f32.mrf.mxu0
    %1117 = vdwg.mxu0
    %v1118 = vmul.f32 %v1115, 0.35355338
    %v1119 = vsel %vm197, %v1118, -inf
    %1120 = vmax.xlane.f32.xlu0 %v1119
    %v1121 = vpop.xlane.xlu0 %1120
    %v1122 = vsub.f32 %v1118, %v1121
    %v1123 = vmul.f32 %v1122, 1.442695
    %v1124 = vpow.pop %v1123
    %v1125 = vsel %vm197, %v1124, 0.0
    %1126 = vadd.xlane.f32.xlu0 %v1125
    %v1127 = vpop.xlane.xlu0 %1126
    %v1128 = vrcp.pop %v1127
    %v1129 = vmul.f32 %v1124, %v1128
    %1130 = vrot.lane.b32.xlu0 %v191, 56
    %v1131 = vpop.permute.xlu0 %1130
    %v1134 = vsel %vm197, %v1129, 0
    %1136 = vmatprep.subr.mxu0 0.0
    %1137 = vmatpush1.msra.mxu0 0.0
    %1138 = vmatprep.subr.mxu0 0.0
    %1139 = vmatpush1.msra.mxu0 0.0
    %1140 = vmatprep.subr.mxu0 0.0
    %1141 = vmatpush1.msra.mxu0 0.0
    %1142 = vmatprep.subr.mxu0 0.0
    %1143 = vmatpush1.msra.mxu0 0.0
    %1144 = vmatprep.subr.mxu0 0.0
    %1145 = vmatpush1.msra.mxu0 0.0
    %1146 = vmatprep.subr.mxu0 0.0
    %1147 = vmatpush1.msra.mxu0 0.0
    %1148 = vmatprep.subr.mxu0 0.0
    %1149 = vmatpush1.msra.mxu0 0.0
    %1150 = vmatprep.subr.mxu0 0.0
    %1151 = vmatpush1.msra.mxu0 0.0
    %1152 = vmatprep.subr.mxu0 0.0
    %1153 = vmatpush1.msra.mxu0 0.0
    %1154 = vmatprep.subr.mxu0 0.0
    %1155 = vmatpush1.msra.mxu0 0.0
    %1156 = vmatprep.subr.mxu0 0.0
    %1157 = vmatpush1.msra.mxu0 0.0
    %1158 = vmatprep.subr.mxu0 0.0
    %1159 = vmatpush1.msra.mxu0 0.0
    %1160 = vmatprep.subr.mxu0 0.0
    %1161 = vmatpush1.msra.mxu0 0.0
    %1162 = vmatprep.subr.mxu0 0.0
    %1163 = vmatpush1.msra.mxu0 0.0
    %1164 = vmatprep.subr.mxu0 0.0
    %1165 = vmatpush1.msra.mxu0 0.0
    %1166 = vmatprep.subr.mxu0 0.0
    %1167 = vmatpush1.msra.mxu0 %v1131
    %1168 = vmatprep.subr.mxu0 0.0
    %1169 = vmatpush2.msra.mxu0 0.0
    %1170 = vmatprep.subr.mxu0 0.0
    %1171 = vmatpush2.msra.mxu0 0.0
    %1172 = vmatprep.subr.mxu0 0.0
    %1173 = vmatpush2.msra.mxu0 0.0
    %1174 = vmatprep.subr.mxu0 0.0
    %1175 = vmatpush2.msra.mxu0 0.0
    %1176 = vmatprep.subr.mxu0 0.0
    %1177 = vmatpush2.msra.mxu0 0.0
    %1178 = vmatprep.subr.mxu0 0.0
    %1179 = vmatpush2.msra.mxu0 0.0
    %1180 = vmatprep.subr.mxu0 0.0
    %1181 = vmatpush2.msra.mxu0 0.0
    %1182 = vmatprep.subr.mxu0 0.0
    %1183 = vmatpush2.msra.mxu0 0.0
    %1184 = vmatprep.subr.mxu0 0.0
    %1185 = vmatpush2.msra.mxu0 0.0
    %1186 = vmatprep.subr.mxu0 0.0
    %1187 = vmatpush2.msra.mxu0 0.0
    %1188 = vmatprep.subr.mxu0 0.0
    %1189 = vmatpush2.msra.mxu0 0.0
    %1190 = vmatprep.subr.mxu0 0.0
    %1191 = vmatpush2.msra.mxu0 0.0
    %1192 = vmatprep.subr.mxu0 0.0
    %1193 = vmatpush2.msra.mxu0 0.0
    %1194 = vmatprep.subr.mxu0 0.0
    %1195 = vmatpush2.msra.mxu0 0.0
    %1196 = vmatprep.subr.mxu0 0.0
    %1197 = vmatpush2.msra.mxu0 0.0
    %1198 = vmatprep.subr.mxu0 0.0
    %1199 = vmatpush2.msra.mxu0 0.0
    %1200 = vmatprep.mubr.f32.mxu0 0.0
    %1201 = vmatmul.mubr.f32.gmra.mxu0 %v1134
    %v1202 = vpop.f32.mrf.mxu0
    %v1203 = vadd.f32 0.0, %v1202
    %v1204 = vpop.f32.mrf.mxu0
    %1205 = vdwg.mxu0
    %1206 = vrot.lane.b32.xlu0 %v191, 112
    %v1207 = vpop.permute.xlu0 %1206
    %1208 = vrot.lane.b32.xlu0 %v191, 80
    %v1209 = vpop.permute.xlu0 %1208
    %v1210 = vsel %vm197, %v1207, 0
    %v1212 = vsel %vm197, %v1209, 0
    %1214 = vmatprep.subr.mxu0 0.0
    %1215 = vmatpush1.xpose.msra.mxu0 0.0
    %1216 = vmatprep.subr.mxu0 0.0
    %1217 = vmatpush1.xpose.msra.mxu0 0.0
    %1218 = vmatprep.subr.mxu0 0.0
    %1219 = vmatpush1.xpose.msra.mxu0 0.0
    %1220 = vmatprep.subr.mxu0 0.0
    %1221 = vmatpush1.xpose.msra.mxu0 0.0
    %1222 = vmatprep.subr.mxu0 0.0
    %1223 = vmatpush1.xpose.msra.mxu0 0.0
    %1224 = vmatprep.subr.mxu0 0.0
    %1225 = vmatpush1.xpose.msra.mxu0 0.0
    %1226 = vmatprep.subr.mxu0 0.0
    %1227 = vmatpush1.xpose.msra.mxu0 0.0
    %1228 = vmatprep.subr.mxu0 0.0
    %1229 = vmatpush1.xpose.msra.mxu0 0.0
    %1230 = vmatprep.subr.mxu0 0.0
    %1231 = vmatpush1.xpose.msra.mxu0 0.0
    %1232 = vmatprep.subr.mxu0 0.0
    %1233 = vmatpush1.xpose.msra.mxu0 0.0
    %1234 = vmatprep.subr.mxu0 0.0
    %1235 = vmatpush1.xpose.msra.mxu0 0.0
    %1236 = vmatprep.subr.mxu0 0.0
    %1237 = vmatpush1.xpose.msra.mxu0 0.0
    %1238 = vmatprep.subr.mxu0 0.0
    %1239 = vmatpush1.xpose.msra.mxu0 0.0
    %1240 = vmatprep.subr.mxu0 0.0
    %1241 = vmatpush1.xpose.msra.mxu0 0.0
    %1242 = vmatprep.subr.mxu0 0.0
    %1243 = vmatpush1.xpose.msra.mxu0 0.0
    %1244 = vmatprep.subr.mxu0 0.0
    %1245 = vmatpush1.xpose.msra.mxu0 %v1212
    %1246 = vmatprep.subr.mxu0 0.0
    %1247 = vmatpush2.xpose.msra.mxu0 0.0
    %1248 = vmatprep.subr.mxu0 0.0
    %1249 = vmatpush2.xpose.msra.mxu0 0.0
    %1250 = vmatprep.subr.mxu0 0.0
    %1251 = vmatpush2.xpose.msra.mxu0 0.0
    %1252 = vmatprep.subr.mxu0 0.0
    %1253 = vmatpush2.xpose.msra.mxu0 0.0
    %1254 = vmatprep.subr.mxu0 0.0
    %1255 = vmatpush2.xpose.msra.mxu0 0.0
    %1256 = vmatprep.subr.mxu0 0.0
    %1257 = vmatpush2.xpose.msra.mxu0 0.0
    %1258 = vmatprep.subr.mxu0 0.0
    %1259 = vmatpush2.xpose.msra.mxu0 0.0
    %1260 = vmatprep.subr.mxu0 0.0
    %1261 = vmatpush2.xpose.msra.mxu0 0.0
    %1262 = vmatprep.subr.mxu0 0.0
    %1263 = vmatpush2.xpose.msra.mxu0 0.0
    %1264 = vmatprep.subr.mxu0 0.0
    %1265 = vmatpush2.xpose.msra.mxu0 0.0
    %1266 = vmatprep.subr.mxu0 0.0
    %1267 = vmatpush2.xpose.msra.mxu0 0.0
    %1268 = vmatprep.subr.mxu0 0.0
    %1269 = vmatpush2.xpose.msra.mxu0 0.0
    %1270 = vmatprep.subr.mxu0 0.0
    %1271 = vmatpush2.xpose.msra.mxu0 0.0
    %1272 = vmatprep.subr.mxu0 0.0
    %1273 = vmatpush2.xpose.msra.mxu0 0.0
    %1274 = vmatprep.subr.mxu0 0.0
    %1275 = vmatpush2.xpose.msra.mxu0 0.0
    %1276 = vmatprep.subr.mxu0 0.0
    %1277 = vmatpush2.xpose.msra.mxu0 0.0
    %1278 = vmatprep.mubr.f32.mxu0 0.0
    %1279 = vmatmul.mubr.f32.gmra.mxu0 %v1210
    %v1280 = vpop.f32.mrf.mxu0
    %v1281 = vadd.f32 0.0, %v1280
    %v1282 = vpop.f32.mrf.mxu0
    %1283 = vdwg.mxu0
    %v1284 = vmul.f32 %v1281, 0.35355338
    %v1285 = vsel %vm197, %v1284, -inf
    %1286 = vmax.xlane.f32.xlu0 %v1285
    %v1287 = vpop.xlane.xlu0 %1286
    %v1288 = vsub.f32 %v1284, %v1287
    %v1289 = vmul.f32 %v1288, 1.442695
    %v1290 = vpow.pop %v1289
    %v1291 = vsel %vm197, %v1290, 0.0
    %1292 = vadd.xlane.f32.xlu0 %v1291
    %v1293 = vpop.xlane.xlu0 %1292
    %v1294 = vrcp.pop %v1293
    %v1295 = vmul.f32 %v1290, %v1294
    %1296 = vrot.lane.b32.xlu0 %v191, 48
    %v1297 = vpop.permute.xlu0 %1296
    %v1300 = vsel %vm197, %v1295, 0
    %1302 = vmatprep.subr.mxu0 0.0
    %1303 = vmatpush1.msra.mxu0 0.0
    %1304 = vmatprep.subr.mxu0 0.0
    %1305 = vmatpush1.msra.mxu0 0.0
    %1306 = vmatprep.subr.mxu0 0.0
    %1307 = vmatpush1.msra.mxu0 0.0
    %1308 = vmatprep.subr.mxu0 0.0
    %1309 = vmatpush1.msra.mxu0 0.0
    %1310 = vmatprep.subr.mxu0 0.0
    %1311 = vmatpush1.msra.mxu0 0.0
    %1312 = vmatprep.subr.mxu0 0.0
    %1313 = vmatpush1.msra.mxu0 0.0
    %1314 = vmatprep.subr.mxu0 0.0
    %1315 = vmatpush1.msra.mxu0 0.0
    %1316 = vmatprep.subr.mxu0 0.0
    %1317 = vmatpush1.msra.mxu0 0.0
    %1318 = vmatprep.subr.mxu0 0.0
    %1319 = vmatpush1.msra.mxu0 0.0
    %1320 = vmatprep.subr.mxu0 0.0
    %1321 = vmatpush1.msra.mxu0 0.0
    %1322 = vmatprep.subr.mxu0 0.0
    %1323 = vmatpush1.msra.mxu0 0.0
    %1324 = vmatprep.subr.mxu0 0.0
    %1325 = vmatpush1.msra.mxu0 0.0
    %1326 = vmatprep.subr.mxu0 0.0
    %1327 = vmatpush1.msra.mxu0 0.0
    %1328 = vmatprep.subr.mxu0 0.0
    %1329 = vmatpush1.msra.mxu0 0.0
    %1330 = vmatprep.subr.mxu0 0.0
    %1331 = vmatpush1.msra.mxu0 0.0
    %1332 = vmatprep.subr.mxu0 0.0
    %1333 = vmatpush1.msra.mxu0 %v1297
    %1334 = vmatprep.subr.mxu0 0.0
    %1335 = vmatpush2.msra.mxu0 0.0
    %1336 = vmatprep.subr.mxu0 0.0
    %1337 = vmatpush2.msra.mxu0 0.0
    %1338 = vmatprep.subr.mxu0 0.0
    %1339 = vmatpush2.msra.mxu0 0.0
    %1340 = vmatprep.subr.mxu0 0.0
    %1341 = vmatpush2.msra.mxu0 0.0
    %1342 = vmatprep.subr.mxu0 0.0
    %1343 = vmatpush2.msra.mxu0 0.0
    %1344 = vmatprep.subr.mxu0 0.0
    %1345 = vmatpush2.msra.mxu0 0.0
    %1346 = vmatprep.subr.mxu0 0.0
    %1347 = vmatpush2.msra.mxu0 0.0
    %1348 = vmatprep.subr.mxu0 0.0
    %1349 = vmatpush2.msra.mxu0 0.0
    %1350 = vmatprep.subr.mxu0 0.0
    %1351 = vmatpush2.msra.mxu0 0.0
    %1352 = vmatprep.subr.mxu0 0.0
    %1353 = vmatpush2.msra.mxu0 0.0
    %1354 = vmatprep.subr.mxu0 0.0
    %1355 = vmatpush2.msra.mxu0 0.0
    %1356 = vmatprep.subr.mxu0 0.0
    %1357 = vmatpush2.msra.mxu0 0.0
    %1358 = vmatprep.subr.mxu0 0.0
    %1359 = vmatpush2.msra.mxu0 0.0
    %1360 = vmatprep.subr.mxu0 0.0
    %1361 = vmatpush2.msra.mxu0 0.0
    %1362 = vmatprep.subr.mxu0 0.0
    %1363 = vmatpush2.msra.mxu0 0.0
    %1364 = vmatprep.subr.mxu0 0.0
    %1365 = vmatpush2.msra.mxu0 0.0
    %1366 = vmatprep.mubr.f32.mxu0 0.0
    %1367 = vmatmul.mubr.f32.gmra.mxu0 %v1300
    %v1368 = vpop.f32.mrf.mxu0
    %v1369 = vadd.f32 0.0, %v1368
    %v1370 = vpop.f32.mrf.mxu0
    %1371 = vdwg.mxu0
    %1372 = vrot.lane.b32.xlu0 %v191, 104
    %v1373 = vpop.permute.xlu0 %1372
    %1374 = vrot.lane.b32.xlu0 %v191, 72
    %v1375 = vpop.permute.xlu0 %1374
    %v1376 = vsel %vm197, %v1373, 0
    %v1378 = vsel %vm197, %v1375, 0
    %1380 = vmatprep.subr.mxu0 0.0
    %1381 = vmatpush1.xpose.msra.mxu0 0.0
    %1382 = vmatprep.subr.mxu0 0.0
    %1383 = vmatpush1.xpose.msra.mxu0 0.0
    %1384 = vmatprep.subr.mxu0 0.0
    %1385 = vmatpush1.xpose.msra.mxu0 0.0
    %1386 = vmatprep.subr.mxu0 0.0
    %1387 = vmatpush1.xpose.msra.mxu0 0.0
    %1388 = vmatprep.subr.mxu0 0.0
    %1389 = vmatpush1.xpose.msra.mxu0 0.0
    %1390 = vmatprep.subr.mxu0 0.0
    %1391 = vmatpush1.xpose.msra.mxu0 0.0
    %1392 = vmatprep.subr.mxu0 0.0
    %1393 = vmatpush1.xpose.msra.mxu0 0.0
    %1394 = vmatprep.subr.mxu0 0.0
    %1395 = vmatpush1.xpose.msra.mxu0 0.0
    %1396 = vmatprep.subr.mxu0 0.0
    %1397 = vmatpush1.xpose.msra.mxu0 0.0
    %1398 = vmatprep.subr.mxu0 0.0
    %1399 = vmatpush1.xpose.msra.mxu0 0.0
    %1400 = vmatprep.subr.mxu0 0.0
    %1401 = vmatpush1.xpose.msra.mxu0 0.0
    %1402 = vmatprep.subr.mxu0 0.0
    %1403 = vmatpush1.xpose.msra.mxu0 0.0
    %1404 = vmatprep.subr.mxu0 0.0
    %1405 = vmatpush1.xpose.msra.mxu0 0.0
    %1406 = vmatprep.subr.mxu0 0.0
    %1407 = vmatpush1.xpose.msra.mxu0 0.0
    %1408 = vmatprep.subr.mxu0 0.0
    %1409 = vmatpush1.xpose.msra.mxu0 0.0
    %1410 = vmatprep.subr.mxu0 0.0
    %1411 = vmatpush1.xpose.msra.mxu0 %v1378
    %1412 = vmatprep.subr.mxu0 0.0
    %1413 = vmatpush2.xpose.msra.mxu0 0.0
    %1414 = vmatprep.subr.mxu0 0.0
    %1415 = vmatpush2.xpose.msra.mxu0 0.0
    %1416 = vmatprep.subr.mxu0 0.0
    %1417 = vmatpush2.xpose.msra.mxu0 0.0
    %1418 = vmatprep.subr.mxu0 0.0
    %1419 = vmatpush2.xpose.msra.mxu0 0.0
    %1420 = vmatprep.subr.mxu0 0.0
    %1421 = vmatpush2.xpose.msra.mxu0 0.0
    %1422 = vmatprep.subr.mxu0 0.0
    %1423 = vmatpush2.xpose.msra.mxu0 0.0
    %1424 = vmatprep.subr.mxu0 0.0
    %1425 = vmatpush2.xpose.msra.mxu0 0.0
    %1426 = vmatprep.subr.mxu0 0.0
    %1427 = vmatpush2.xpose.msra.mxu0 0.0
    %1428 = vmatprep.subr.mxu0 0.0
    %1429 = vmatpush2.xpose.msra.mxu0 0.0
    %1430 = vmatprep.subr.mxu0 0.0
    %1431 = vmatpush2.xpose.msra.mxu0 0.0
    %1432 = vmatprep.subr.mxu0 0.0
    %1433 = vmatpush2.xpose.msra.mxu0 0.0
    %1434 = vmatprep.subr.mxu0 0.0
    %1435 = vmatpush2.xpose.msra.mxu0 0.0
    %1436 = vmatprep.subr.mxu0 0.0
    %1437 = vmatpush2.xpose.msra.mxu0 0.0
    %1438 = vmatprep.subr.mxu0 0.0
    %1439 = vmatpush2.xpose.msra.mxu0 0.0
    %1440 = vmatprep.subr.mxu0 0.0
    %1441 = vmatpush2.xpose.msra.mxu0 0.0
    %1442 = vmatprep.subr.mxu0 0.0
    %1443 = vmatpush2.xpose.msra.mxu0 0.0
    %1444 = vmatprep.mubr.f32.mxu0 0.0
    %1445 = vmatmul.mubr.f32.gmra.mxu0 %v1376
    %v1446 = vpop.f32.mrf.mxu0
    %v1447 = vadd.f32 0.0, %v1446
    %v1448 = vpop.f32.mrf.mxu0
    %1449 = vdwg.mxu0
    %v1450 = vmul.f32 %v1447, 0.35355338
    %v1451 = vsel %vm197, %v1450, -inf
    %1452 = vmax.xlane.f32.xlu0 %v1451
    %v1453 = vpop.xlane.xlu0 %1452
    %v1454 = vsub.f32 %v1450, %v1453
    %v1455 = vmul.f32 %v1454, 1.442695
    %v1456 = vpow.pop %v1455
    %v1457 = vsel %vm197, %v1456, 0.0
    %1458 = vadd.xlane.f32.xlu0 %v1457
    %v1459 = vpop.xlane.xlu0 %1458
    %v1460 = vrcp.pop %v1459
    %v1461 = vmul.f32 %v1456, %v1460
    %1462 = vrot.lane.b32.xlu0 %v191, 40
    %v1463 = vpop.permute.xlu0 %1462
    %v1466 = vsel %vm197, %v1461, 0
    %1468 = vmatprep.subr.mxu0 0.0
    %1469 = vmatpush1.msra.mxu0 0.0
    %1470 = vmatprep.subr.mxu0 0.0
    %1471 = vmatpush1.msra.mxu0 0.0
    %1472 = vmatprep.subr.mxu0 0.0
    %1473 = vmatpush1.msra.mxu0 0.0
    %1474 = vmatprep.subr.mxu0 0.0
    %1475 = vmatpush1.msra.mxu0 0.0
    %1476 = vmatprep.subr.mxu0 0.0
    %1477 = vmatpush1.msra.mxu0 0.0
    %1478 = vmatprep.subr.mxu0 0.0
    %1479 = vmatpush1.msra.mxu0 0.0
    %1480 = vmatprep.subr.mxu0 0.0
    %1481 = vmatpush1.msra.mxu0 0.0
    %1482 = vmatprep.subr.mxu0 0.0
    %1483 = vmatpush1.msra.mxu0 0.0
    %1484 = vmatprep.subr.mxu0 0.0
    %1485 = vmatpush1.msra.mxu0 0.0
    %1486 = vmatprep.subr.mxu0 0.0
    %1487 = vmatpush1.msra.mxu0 0.0
    %1488 = vmatprep.subr.mxu0 0.0
    %1489 = vmatpush1.msra.mxu0 0.0
    %1490 = vmatprep.subr.mxu0 0.0
    %1491 = vmatpush1.msra.mxu0 0.0
    %1492 = vmatprep.subr.mxu0 0.0
    %1493 = vmatpush1.msra.mxu0 0.0
    %1494 = vmatprep.subr.mxu0 0.0
    %1495 = vmatpush1.msra.mxu0 0.0
    %1496 = vmatprep.subr.mxu0 0.0
    %1497 = vmatpush1.msra.mxu0 0.0
    %1498 = vmatprep.subr.mxu0 0.0
    %1499 = vmatpush1.msra.mxu0 %v1463
    %1500 = vmatprep.subr.mxu0 0.0
    %1501 = vmatpush2.msra.mxu0 0.0
    %1502 = vmatprep.subr.mxu0 0.0
    %1503 = vmatpush2.msra.mxu0 0.0
    %1504 = vmatprep.subr.mxu0 0.0
    %1505 = vmatpush2.msra.mxu0 0.0
    %1506 = vmatprep.subr.mxu0 0.0
    %1507 = vmatpush2.msra.mxu0 0.0
    %1508 = vmatprep.subr.mxu0 0.0
    %1509 = vmatpush2.msra.mxu0 0.0
    %1510 = vmatprep.subr.mxu0 0.0
    %1511 = vmatpush2.msra.mxu0 0.0
    %1512 = vmatprep.subr.mxu0 0.0
    %1513 = vmatpush2.msra.mxu0 0.0
    %1514 = vmatprep.subr.mxu0 0.0
    %1515 = vmatpush2.msra.mxu0 0.0
    %1516 = vmatprep.subr.mxu0 0.0
    %1517 = vmatpush2.msra.mxu0 0.0
    %1518 = vmatprep.subr.mxu0 0.0
    %1519 = vmatpush2.msra.mxu0 0.0
    %1520 = vmatprep.subr.mxu0 0.0
    %1521 = vmatpush2.msra.mxu0 0.0
    %1522 = vmatprep.subr.mxu0 0.0
    %1523 = vmatpush2.msra.mxu0 0.0
    %1524 = vmatprep.subr.mxu0 0.0
    %1525 = vmatpush2.msra.mxu0 0.0
    %1526 = vmatprep.subr.mxu0 0.0
    %1527 = vmatpush2.msra.mxu0 0.0
    %1528 = vmatprep.subr.mxu0 0.0
    %1529 = vmatpush2.msra.mxu0 0.0
    %1530 = vmatprep.subr.mxu0 0.0
    %1531 = vmatpush2.msra.mxu0 0.0
    %1532 = vmatprep.mubr.f32.mxu0 0.0
    %1533 = vmatmul.mubr.f32.gmra.mxu0 %v1466
    %v1534 = vpop.f32.mrf.mxu0
    %v1535 = vadd.f32 0.0, %v1534
    %v1536 = vpop.f32.mrf.mxu0
    %1537 = vdwg.mxu0
    %1539 = vrot.lane.b32.xlu0 %v1203, 8
    %v1540 = vpop.permute.xlu0 %1539
    %1543 = vrot.lane.b32.xlu0 %v1369, 16
    %v1544 = vpop.permute.xlu0 %1543
    %1547 = vrot.lane.b32.xlu0 %v1535, 24
    %v1548 = vpop.permute.xlu0 %1547
    %v1550 = vsel %vm197, %v1037, %v1540
    %v1551 = vsel %vm871, %v1550, %v1544
    %v1552 = vsel %vm873, %v1551, %v1548
    %v1553 = vld [vmem:[%s4] sm:$0xff]
    %v1554 = vld [vmem:[%s4 + $0x8] sm:$0xff]
    %v1555 = vld [vmem:[%s4 + $0x10] sm:$0xff]
    %v1556 = vld [vmem:[%s4 + $0x18] sm:$0xff]
    %v1557 = vld [vmem:[%s5] sm:$0x1]
    %v1559 = vlaneseq
    %v1560 = vshrl.u32 %v1559, 7
    %v1561 = vsub.s32 0, %v1560
    %v1562 = vrot.slane %v1557, %v1561
    %v1565 = vsel %vm112, %v874, 0
    %v1568 = vsel %vm112, %v1552, 0
    %1570 = vmatprep.subr.mxu0 0.0
    %1571 = vmatpush1.msra.mxu0 0.0
    %1572 = vmatprep.subr.mxu0 0.0
    %1573 = vmatpush1.msra.mxu0 0.0
    %1574 = vmatprep.subr.mxu0 0.0
    %1575 = vmatpush1.msra.mxu0 0.0
    %1576 = vmatprep.subr.mxu0 0.0
    %1577 = vmatpush1.msra.mxu0 0.0
    %1578 = vmatprep.subr.mxu0 0.0
    %1579 = vmatpush1.msra.mxu0 0.0
    %1580 = vmatprep.subr.mxu0 0.0
    %1581 = vmatpush1.msra.mxu0 0.0
    %1582 = vmatprep.subr.mxu0 0.0
    %1583 = vmatpush1.msra.mxu0 0.0
    %1584 = vmatprep.subr.mxu0 0.0
    %1585 = vmatpush1.msra.mxu0 0.0
    %1586 = vmatprep.subr.mxu0 0.0
    %1587 = vmatpush1.msra.mxu0 0.0
    %1588 = vmatprep.subr.mxu0 0.0
    %1589 = vmatpush1.msra.mxu0 0.0
    %1590 = vmatprep.subr.mxu0 0.0
    %1591 = vmatpush1.msra.mxu0 0.0
    %1592 = vmatprep.subr.mxu0 0.0
    %1593 = vmatpush1.msra.mxu0 0.0
    %1594 = vmatprep.subr.mxu0 0.0
    %1595 = vmatpush1.msra.mxu0 %v1556
    %1596 = vmatprep.subr.mxu0 0.0
    %1597 = vmatpush1.msra.mxu0 %v1555
    %1598 = vmatprep.subr.mxu0 0.0
    %1599 = vmatpush1.msra.mxu0 %v1554
    %1600 = vmatprep.subr.mxu0 0.0
    %1601 = vmatpush1.msra.mxu0 %v1553
    %1602 = vmatprep.subr.mxu0 0.0
    %1603 = vmatpush2.msra.mxu0 0.0
    %1604 = vmatprep.subr.mxu0 0.0
    %1605 = vmatpush2.msra.mxu0 0.0
    %1606 = vmatprep.subr.mxu0 0.0
    %1607 = vmatpush2.msra.mxu0 0.0
    %1608 = vmatprep.subr.mxu0 0.0
    %1609 = vmatpush2.msra.mxu0 0.0
    %1610 = vmatprep.subr.mxu0 0.0
    %1611 = vmatpush2.msra.mxu0 0.0
    %1612 = vmatprep.subr.mxu0 0.0
    %1613 = vmatpush2.msra.mxu0 0.0
    %1614 = vmatprep.subr.mxu0 0.0
    %1615 = vmatpush2.msra.mxu0 0.0
    %1616 = vmatprep.subr.mxu0 0.0
    %1617 = vmatpush2.msra.mxu0 0.0
    %1618 = vmatprep.subr.mxu0 0.0
    %1619 = vmatpush2.msra.mxu0 0.0
    %1620 = vmatprep.subr.mxu0 0.0
    %1621 = vmatpush2.msra.mxu0 0.0
    %1622 = vmatprep.subr.mxu0 0.0
    %1623 = vmatpush2.msra.mxu0 0.0
    %1624 = vmatprep.subr.mxu0 0.0
    %1625 = vmatpush2.msra.mxu0 0.0
    %1626 = vmatprep.subr.mxu0 0.0
    %1627 = vmatpush2.msra.mxu0 0.0
    %1628 = vmatprep.subr.mxu0 0.0
    %1629 = vmatpush2.msra.mxu0 0.0
    %1630 = vmatprep.subr.mxu0 0.0
    %1631 = vmatpush2.msra.mxu0 0.0
    %1632 = vmatprep.subr.mxu0 0.0
    %1633 = vmatpush2.msra.mxu0 0.0
    %1634 = vmatprep.mubr.f32.mxu0 0.0
    %1635 = vmatmul.mubr.f32.gmra.mxu0 %v1565
    %v1636 = vpop.f32.mrf.mxu0
    %v1637 = vadd.f32 %v1562, %v1636
    %v1638 = vpop.f32.mrf.mxu0
    %1639 = vmatprep.mubr.f32.mxu0 0.0
    %1640 = vmatmul.mubr.f32.gmra.mxu0 %v1568
    %v1641 = vpop.f32.mrf.mxu0
    %v1642 = vadd.f32 %v1562, %v1641
    %v1643 = vpop.f32.mrf.mxu0
    %1644 = vdwg.mxu0
    %v1645 = vadd.f32 %v99, %v1637
    %v1646 = vadd.f32 %v100, %v1642
    %v1647 = vld [vmem:[%s6] sm:$0x1]
    %v1648 = vld [vmem:[%s7] sm:$0x1]
    %v1649 = vsel %vm112, %v1645, 0.0
    %1650 = vadd.xlane.f32.xlu0 %v1649
    %v1651 = vpop.xlane.xlu0 %1650
    %v1652 = vsel %vm112, %v1646, 0.0
    %1653 = vadd.xlane.f32.xlu0 %v1652
    %v1654 = vpop.xlane.xlu0 %1653
    %v1655 = vrcp.pop 32.0
    %v1656 = vmul.f32 %v1651, %v1655
    %v1657 = vmul.f32 %v1654, %v1655
    %v1658 = vsub.f32 %v1645, %v1656
    %v1659 = vsub.f32 %v1646, %v1657
    %v1660 = vmul.f32 %v1658, %v1658
    %v1661 = vmul.f32 %v1659, %v1659
    %v1662 = vsel %vm112, %v1660, 0.0
    %1663 = vadd.xlane.f32.xlu0 %v1662
    %v1664 = vpop.xlane.xlu0 %1663
    %v1665 = vsel %vm112, %v1661, 0.0
    %1666 = vadd.xlane.f32.xlu0 %v1665
    %v1667 = vpop.xlane.xlu0 %1666
    %v1668 = vmul.f32 %v1664, %v1655
    %v1669 = vmul.f32 %v1667, %v1655
    %v1670 = vadd.f32 %v1668, 1e-05
    %v1671 = vadd.f32 %v1669, 1e-05
    %v1672 = vrsqrt.pop %v1670
    %v1673 = vrsqrt.pop %v1671
    %v1674 = vmul.f32 %v1658, %v1672
    %v1675 = vmul.f32 %v1659, %v1673
    %v1677 = vlaneseq
    %v1678 = vshrl.u32 %v1677, 7
    %v1679 = vsub.s32 0, %v1678
    %v1680 = vrot.slane %v1647, %v1679
    %v1682 = vmul.f32 %v1674, %v1680
    %v1683 = vmul.f32 %v1675, %v1680
    %v1685 = vlaneseq
    %v1686 = vshrl.u32 %v1685, 7
    %v1687 = vsub.s32 0, %v1686
    %v1688 = vrot.slane %v1648, %v1687
    %v1690 = vadd.f32 %v1682, %v1688
    %v1691 = vadd.f32 %v1683, %v1688
    %v1692 = vld [vmem:[%s8] sm:$0xff]
    %v1693 = vld [vmem:[%s8 + $0x8] sm:$0xff]
    %v1694 = vld [vmem:[%s8 + $0x10] sm:$0xff]
    %v1695 = vld [vmem:[%s8 + $0x18] sm:$0xff]
    %v1696 = vld [vmem:[%s9] sm:$0x1]
    %v1698 = vlaneseq
    %v1699 = vshrl.u32 %v1698, 7
    %v1700 = vsub.s32 0, %v1699
    %v1701 = vrot.slane %v1696, %v1700
    %v1704 = vsel %vm112, %v1690, 0
    %v1707 = vsel %vm112, %v1691, 0
    %1709 = vmatprep.subr.mxu0 0.0
    %1710 = vmatpush1.msra.mxu0 0.0
    %1711 = vmatprep.subr.mxu0 0.0
    %1712 = vmatpush1.msra.mxu0 0.0
    %1713 = vmatprep.subr.mxu0 0.0
    %1714 = vmatpush1.msra.mxu0 0.0
    %1715 = vmatprep.subr.mxu0 0.0
    %1716 = vmatpush1.msra.mxu0 0.0
    %1717 = vmatprep.subr.mxu0 0.0
    %1718 = vmatpush1.msra.mxu0 0.0
    %1719 = vmatprep.subr.mxu0 0.0
    %1720 = vmatpush1.msra.mxu0 0.0
    %1721 = vmatprep.subr.mxu0 0.0
    %1722 = vmatpush1.msra.mxu0 0.0
    %1723 = vmatprep.subr.mxu0 0.0
    %1724 = vmatpush1.msra.mxu0 0.0
    %1725 = vmatprep.subr.mxu0 0.0
    %1726 = vmatpush1.msra.mxu0 0.0
    %1727 = vmatprep.subr.mxu0 0.0
    %1728 = vmatpush1.msra.mxu0 0.0
    %1729 = vmatprep.subr.mxu0 0.0
    %1730 = vmatpush1.msra.mxu0 0.0
    %1731 = vmatprep.subr.mxu0 0.0
    %1732 = vmatpush1.msra.mxu0 0.0
    %1733 = vmatprep.subr.mxu0 0.0
    %1734 = vmatpush1.msra.mxu0 %v1695
    %1735 = vmatprep.subr.mxu0 0.0
    %1736 = vmatpush1.msra.mxu0 %v1694
    %1737 = vmatprep.subr.mxu0 0.0
    %1738 = vmatpush1.msra.mxu0 %v1693
    %1739 = vmatprep.subr.mxu0 0.0
    %1740 = vmatpush1.msra.mxu0 %v1692
    %1741 = vmatprep.subr.mxu0 0.0
    %1742 = vmatpush2.msra.mxu0 0.0
    %1743 = vmatprep.subr.mxu0 0.0
    %1744 = vmatpush2.msra.mxu0 0.0
    %1745 = vmatprep.subr.mxu0 0.0
    %1746 = vmatpush2.msra.mxu0 0.0
    %1747 = vmatprep.subr.mxu0 0.0
    %1748 = vmatpush2.msra.mxu0 0.0
    %1749 = vmatprep.subr.mxu0 0.0
    %1750 = vmatpush2.msra.mxu0 0.0
    %1751 = vmatprep.subr.mxu0 0.0
    %1752 = vmatpush2.msra.mxu0 0.0
    %1753 = vmatprep.subr.mxu0 0.0
    %1754 = vmatpush2.msra.mxu0 0.0
    %1755 = vmatprep.subr.mxu0 0.0
    %1756 = vmatpush2.msra.mxu0 0.0
    %1757 = vmatprep.subr.mxu0 0.0
    %1758 = vmatpush2.msra.mxu0 0.0
    %1759 = vmatprep.subr.mxu0 0.0
    %1760 = vmatpush2.msra.mxu0 0.0
    %1761 = vmatprep.subr.mxu0 0.0
    %1762 = vmatpush2.msra.mxu0 0.0
    %1763 = vmatprep.subr.mxu0 0.0
    %1764 = vmatpush2.msra.mxu0 0.0
    %1765 = vmatprep.subr.mxu0 0.0
    %1766 = vmatpush2.msra.mxu0 0.0
    %1767 = vmatprep.subr.mxu0 0.0
    %1768 = vmatpush2.msra.mxu0 0.0
    %1769 = vmatprep.subr.mxu0 0.0
    %1770 = vmatpush2.msra.mxu0 0.0
    %1771 = vmatprep.subr.mxu0 0.0
    %1772 = vmatpush2.msra.mxu0 0.0
    %1773 = vmatprep.mubr.f32.mxu0 0.0
    %1774 = vmatmul.mubr.f32.gmra.mxu0 %v1704
    %v1775 = vpop.f32.mrf.mxu0
    %v1776 = vadd.f32 %v1701, %v1775
    %v1777 = vpop.f32.mrf.mxu0
    %1778 = vmatprep.mubr.f32.mxu0 0.0
    %1779 = vmatmul.mubr.f32.gmra.mxu0 %v1707
    %v1780 = vpop.f32.mrf.mxu0
    %v1781 = vadd.f32 %v1701, %v1780
    %v1782 = vpop.f32.mrf.mxu0
    %1783 = vdwg.mxu0
    %v1784 = vmax.f32 %v1776, 0.0
    %v1785 = vmax.f32 %v1781, 0.0
    %v1786 = vld [vmem:[%s10] sm:$0xff]
    %v1787 = vld [vmem:[%s10 + $0x8] sm:$0xff]
    %v1788 = vld [vmem:[%s10 + $0x10] sm:$0xff]
    %v1789 = vld [vmem:[%s10 + $0x18] sm:$0xff]
    %v1790 = vld [vmem:[%s10 + $0x20] sm:$0xff]
    %v1791 = vld [vmem:[%s10 + $0x28] sm:$0xff]
    %v1792 = vld [vmem:[%s10 + $0x30] sm:$0xff]
    %v1793 = vld [vmem:[%s10 + $0x38] sm:$0xff]
    %v1794 = vld [vmem:[%s11] sm:$0x1]
    %v1796 = vlaneseq
    %v1797 = vshrl.u32 %v1796, 7
    %v1798 = vsub.s32 0, %v1797
    %v1799 = vrot.slane %v1794, %v1798
    %vm1801 = vcmask 523264
    %v1803 = vsel %vm1801, %v1784, 0
    %v1806 = vsel %vm1801, %v1785, 0
    %1808 = vmatprep.subr.mxu0 0.0
    %1809 = vmatpush1.msra.mxu0 0.0
    %1810 = vmatprep.subr.mxu0 0.0
    %1811 = vmatpush1.msra.mxu0 0.0
    %1812 = vmatprep.subr.mxu0 0.0
    %1813 = vmatpush1.msra.mxu0 0.0
    %1814 = vmatprep.subr.mxu0 0.0
    %1815 = vmatpush1.msra.mxu0 0.0
    %1816 = vmatprep.subr.mxu0 0.0
    %1817 = vmatpush1.msra.mxu0 0.0
    %1818 = vmatprep.subr.mxu0 0.0
    %1819 = vmatpush1.msra.mxu0 0.0
    %1820 = vmatprep.subr.mxu0 0.0
    %1821 = vmatpush1.msra.mxu0 0.0
    %1822 = vmatprep.subr.mxu0 0.0
    %1823 = vmatpush1.msra.mxu0 0.0
    %1824 = vmatprep.subr.mxu0 0.0
    %1825 = vmatpush1.msra.mxu0 %v1793
    %1826 = vmatprep.subr.mxu0 0.0
    %1827 = vmatpush1.msra.mxu0 %v1792
    %1828 = vmatprep.subr.mxu0 0.0
    %1829 = vmatpush1.msra.mxu0 %v1791
    %1830 = vmatprep.subr.mxu0 0.0
    %1831 = vmatpush1.msra.mxu0 %v1790
    %1832 = vmatprep.subr.mxu0 0.0
    %1833 = vmatpush1.msra.mxu0 %v1789
    %1834 = vmatprep.subr.mxu0 0.0
    %1835 = vmatpush1.msra.mxu0 %v1788
    %1836 = vmatprep.subr.mxu0 0.0
    %1837 = vmatpush1.msra.mxu0 %v1787
    %1838 = vmatprep.subr.mxu0 0.0
    %1839 = vmatpush1.msra.mxu0 %v1786
    %1840 = vmatprep.subr.mxu0 0.0
    %1841 = vmatpush2.msra.mxu0 0.0
    %1842 = vmatprep.subr.mxu0 0.0
    %1843 = vmatpush2.msra.mxu0 0.0
    %1844 = vmatprep.subr.mxu0 0.0
    %1845 = vmatpush2.msra.mxu0 0.0
    %1846 = vmatprep.subr.mxu0 0.0
    %1847 = vmatpush2.msra.mxu0 0.0
    %1848 = vmatprep.subr.mxu0 0.0
    %1849 = vmatpush2.msra.mxu0 0.0
    %1850 = vmatprep.subr.mxu0 0.0
    %1851 = vmatpush2.msra.mxu0 0.0
    %1852 = vmatprep.subr.mxu0 0.0
    %1853 = vmatpush2.msra.mxu0 0.0
    %1854 = vmatprep.subr.mxu0 0.0
    %1855 = vmatpush2.msra.mxu0 0.0
    %1856 = vmatprep.subr.mxu0 0.0
    %1857 = vmatpush2.msra.mxu0 0.0
    %1858 = vmatprep.subr.mxu0 0.0
    %1859 = vmatpush2.msra.mxu0 0.0
    %1860 = vmatprep.subr.mxu0 0.0
    %1861 = vmatpush2.msra.mxu0 0.0
    %1862 = vmatprep.subr.mxu0 0.0
    %1863 = vmatpush2.msra.mxu0 0.0
    %1864 = vmatprep.subr.mxu0 0.0
    %1865 = vmatpush2.msra.mxu0 0.0
    %1866 = vmatprep.subr.mxu0 0.0
    %1867 = vmatpush2.msra.mxu0 0.0
    %1868 = vmatprep.subr.mxu0 0.0
    %1869 = vmatpush2.msra.mxu0 0.0
    %1870 = vmatprep.subr.mxu0 0.0
    %1871 = vmatpush2.msra.mxu0 0.0
    %1872 = vmatprep.mubr.f32.mxu0 0.0
    %1873 = vmatmul.mubr.f32.gmra.mxu0 %v1803
    %v1874 = vpop.f32.mrf.mxu0
    %v1875 = vadd.f32 %v1799, %v1874
    %v1876 = vpop.f32.mrf.mxu0
    %1877 = vmatprep.mubr.f32.mxu0 0.0
    %1878 = vmatmul.mubr.f32.gmra.mxu0 %v1806
    %v1879 = vpop.f32.mrf.mxu0
    %v1880 = vadd.f32 %v1799, %v1879
    %v1881 = vpop.f32.mrf.mxu0
    %1882 = vdwg.mxu0
    %v1883 = vadd.f32 %v1690, %v1875
    %v1884 = vadd.f32 %v1691, %v1880
    %v1885 = vld [vmem:[%s12] sm:$0x1]
    %v1886 = vld [vmem:[%s13] sm:$0x1]
    %v1887 = vsel %vm112, %v1883, 0.0
    %1888 = vadd.xlane.f32.xlu0 %v1887
    %v1889 = vpop.xlane.xlu0 %1888
    %v1890 = vsel %vm112, %v1884, 0.0
    %1891 = vadd.xlane.f32.xlu0 %v1890
    %v1892 = vpop.xlane.xlu0 %1891
    %v1893 = vmul.f32 %v1889, %v1655
    %v1894 = vmul.f32 %v1892, %v1655
    %v1895 = vsub.f32 %v1883, %v1893
    %v1896 = vsub.f32 %v1884, %v1894
    %v1897 = vmul.f32 %v1895, %v1895
    %v1898 = vmul.f32 %v1896, %v1896
    %v1899 = vsel %vm112, %v1897, 0.0
    %1900 = vadd.xlane.f32.xlu0 %v1899
    %v1901 = vpop.xlane.xlu0 %1900
    %v1902 = vsel %vm112, %v1898, 0.0
    %1903 = vadd.xlane.f32.xlu0 %v1902
    %v1904 = vpop.xlane.xlu0 %1903
    %v1905 = vmul.f32 %v1901, %v1655
    %v1906 = vmul.f32 %v1904, %v1655
    %v1907 = vadd.f32 %v1905, 1e-05
    %v1908 = vadd.f32 %v1906, 1e-05
    %v1909 = vrsqrt.pop %v1907
    %v1910 = vrsqrt.pop %v1908
    %v1911 = vmul.f32 %v1895, %v1909
    %v1912 = vmul.f32 %v1896, %v1910
    %v1914 = vlaneseq
    %v1915 = vshrl.u32 %v1914, 7
    %v1916 = vsub.s32 0, %v1915
    %v1917 = vrot.slane %v1885, %v1916
    %v1919 = vmul.f32 %v1911, %v1917
    %v1920 = vmul.f32 %v1912, %v1917
    %v1922 = vlaneseq
    %v1923 = vshrl.u32 %v1922, 7
    %v1924 = vsub.s32 0, %v1923
    %v1925 = vrot.slane %v1886, %v1924
    %v1927 = vadd.f32 %v1919, %v1925
    %v1928 = vadd.f32 %v1920, %v1925
    %s1929 = scalar_lea.vmem %s2, 32
    %v1930 = vld [vmem:[%s1929] sm:$0xff]
    %v1931 = vld [vmem:[%s1929 + $0x8] sm:$0xff]
    %v1932 = vld [vmem:[%s1929 + $0x10] sm:$0xff]
    %v1933 = vld [vmem:[%s1929 + $0x18] sm:$0xff]
    %s1934 = scalar_lea.vmem %s3, 1
    %v1935 = vld [vmem:[%s1934] sm:$0x1]
    %v1937 = vlaneseq
    %v1938 = vshrl.u32 %v1937, 7
    %v1939 = vsub.s32 0, %v1938
    %v1940 = vrot.slane %v1935, %v1939
    %v1943 = vsel %vm112, %v1927, 0
    %v1946 = vsel %vm112, %v1928, 0
    %1948 = vmatprep.subr.mxu0 0.0
    %1949 = vmatpush1.msra.mxu0 0.0
    %1950 = vmatprep.subr.mxu0 0.0
    %1951 = vmatpush1.msra.mxu0 0.0
    %1952 = vmatprep.subr.mxu0 0.0
    %1953 = vmatpush1.msra.mxu0 0.0
    %1954 = vmatprep.subr.mxu0 0.0
    %1955 = vmatpush1.msra.mxu0 0.0
    %1956 = vmatprep.subr.mxu0 0.0
    %1957 = vmatpush1.msra.mxu0 0.0
    %1958 = vmatprep.subr.mxu0 0.0
    %1959 = vmatpush1.msra.mxu0 0.0
    %1960 = vmatprep.subr.mxu0 0.0
    %1961 = vmatpush1.msra.mxu0 0.0
    %1962 = vmatprep.subr.mxu0 0.0
    %1963 = vmatpush1.msra.mxu0 0.0
    %1964 = vmatprep.subr.mxu0 0.0
    %1965 = vmatpush1.msra.mxu0 0.0
    %1966 = vmatprep.subr.mxu0 0.0
    %1967 = vmatpush1.msra.mxu0 0.0
    %1968 = vmatprep.subr.mxu0 0.0
    %1969 = vmatpush1.msra.mxu0 0.0
    %1970 = vmatprep.subr.mxu0 0.0
    %1971 = vmatpush1.msra.mxu0 0.0
    %1972 = vmatprep.subr.mxu0 0.0
    %1973 = vmatpush1.msra.mxu0 %v1933
    %1974 = vmatprep.subr.mxu0 0.0
    %1975 = vmatpush1.msra.mxu0 %v1932
    %1976 = vmatprep.subr.mxu0 0.0
    %1977 = vmatpush1.msra.mxu0 %v1931
    %1978 = vmatprep.subr.mxu0 0.0
    %1979 = vmatpush1.msra.mxu0 %v1930
    %1980 = vmatprep.subr.mxu0 0.0
    %1981 = vmatpush2.msra.mxu0 0.0
    %1982 = vmatprep.subr.mxu0 0.0
    %1983 = vmatpush2.msra.mxu0 0.0
    %1984 = vmatprep.subr.mxu0 0.0
    %1985 = vmatpush2.msra.mxu0 0.0
    %1986 = vmatprep.subr.mxu0 0.0
    %1987 = vmatpush2.msra.mxu0 0.0
    %1988 = vmatprep.subr.mxu0 0.0
    %1989 = vmatpush2.msra.mxu0 0.0
    %1990 = vmatprep.subr.mxu0 0.0
    %1991 = vmatpush2.msra.mxu0 0.0
    %1992 = vmatprep.subr.mxu0 0.0
    %1993 = vmatpush2.msra.mxu0 0.0
    %1994 = vmatprep.subr.mxu0 0.0
    %1995 = vmatpush2.msra.mxu0 0.0
    %1996 = vmatprep.subr.mxu0 0.0
    %1997 = vmatpush2.msra.mxu0 0.0
    %1998 = vmatprep.subr.mxu0 0.0
    %1999 = vmatpush2.msra.mxu0 0.0
    %2000 = vmatprep.subr.mxu0 0.0
    %2001 = vmatpush2.msra.mxu0 0.0
    %2002 = vmatprep.subr.mxu0 0.0
    %2003 = vmatpush2.msra.mxu0 0.0
    %2004 = vmatprep.subr.mxu0 0.0
    %2005 = vmatpush2.msra.mxu0 0.0
    %2006 = vmatprep.subr.mxu0 0.0
    %2007 = vmatpush2.msra.mxu0 0.0
    %2008 = vmatprep.subr.mxu0 0.0
    %2009 = vmatpush2.msra.mxu0 0.0
    %2010 = vmatprep.subr.mxu0 0.0
    %2011 = vmatpush2.msra.mxu0 0.0
    %2012 = vmatprep.mubr.f32.mxu0 0.0
    %2013 = vmatmul.mubr.f32.gmra.mxu0 %v1943
    %v2014 = vpop.f32.mrf.mxu0
    %v2015 = vadd.f32 %v1940, %v2014
    %v2016 = vpop.f32.mrf.mxu0
    %2017 = vmatprep.mubr.f32.mxu0 0.0
    %2018 = vmatmul.mubr.f32.gmra.mxu0 %v1946
    %v2019 = vpop.f32.mrf.mxu0
    %v2020 = vadd.f32 %v1940, %v2019
    %v2021 = vpop.f32.mrf.mxu0
    %2022 = vdwg.mxu0
    %2024 = vrot.lane.b32.xlu0 %v2015, 96
    %v2025 = vpop.permute.xlu0 %2024
    %v2026 = vsel %vm197, %v2015, 0
    %v2028 = vsel %vm197, %v2025, 0
    %2030 = vmatprep.subr.mxu0 0.0
    %2031 = vmatpush1.xpose.msra.mxu0 0.0
    %2032 = vmatprep.subr.mxu0 0.0
    %2033 = vmatpush1.xpose.msra.mxu0 0.0
    %2034 = vmatprep.subr.mxu0 0.0
    %2035 = vmatpush1.xpose.msra.mxu0 0.0
    %2036 = vmatprep.subr.mxu0 0.0
    %2037 = vmatpush1.xpose.msra.mxu0 0.0
    %2038 = vmatprep.subr.mxu0 0.0
    %2039 = vmatpush1.xpose.msra.mxu0 0.0
    %2040 = vmatprep.subr.mxu0 0.0
    %2041 = vmatpush1.xpose.msra.mxu0 0.0
    %2042 = vmatprep.subr.mxu0 0.0
    %2043 = vmatpush1.xpose.msra.mxu0 0.0
    %2044 = vmatprep.subr.mxu0 0.0
    %2045 = vmatpush1.xpose.msra.mxu0 0.0
    %2046 = vmatprep.subr.mxu0 0.0
    %2047 = vmatpush1.xpose.msra.mxu0 0.0
    %2048 = vmatprep.subr.mxu0 0.0
    %2049 = vmatpush1.xpose.msra.mxu0 0.0
    %2050 = vmatprep.subr.mxu0 0.0
    %2051 = vmatpush1.xpose.msra.mxu0 0.0
    %2052 = vmatprep.subr.mxu0 0.0
    %2053 = vmatpush1.xpose.msra.mxu0 0.0
    %2054 = vmatprep.subr.mxu0 0.0
    %2055 = vmatpush1.xpose.msra.mxu0 0.0
    %2056 = vmatprep.subr.mxu0 0.0
    %2057 = vmatpush1.xpose.msra.mxu0 0.0
    %2058 = vmatprep.subr.mxu0 0.0
    %2059 = vmatpush1.xpose.msra.mxu0 0.0
    %2060 = vmatprep.subr.mxu0 0.0
    %2061 = vmatpush1.xpose.msra.mxu0 %v2028
    %2062 = vmatprep.subr.mxu0 0.0
    %2063 = vmatpush2.xpose.msra.mxu0 0.0
    %2064 = vmatprep.subr.mxu0 0.0
    %2065 = vmatpush2.xpose.msra.mxu0 0.0
    %2066 = vmatprep.subr.mxu0 0.0
    %2067 = vmatpush2.xpose.msra.mxu0 0.0
    %2068 = vmatprep.subr.mxu0 0.0
    %2069 = vmatpush2.xpose.msra.mxu0 0.0
    %2070 = vmatprep.subr.mxu0 0.0
    %2071 = vmatpush2.xpose.msra.mxu0 0.0
    %2072 = vmatprep.subr.mxu0 0.0
    %2073 = vmatpush2.xpose.msra.mxu0 0.0
    %2074 = vmatprep.subr.mxu0 0.0
    %2075 = vmatpush2.xpose.msra.mxu0 0.0
    %2076 = vmatprep.subr.mxu0 0.0
    %2077 = vmatpush2.xpose.msra.mxu0 0.0
    %2078 = vmatprep.subr.mxu0 0.0
    %2079 = vmatpush2.xpose.msra.mxu0 0.0
    %2080 = vmatprep.subr.mxu0 0.0
    %2081 = vmatpush2.xpose.msra.mxu0 0.0
    %2082 = vmatprep.subr.mxu0 0.0
    %2083 = vmatpush2.xpose.msra.mxu0 0.0
    %2084 = vmatprep.subr.mxu0 0.0
    %2085 = vmatpush2.xpose.msra.mxu0 0.0
    %2086 = vmatprep.subr.mxu0 0.0
    %2087 = vmatpush2.xpose.msra.mxu0 0.0
    %2088 = vmatprep.subr.mxu0 0.0
    %2089 = vmatpush2.xpose.msra.mxu0 0.0
    %2090 = vmatprep.subr.mxu0 0.0
    %2091 = vmatpush2.xpose.msra.mxu0 0.0
    %2092 = vmatprep.subr.mxu0 0.0
    %2093 = vmatpush2.xpose.msra.mxu0 0.0
    %2094 = vmatprep.mubr.f32.mxu0 0.0
    %2095 = vmatmul.mubr.f32.gmra.mxu0 %v2026
    %v2096 = vpop.f32.mrf.mxu0
    %v2097 = vadd.f32 0.0, %v2096
    %v2098 = vpop.f32.mrf.mxu0
    %2099 = vdwg.mxu0
    %v2100 = vmul.f32 %v2097, 0.35355338
    %v2101 = vsel %vm197, %v2100, -inf
    %2102 = vmax.xlane.f32.xlu0 %v2101
    %v2103 = vpop.xlane.xlu0 %2102
    %v2104 = vsub.f32 %v2100, %v2103
    %v2105 = vmul.f32 %v2104, 1.442695
    %v2106 = vpow.pop %v2105
    %v2107 = vsel %vm197, %v2106, 0.0
    %2108 = vadd.xlane.f32.xlu0 %v2107
    %v2109 = vpop.xlane.xlu0 %2108
    %v2110 = vrcp.pop %v2109
    %v2111 = vmul.f32 %v2106, %v2110
    %2112 = vrot.lane.b32.xlu0 %v2015, 64
    %v2113 = vpop.permute.xlu0 %2112
    %v2116 = vsel %vm197, %v2111, 0
    %2118 = vmatprep.subr.mxu0 0.0
    %2119 = vmatpush1.msra.mxu0 0.0
    %2120 = vmatprep.subr.mxu0 0.0
    %2121 = vmatpush1.msra.mxu0 0.0
    %2122 = vmatprep.subr.mxu0 0.0
    %2123 = vmatpush1.msra.mxu0 0.0
    %2124 = vmatprep.subr.mxu0 0.0
    %2125 = vmatpush1.msra.mxu0 0.0
    %2126 = vmatprep.subr.mxu0 0.0
    %2127 = vmatpush1.msra.mxu0 0.0
    %2128 = vmatprep.subr.mxu0 0.0
    %2129 = vmatpush1.msra.mxu0 0.0
    %2130 = vmatprep.subr.mxu0 0.0
    %2131 = vmatpush1.msra.mxu0 0.0
    %2132 = vmatprep.subr.mxu0 0.0
    %2133 = vmatpush1.msra.mxu0 0.0
    %2134 = vmatprep.subr.mxu0 0.0
    %2135 = vmatpush1.msra.mxu0 0.0
    %2136 = vmatprep.subr.mxu0 0.0
    %2137 = vmatpush1.msra.mxu0 0.0
    %2138 = vmatprep.subr.mxu0 0.0
    %2139 = vmatpush1.msra.mxu0 0.0
    %2140 = vmatprep.subr.mxu0 0.0
    %2141 = vmatpush1.msra.mxu0 0.0
    %2142 = vmatprep.subr.mxu0 0.0
    %2143 = vmatpush1.msra.mxu0 0.0
    %2144 = vmatprep.subr.mxu0 0.0
    %2145 = vmatpush1.msra.mxu0 0.0
    %2146 = vmatprep.subr.mxu0 0.0
    %2147 = vmatpush1.msra.mxu0 0.0
    %2148 = vmatprep.subr.mxu0 0.0
    %2149 = vmatpush1.msra.mxu0 %v2113
    %2150 = vmatprep.subr.mxu0 0.0
    %2151 = vmatpush2.msra.mxu0 0.0
    %2152 = vmatprep.subr.mxu0 0.0
    %2153 = vmatpush2.msra.mxu0 0.0
    %2154 = vmatprep.subr.mxu0 0.0
    %2155 = vmatpush2.msra.mxu0 0.0
    %2156 = vmatprep.subr.mxu0 0.0
    %2157 = vmatpush2.msra.mxu0 0.0
    %2158 = vmatprep.subr.mxu0 0.0
    %2159 = vmatpush2.msra.mxu0 0.0
    %2160 = vmatprep.subr.mxu0 0.0
    %2161 = vmatpush2.msra.mxu0 0.0
    %2162 = vmatprep.subr.mxu0 0.0
    %2163 = vmatpush2.msra.mxu0 0.0
    %2164 = vmatprep.subr.mxu0 0.0
    %2165 = vmatpush2.msra.mxu0 0.0
    %2166 = vmatprep.subr.mxu0 0.0
    %2167 = vmatpush2.msra.mxu0 0.0
    %2168 = vmatprep.subr.mxu0 0.0
    %2169 = vmatpush2.msra.mxu0 0.0
    %2170 = vmatprep.subr.mxu0 0.0
    %2171 = vmatpush2.msra.mxu0 0.0
    %2172 = vmatprep.subr.mxu0 0.0
    %2173 = vmatpush2.msra.mxu0 0.0
    %2174 = vmatprep.subr.mxu0 0.0
    %2175 = vmatpush2.msra.mxu0 0.0
    %2176 = vmatprep.subr.mxu0 0.0
    %2177 = vmatpush2.msra.mxu0 0.0
    %2178 = vmatprep.subr.mxu0 0.0
    %2179 = vmatpush2.msra.mxu0 0.0
    %2180 = vmatprep.subr.mxu0 0.0
    %2181 = vmatpush2.msra.mxu0 0.0
    %2182 = vmatprep.mubr.f32.mxu0 0.0
    %2183 = vmatmul.mubr.f32.gmra.mxu0 %v2116
    %v2184 = vpop.f32.mrf.mxu0
    %v2185 = vadd.f32 0.0, %v2184
    %v2186 = vpop.f32.mrf.mxu0
    %2187 = vdwg.mxu0
    %2188 = vrot.lane.b32.xlu0 %v2015, 120
    %v2189 = vpop.permute.xlu0 %2188
    %2190 = vrot.lane.b32.xlu0 %v2015, 88
    %v2191 = vpop.permute.xlu0 %2190
    %v2192 = vsel %vm197, %v2189, 0
    %v2194 = vsel %vm197, %v2191, 0
    %2196 = vmatprep.subr.mxu0 0.0
    %2197 = vmatpush1.xpose.msra.mxu0 0.0
    %2198 = vmatprep.subr.mxu0 0.0
    %2199 = vmatpush1.xpose.msra.mxu0 0.0
    %2200 = vmatprep.subr.mxu0 0.0
    %2201 = vmatpush1.xpose.msra.mxu0 0.0
    %2202 = vmatprep.subr.mxu0 0.0
    %2203 = vmatpush1.xpose.msra.mxu0 0.0
    %2204 = vmatprep.subr.mxu0 0.0
    %2205 = vmatpush1.xpose.msra.mxu0 0.0
    %2206 = vmatprep.subr.mxu0 0.0
    %2207 = vmatpush1.xpose.msra.mxu0 0.0
    %2208 = vmatprep.subr.mxu0 0.0
    %2209 = vmatpush1.xpose.msra.mxu0 0.0
    %2210 = vmatprep.subr.mxu0 0.0
    %2211 = vmatpush1.xpose.msra.mxu0 0.0
    %2212 = vmatprep.subr.mxu0 0.0
    %2213 = vmatpush1.xpose.msra.mxu0 0.0
    %2214 = vmatprep.subr.mxu0 0.0
    %2215 = vmatpush1.xpose.msra.mxu0 0.0
    %2216 = vmatprep.subr.mxu0 0.0
    %2217 = vmatpush1.xpose.msra.mxu0 0.0
    %2218 = vmatprep.subr.mxu0 0.0
    %2219 = vmatpush1.xpose.msra.mxu0 0.0
    %2220 = vmatprep.subr.mxu0 0.0
    %2221 = vmatpush1.xpose.msra.mxu0 0.0
    %2222 = vmatprep.subr.mxu0 0.0
    %2223 = vmatpush1.xpose.msra.mxu0 0.0
    %2224 = vmatprep.subr.mxu0 0.0
    %2225 = vmatpush1.xpose.msra.mxu0 0.0
    %2226 = vmatprep.subr.mxu0 0.0
    %2227 = vmatpush1.xpose.msra.mxu0 %v2194
    %2228 = vmatprep.subr.mxu0 0.0
    %2229 = vmatpush2.xpose.msra.mxu0 0.0
    %2230 = vmatprep.subr.mxu0 0.0
    %2231 = vmatpush2.xpose.msra.mxu0 0.0
    %2232 = vmatprep.subr.mxu0 0.0
    %2233 = vmatpush2.xpose.msra.mxu0 0.0
    %2234 = vmatprep.subr.mxu0 0.0
    %2235 = vmatpush2.xpose.msra.mxu0 0.0
    %2236 = vmatprep.subr.mxu0 0.0
    %2237 = vmatpush2.xpose.msra.mxu0 0.0
    %2238 = vmatprep.subr.mxu0 0.0
    %2239 = vmatpush2.xpose.msra.mxu0 0.0
    %2240 = vmatprep.subr.mxu0 0.0
    %2241 = vmatpush2.xpose.msra.mxu0 0.0
    %2242 = vmatprep.subr.mxu0 0.0
    %2243 = vmatpush2.xpose.msra.mxu0 0.0
    %2244 = vmatprep.subr.mxu0 0.0
    %2245 = vmatpush2.xpose.msra.mxu0 0.0
    %2246 = vmatprep.subr.mxu0 0.0
    %2247 = vmatpush2.xpose.msra.mxu0 0.0
    %2248 = vmatprep.subr.mxu0 0.0
    %2249 = vmatpush2.xpose.msra.mxu0 0.0
    %2250 = vmatprep.subr.mxu0 0.0
    %2251 = vmatpush2.xpose.msra.mxu0 0.0
    %2252 = vmatprep.subr.mxu0 0.0
    %2253 = vmatpush2.xpose.msra.mxu0 0.0
    %2254 = vmatprep.subr.mxu0 0.0
    %2255 = vmatpush2.xpose.msra.mxu0 0.0
    %2256 = vmatprep.subr.mxu0 0.0
    %2257 = vmatpush2.xpose.msra.mxu0 0.0
    %2258 = vmatprep.subr.mxu0 0.0
    %2259 = vmatpush2.xpose.msra.mxu0 0.0
    %2260 = vmatprep.mubr.f32.mxu0 0.0
    %2261 = vmatmul.mubr.f32.gmra.mxu0 %v2192
    %v2262 = vpop.f32.mrf.mxu0
    %v2263 = vadd.f32 0.0, %v2262
    %v2264 = vpop.f32.mrf.mxu0
    %2265 = vdwg.mxu0
    %v2266 = vmul.f32 %v2263, 0.35355338
    %v2267 = vsel %vm197, %v2266, -inf
    %2268 = vmax.xlane.f32.xlu0 %v2267
    %v2269 = vpop.xlane.xlu0 %2268
    %v2270 = vsub.f32 %v2266, %v2269
    %v2271 = vmul.f32 %v2270, 1.442695
    %v2272 = vpow.pop %v2271
    %v2273 = vsel %vm197, %v2272, 0.0
    %2274 = vadd.xlane.f32.xlu0 %v2273
    %v2275 = vpop.xlane.xlu0 %2274
    %v2276 = vrcp.pop %v2275
    %v2277 = vmul.f32 %v2272, %v2276
    %2278 = vrot.lane.b32.xlu0 %v2015, 56
    %v2279 = vpop.permute.xlu0 %2278
    %v2282 = vsel %vm197, %v2277, 0
    %2284 = vmatprep.subr.mxu0 0.0
    %2285 = vmatpush1.msra.mxu0 0.0
    %2286 = vmatprep.subr.mxu0 0.0
    %2287 = vmatpush1.msra.mxu0 0.0
    %2288 = vmatprep.subr.mxu0 0.0
    %2289 = vmatpush1.msra.mxu0 0.0
    %2290 = vmatprep.subr.mxu0 0.0
    %2291 = vmatpush1.msra.mxu0 0.0
    %2292 = vmatprep.subr.mxu0 0.0
    %2293 = vmatpush1.msra.mxu0 0.0
    %2294 = vmatprep.subr.mxu0 0.0
    %2295 = vmatpush1.msra.mxu0 0.0
    %2296 = vmatprep.subr.mxu0 0.0
    %2297 = vmatpush1.msra.mxu0 0.0
    %2298 = vmatprep.subr.mxu0 0.0
    %2299 = vmatpush1.msra.mxu0 0.0
    %2300 = vmatprep.subr.mxu0 0.0
    %2301 = vmatpush1.msra.mxu0 0.0
    %2302 = vmatprep.subr.mxu0 0.0
    %2303 = vmatpush1.msra.mxu0 0.0
    %2304 = vmatprep.subr.mxu0 0.0
    %2305 = vmatpush1.msra.mxu0 0.0
    %2306 = vmatprep.subr.mxu0 0.0
    %2307 = vmatpush1.msra.mxu0 0.0
    %2308 = vmatprep.subr.mxu0 0.0
    %2309 = vmatpush1.msra.mxu0 0.0
    %2310 = vmatprep.subr.mxu0 0.0
    %2311 = vmatpush1.msra.mxu0 0.0
    %2312 = vmatprep.subr.mxu0 0.0
    %2313 = vmatpush1.msra.mxu0 0.0
    %2314 = vmatprep.subr.mxu0 0.0
    %2315 = vmatpush1.msra.mxu0 %v2279
    %2316 = vmatprep.subr.mxu0 0.0
    %2317 = vmatpush2.msra.mxu0 0.0
    %2318 = vmatprep.subr.mxu0 0.0
    %2319 = vmatpush2.msra.mxu0 0.0
    %2320 = vmatprep.subr.mxu0 0.0
    %2321 = vmatpush2.msra.mxu0 0.0
    %2322 = vmatprep.subr.mxu0 0.0
    %2323 = vmatpush2.msra.mxu0 0.0
    %2324 = vmatprep.subr.mxu0 0.0
    %2325 = vmatpush2.msra.mxu0 0.0
    %2326 = vmatprep.subr.mxu0 0.0
    %2327 = vmatpush2.msra.mxu0 0.0
    %2328 = vmatprep.subr.mxu0 0.0
    %2329 = vmatpush2.msra.mxu0 0.0
    %2330 = vmatprep.subr.mxu0 0.0
    %2331 = vmatpush2.msra.mxu0 0.0
    %2332 = vmatprep.subr.mxu0 0.0
    %2333 = vmatpush2.msra.mxu0 0.0
    %2334 = vmatprep.subr.mxu0 0.0
    %2335 = vmatpush2.msra.mxu0 0.0
    %2336 = vmatprep.subr.mxu0 0.0
    %2337 = vmatpush2.msra.mxu0 0.0
    %2338 = vmatprep.subr.mxu0 0.0
    %2339 = vmatpush2.msra.mxu0 0.0
    %2340 = vmatprep.subr.mxu0 0.0
    %2341 = vmatpush2.msra.mxu0 0.0
    %2342 = vmatprep.subr.mxu0 0.0
    %2343 = vmatpush2.msra.mxu0 0.0
    %2344 = vmatprep.subr.mxu0 0.0
    %2345 = vmatpush2.msra.mxu0 0.0
    %2346 = vmatprep.subr.mxu0 0.0
    %2347 = vmatpush2.msra.mxu0 0.0
    %2348 = vmatprep.mubr.f32.mxu0 0.0
    %2349 = vmatmul.mubr.f32.gmra.mxu0 %v2282
    %v2350 = vpop.f32.mrf.mxu0
    %v2351 = vadd.f32 0.0, %v2350
    %v2352 = vpop.f32.mrf.mxu0
    %2353 = vdwg.mxu0
    %2354 = vrot.lane.b32.xlu0 %v2015, 112
    %v2355 = vpop.permute.xlu0 %2354
    %2356 = vrot.lane.b32.xlu0 %v2015, 80
    %v2357 = vpop.permute.xlu0 %2356
    %v2358 = vsel %vm197, %v2355, 0
    %v2360 = vsel %vm197, %v2357, 0
    %2362 = vmatprep.subr.mxu0 0.0
    %2363 = vmatpush1.xpose.msra.mxu0 0.0
    %2364 = vmatprep.subr.mxu0 0.0
    %2365 = vmatpush1.xpose.msra.mxu0 0.0
    %2366 = vmatprep.subr.mxu0 0.0
    %2367 = vmatpush1.xpose.msra.mxu0 0.0
    %2368 = vmatprep.subr.mxu0 0.0
    %2369 = vmatpush1.xpose.msra.mxu0 0.0
    %2370 = vmatprep.subr.mxu0 0.0
    %2371 = vmatpush1.xpose.msra.mxu0 0.0
    %2372 = vmatprep.subr.mxu0 0.0
    %2373 = vmatpush1.xpose.msra.mxu0 0.0
    %2374 = vmatprep.subr.mxu0 0.0
    %2375 = vmatpush1.xpose.msra.mxu0 0.0
    %2376 = vmatprep.subr.mxu0 0.0
    %2377 = vmatpush1.xpose.msra.mxu0 0.0
    %2378 = vmatprep.subr.mxu0 0.0
    %2379 = vmatpush1.xpose.msra.mxu0 0.0
    %2380 = vmatprep.subr.mxu0 0.0
    %2381 = vmatpush1.xpose.msra.mxu0 0.0
    %2382 = vmatprep.subr.mxu0 0.0
    %2383 = vmatpush1.xpose.msra.mxu0 0.0
    %2384 = vmatprep.subr.mxu0 0.0
    %2385 = vmatpush1.xpose.msra.mxu0 0.0
    %2386 = vmatprep.subr.mxu0 0.0
    %2387 = vmatpush1.xpose.msra.mxu0 0.0
    %2388 = vmatprep.subr.mxu0 0.0
    %2389 = vmatpush1.xpose.msra.mxu0 0.0
    %2390 = vmatprep.subr.mxu0 0.0
    %2391 = vmatpush1.xpose.msra.mxu0 0.0
    %2392 = vmatprep.subr.mxu0 0.0
    %2393 = vmatpush1.xpose.msra.mxu0 %v2360
    %2394 = vmatprep.subr.mxu0 0.0
    %2395 = vmatpush2.xpose.msra.mxu0 0.0
    %2396 = vmatprep.subr.mxu0 0.0
    %2397 = vmatpush2.xpose.msra.mxu0 0.0
    %2398 = vmatprep.subr.mxu0 0.0
    %2399 = vmatpush2.xpose.msra.mxu0 0.0
    %2400 = vmatprep.subr.mxu0 0.0
    %2401 = vmatpush2.xpose.msra.mxu0 0.0
    %2402 = vmatprep.subr.mxu0 0.0
    %2403 = vmatpush2.xpose.msra.mxu0 0.0
    %2404 = vmatprep.subr.mxu0 0.0
    %2405 = vmatpush2.xpose.msra.mxu0 0.0
    %2406 = vmatprep.subr.mxu0 0.0
    %2407 = vmatpush2.xpose.msra.mxu0 0.0
    %2408 = vmatprep.subr.mxu0 0.0
    %2409 = vmatpush2.xpose.msra.mxu0 0.0
    %2410 = vmatprep.subr.mxu0 0.0
    %2411 = vmatpush2.xpose.msra.mxu0 0.0
    %2412 = vmatprep.subr.mxu0 0.0
    %2413 = vmatpush2.xpose.msra.mxu0 0.0
    %2414 = vmatprep.subr.mxu0 0.0
    %2415 = vmatpush2.xpose.msra.mxu0 0.0
    %2416 = vmatprep.subr.mxu0 0.0
    %2417 = vmatpush2.xpose.msra.mxu0 0.0
    %2418 = vmatprep.subr.mxu0 0.0
    %2419 = vmatpush2.xpose.msra.mxu0 0.0
    %2420 = vmatprep.subr.mxu0 0.0
    %2421 = vmatpush2.xpose.msra.mxu0 0.0
    %2422 = vmatprep.subr.mxu0 0.0
    %2423 = vmatpush2.xpose.msra.mxu0 0.0
    %2424 = vmatprep.subr.mxu0 0.0
    %2425 = vmatpush2.xpose.msra.mxu0 0.0
    %2426 = vmatprep.mubr.f32.mxu0 0.0
    %2427 = vmatmul.mubr.f32.gmra.mxu0 %v2358
    %v2428 = vpop.f32.mrf.mxu0
    %v2429 = vadd.f32 0.0, %v2428
    %v2430 = vpop.f32.mrf.mxu0
    %2431 = vdwg.mxu0
    %v2432 = vmul.f32 %v2429, 0.35355338
    %v2433 = vsel %vm197, %v2432, -inf
    %2434 = vmax.xlane.f32.xlu0 %v2433
    %v2435 = vpop.xlane.xlu0 %2434
    %v2436 = vsub.f32 %v2432, %v2435
    %v2437 = vmul.f32 %v2436, 1.442695
    %v2438 = vpow.pop %v2437
    %v2439 = vsel %vm197, %v2438, 0.0
    %2440 = vadd.xlane.f32.xlu0 %v2439
    %v2441 = vpop.xlane.xlu0 %2440
    %v2442 = vrcp.pop %v2441
    %v2443 = vmul.f32 %v2438, %v2442
    %2444 = vrot.lane.b32.xlu0 %v2015, 48
    %v2445 = vpop.permute.xlu0 %2444
    %v2448 = vsel %vm197, %v2443, 0
    %2450 = vmatprep.subr.mxu0 0.0
    %2451 = vmatpush1.msra.mxu0 0.0
    %2452 = vmatprep.subr.mxu0 0.0
    %2453 = vmatpush1.msra.mxu0 0.0
    %2454 = vmatprep.subr.mxu0 0.0
    %2455 = vmatpush1.msra.mxu0 0.0
    %2456 = vmatprep.subr.mxu0 0.0
    %2457 = vmatpush1.msra.mxu0 0.0
    %2458 = vmatprep.subr.mxu0 0.0
    %2459 = vmatpush1.msra.mxu0 0.0
    %2460 = vmatprep.subr.mxu0 0.0
    %2461 = vmatpush1.msra.mxu0 0.0
    %2462 = vmatprep.subr.mxu0 0.0
    %2463 = vmatpush1.msra.mxu0 0.0
    %2464 = vmatprep.subr.mxu0 0.0
    %2465 = vmatpush1.msra.mxu0 0.0
    %2466 = vmatprep.subr.mxu0 0.0
    %2467 = vmatpush1.msra.mxu0 0.0
    %2468 = vmatprep.subr.mxu0 0.0
    %2469 = vmatpush1.msra.mxu0 0.0
    %2470 = vmatprep.subr.mxu0 0.0
    %2471 = vmatpush1.msra.mxu0 0.0
    %2472 = vmatprep.subr.mxu0 0.0
    %2473 = vmatpush1.msra.mxu0 0.0
    %2474 = vmatprep.subr.mxu0 0.0
    %2475 = vmatpush1.msra.mxu0 0.0
    %2476 = vmatprep.subr.mxu0 0.0
    %2477 = vmatpush1.msra.mxu0 0.0
    %2478 = vmatprep.subr.mxu0 0.0
    %2479 = vmatpush1.msra.mxu0 0.0
    %2480 = vmatprep.subr.mxu0 0.0
    %2481 = vmatpush1.msra.mxu0 %v2445
    %2482 = vmatprep.subr.mxu0 0.0
    %2483 = vmatpush2.msra.mxu0 0.0
    %2484 = vmatprep.subr.mxu0 0.0
    %2485 = vmatpush2.msra.mxu0 0.0
    %2486 = vmatprep.subr.mxu0 0.0
    %2487 = vmatpush2.msra.mxu0 0.0
    %2488 = vmatprep.subr.mxu0 0.0
    %2489 = vmatpush2.msra.mxu0 0.0
    %2490 = vmatprep.subr.mxu0 0.0
    %2491 = vmatpush2.msra.mxu0 0.0
    %2492 = vmatprep.subr.mxu0 0.0
    %2493 = vmatpush2.msra.mxu0 0.0
    %2494 = vmatprep.subr.mxu0 0.0
    %2495 = vmatpush2.msra.mxu0 0.0
    %2496 = vmatprep.subr.mxu0 0.0
    %2497 = vmatpush2.msra.mxu0 0.0
    %2498 = vmatprep.subr.mxu0 0.0
    %2499 = vmatpush2.msra.mxu0 0.0
    %2500 = vmatprep.subr.mxu0 0.0
    %2501 = vmatpush2.msra.mxu0 0.0
    %2502 = vmatprep.subr.mxu0 0.0
    %2503 = vmatpush2.msra.mxu0 0.0
    %2504 = vmatprep.subr.mxu0 0.0
    %2505 = vmatpush2.msra.mxu0 0.0
    %2506 = vmatprep.subr.mxu0 0.0
    %2507 = vmatpush2.msra.mxu0 0.0
    %2508 = vmatprep.subr.mxu0 0.0
    %2509 = vmatpush2.msra.mxu0 0.0
    %2510 = vmatprep.subr.mxu0 0.0
    %2511 = vmatpush2.msra.mxu0 0.0
    %2512 = vmatprep.subr.mxu0 0.0
    %2513 = vmatpush2.msra.mxu0 0.0
    %2514 = vmatprep.mubr.f32.mxu0 0.0
    %2515 = vmatmul.mubr.f32.gmra.mxu0 %v2448
    %v2516 = vpop.f32.mrf.mxu0
    %v2517 = vadd.f32 0.0, %v2516
    %v2518 = vpop.f32.mrf.mxu0
    %2519 = vdwg.mxu0
    %2520 = vrot.lane.b32.xlu0 %v2015, 104
    %v2521 = vpop.permute.xlu0 %2520
    %2522 = vrot.lane.b32.xlu0 %v2015, 72
    %v2523 = vpop.permute.xlu0 %2522
    %v2524 = vsel %vm197, %v2521, 0
    %v2526 = vsel %vm197, %v2523, 0
    %2528 = vmatprep.subr.mxu0 0.0
    %2529 = vmatpush1.xpose.msra.mxu0 0.0
    %2530 = vmatprep.subr.mxu0 0.0
    %2531 = vmatpush1.xpose.msra.mxu0 0.0
    %2532 = vmatprep.subr.mxu0 0.0
    %2533 = vmatpush1.xpose.msra.mxu0 0.0
    %2534 = vmatprep.subr.mxu0 0.0
    %2535 = vmatpush1.xpose.msra.mxu0 0.0
    %2536 = vmatprep.subr.mxu0 0.0
    %2537 = vmatpush1.xpose.msra.mxu0 0.0
    %2538 = vmatprep.subr.mxu0 0.0
    %2539 = vmatpush1.xpose.msra.mxu0 0.0
    %2540 = vmatprep.subr.mxu0 0.0
    %2541 = vmatpush1.xpose.msra.mxu0 0.0
    %2542 = vmatprep.subr.mxu0 0.0
    %2543 = vmatpush1.xpose.msra.mxu0 0.0
    %2544 = vmatprep.subr.mxu0 0.0
    %2545 = vmatpush1.xpose.msra.mxu0 0.0
    %2546 = vmatprep.subr.mxu0 0.0
    %2547 = vmatpush1.xpose.msra.mxu0 0.0
    %2548 = vmatprep.subr.mxu0 0.0
    %2549 = vmatpush1.xpose.msra.mxu0 0.0
    %2550 = vmatprep.subr.mxu0 0.0
    %2551 = vmatpush1.xpose.msra.mxu0 0.0
    %2552 = vmatprep.subr.mxu0 0.0
    %2553 = vmatpush1.xpose.msra.mxu0 0.0
    %2554 = vmatprep.subr.mxu0 0.0
    %2555 = vmatpush1.xpose.msra.mxu0 0.0
    %2556 = vmatprep.subr.mxu0 0.0
    %2557 = vmatpush1.xpose.msra.mxu0 0.0
    %2558 = vmatprep.subr.mxu0 0.0
    %2559 = vmatpush1.xpose.msra.mxu0 %v2526
    %2560 = vmatprep.subr.mxu0 0.0
    %2561 = vmatpush2.xpose.msra.mxu0 0.0
    %2562 = vmatprep.subr.mxu0 0.0
    %2563 = vmatpush2.xpose.msra.mxu0 0.0
    %2564 = vmatprep.subr.mxu0 0.0
    %2565 = vmatpush2.xpose.msra.mxu0 0.0
    %2566 = vmatprep.subr.mxu0 0.0
    %2567 = vmatpush2.xpose.msra.mxu0 0.0
    %2568 = vmatprep.subr.mxu0 0.0
    %2569 = vmatpush2.xpose.msra.mxu0 0.0
    %2570 = vmatprep.subr.mxu0 0.0
    %2571 = vmatpush2.xpose.msra.mxu0 0.0
    %2572 = vmatprep.subr.mxu0 0.0
    %2573 = vmatpush2.xpose.msra.mxu0 0.0
    %2574 = vmatprep.subr.mxu0 0.0
    %2575 = vmatpush2.xpose.msra.mxu0 0.0
    %2576 = vmatprep.subr.mxu0 0.0
    %2577 = vmatpush2.xpose.msra.mxu0 0.0
    %2578 = vmatprep.subr.mxu0 0.0
    %2579 = vmatpush2.xpose.msra.mxu0 0.0
    %2580 = vmatprep.subr.mxu0 0.0
    %2581 = vmatpush2.xpose.msra.mxu0 0.0
    %2582 = vmatprep.subr.mxu0 0.0
    %2583 = vmatpush2.xpose.msra.mxu0 0.0
    %2584 = vmatprep.subr.mxu0 0.0
    %2585 = vmatpush2.xpose.msra.mxu0 0.0
    %2586 = vmatprep.subr.mxu0 0.0
    %2587 = vmatpush2.xpose.msra.mxu0 0.0
    %2588 = vmatprep.subr.mxu0 0.0
    %2589 = vmatpush2.xpose.msra.mxu0 0.0
    %2590 = vmatprep.subr.mxu0 0.0
    %2591 = vmatpush2.xpose.msra.mxu0 0.0
    %2592 = vmatprep.mubr.f32.mxu0 0.0
    %2593 = vmatmul.mubr.f32.gmra.mxu0 %v2524
    %v2594 = vpop.f32.mrf.mxu0
    %v2595 = vadd.f32 0.0, %v2594
    %v2596 = vpop.f32.mrf.mxu0
    %2597 = vdwg.mxu0
    %v2598 = vmul.f32 %v2595, 0.35355338
    %v2599 = vsel %vm197, %v2598, -inf
    %2600 = vmax.xlane.f32.xlu0 %v2599
    %v2601 = vpop.xlane.xlu0 %2600
    %v2602 = vsub.f32 %v2598, %v2601
    %v2603 = vmul.f32 %v2602, 1.442695
    %v2604 = vpow.pop %v2603
    %v2605 = vsel %vm197, %v2604, 0.0
    %2606 = vadd.xlane.f32.xlu0 %v2605
    %v2607 = vpop.xlane.xlu0 %2606
    %v2608 = vrcp.pop %v2607
    %v2609 = vmul.f32 %v2604, %v2608
    %2610 = vrot.lane.b32.xlu0 %v2015, 40
    %v2611 = vpop.permute.xlu0 %2610
    %v2614 = vsel %vm197, %v2609, 0
    %2616 = vmatprep.subr.mxu0 0.0
    %2617 = vmatpush1.msra.mxu0 0.0
    %2618 = vmatprep.subr.mxu0 0.0
    %2619 = vmatpush1.msra.mxu0 0.0
    %2620 = vmatprep.subr.mxu0 0.0
    %2621 = vmatpush1.msra.mxu0 0.0
    %2622 = vmatprep.subr.mxu0 0.0
    %2623 = vmatpush1.msra.mxu0 0.0
    %2624 = vmatprep.subr.mxu0 0.0
    %2625 = vmatpush1.msra.mxu0 0.0
    %2626 = vmatprep.subr.mxu0 0.0
    %2627 = vmatpush1.msra.mxu0 0.0
    %2628 = vmatprep.subr.mxu0 0.0
    %2629 = vmatpush1.msra.mxu0 0.0
    %2630 = vmatprep.subr.mxu0 0.0
    %2631 = vmatpush1.msra.mxu0 0.0
    %2632 = vmatprep.subr.mxu0 0.0
    %2633 = vmatpush1.msra.mxu0 0.0
    %2634 = vmatprep.subr.mxu0 0.0
    %2635 = vmatpush1.msra.mxu0 0.0
    %2636 = vmatprep.subr.mxu0 0.0
    %2637 = vmatpush1.msra.mxu0 0.0
    %2638 = vmatprep.subr.mxu0 0.0
    %2639 = vmatpush1.msra.mxu0 0.0
    %2640 = vmatprep.subr.mxu0 0.0
    %2641 = vmatpush1.msra.mxu0 0.0
    %2642 = vmatprep.subr.mxu0 0.0
    %2643 = vmatpush1.msra.mxu0 0.0
    %2644 = vmatprep.subr.mxu0 0.0
    %2645 = vmatpush1.msra.mxu0 0.0
    %2646 = vmatprep.subr.mxu0 0.0
    %2647 = vmatpush1.msra.mxu0 %v2611
    %2648 = vmatprep.subr.mxu0 0.0
    %2649 = vmatpush2.msra.mxu0 0.0
    %2650 = vmatprep.subr.mxu0 0.0
    %2651 = vmatpush2.msra.mxu0 0.0
    %2652 = vmatprep.subr.mxu0 0.0
    %2653 = vmatpush2.msra.mxu0 0.0
    %2654 = vmatprep.subr.mxu0 0.0
    %2655 = vmatpush2.msra.mxu0 0.0
    %2656 = vmatprep.subr.mxu0 0.0
    %2657 = vmatpush2.msra.mxu0 0.0
    %2658 = vmatprep.subr.mxu0 0.0
    %2659 = vmatpush2.msra.mxu0 0.0
    %2660 = vmatprep.subr.mxu0 0.0
    %2661 = vmatpush2.msra.mxu0 0.0
    %2662 = vmatprep.subr.mxu0 0.0
    %2663 = vmatpush2.msra.mxu0 0.0
    %2664 = vmatprep.subr.mxu0 0.0
    %2665 = vmatpush2.msra.mxu0 0.0
    %2666 = vmatprep.subr.mxu0 0.0
    %2667 = vmatpush2.msra.mxu0 0.0
    %2668 = vmatprep.subr.mxu0 0.0
    %2669 = vmatpush2.msra.mxu0 0.0
    %2670 = vmatprep.subr.mxu0 0.0
    %2671 = vmatpush2.msra.mxu0 0.0
    %2672 = vmatprep.subr.mxu0 0.0
    %2673 = vmatpush2.msra.mxu0 0.0
    %2674 = vmatprep.subr.mxu0 0.0
    %2675 = vmatpush2.msra.mxu0 0.0
    %2676 = vmatprep.subr.mxu0 0.0
    %2677 = vmatpush2.msra.mxu0 0.0
    %2678 = vmatprep.subr.mxu0 0.0
    %2679 = vmatpush2.msra.mxu0 0.0
    %2680 = vmatprep.mubr.f32.mxu0 0.0
    %2681 = vmatmul.mubr.f32.gmra.mxu0 %v2614
    %v2682 = vpop.f32.mrf.mxu0
    %v2683 = vadd.f32 0.0, %v2682
    %v2684 = vpop.f32.mrf.mxu0
    %2685 = vdwg.mxu0
    %2687 = vrot.lane.b32.xlu0 %v2351, 8
    %v2688 = vpop.permute.xlu0 %2687
    %2691 = vrot.lane.b32.xlu0 %v2517, 16
    %v2692 = vpop.permute.xlu0 %2691
    %2695 = vrot.lane.b32.xlu0 %v2683, 24
    %v2696 = vpop.permute.xlu0 %2695
    %v2698 = vsel %vm197, %v2185, %v2688
    %v2699 = vsel %vm871, %v2698, %v2692
    %v2700 = vsel %vm873, %v2699, %v2696
    %2702 = vrot.lane.b32.xlu0 %v2020, 96
    %v2703 = vpop.permute.xlu0 %2702
    %v2704 = vsel %vm197, %v2020, 0
    %v2706 = vsel %vm197, %v2703, 0
    %2708 = vmatprep.subr.mxu0 0.0
    %2709 = vmatpush1.xpose.msra.mxu0 0.0
    %2710 = vmatprep.subr.mxu0 0.0
    %2711 = vmatpush1.xpose.msra.mxu0 0.0
    %2712 = vmatprep.subr.mxu0 0.0
    %2713 = vmatpush1.xpose.msra.mxu0 0.0
    %2714 = vmatprep.subr.mxu0 0.0
    %2715 = vmatpush1.xpose.msra.mxu0 0.0
    %2716 = vmatprep.subr.mxu0 0.0
    %2717 = vmatpush1.xpose.msra.mxu0 0.0
    %2718 = vmatprep.subr.mxu0 0.0
    %2719 = vmatpush1.xpose.msra.mxu0 0.0
    %2720 = vmatprep.subr.mxu0 0.0
    %2721 = vmatpush1.xpose.msra.mxu0 0.0
    %2722 = vmatprep.subr.mxu0 0.0
    %2723 = vmatpush1.xpose.msra.mxu0 0.0
    %2724 = vmatprep.subr.mxu0 0.0
    %2725 = vmatpush1.xpose.msra.mxu0 0.0
    %2726 = vmatprep.subr.mxu0 0.0
    %2727 = vmatpush1.xpose.msra.mxu0 0.0
    %2728 = vmatprep.subr.mxu0 0.0
    %2729 = vmatpush1.xpose.msra.mxu0 0.0
    %2730 = vmatprep.subr.mxu0 0.0
    %2731 = vmatpush1.xpose.msra.mxu0 0.0
    %2732 = vmatprep.subr.mxu0 0.0
    %2733 = vmatpush1.xpose.msra.mxu0 0.0
    %2734 = vmatprep.subr.mxu0 0.0
    %2735 = vmatpush1.xpose.msra.mxu0 0.0
    %2736 = vmatprep.subr.mxu0 0.0
    %2737 = vmatpush1.xpose.msra.mxu0 0.0
    %2738 = vmatprep.subr.mxu0 0.0
    %2739 = vmatpush1.xpose.msra.mxu0 %v2706
    %2740 = vmatprep.subr.mxu0 0.0
    %2741 = vmatpush2.xpose.msra.mxu0 0.0
    %2742 = vmatprep.subr.mxu0 0.0
    %2743 = vmatpush2.xpose.msra.mxu0 0.0
    %2744 = vmatprep.subr.mxu0 0.0
    %2745 = vmatpush2.xpose.msra.mxu0 0.0
    %2746 = vmatprep.subr.mxu0 0.0
    %2747 = vmatpush2.xpose.msra.mxu0 0.0
    %2748 = vmatprep.subr.mxu0 0.0
    %2749 = vmatpush2.xpose.msra.mxu0 0.0
    %2750 = vmatprep.subr.mxu0 0.0
    %2751 = vmatpush2.xpose.msra.mxu0 0.0
    %2752 = vmatprep.subr.mxu0 0.0
    %2753 = vmatpush2.xpose.msra.mxu0 0.0
    %2754 = vmatprep.subr.mxu0 0.0
    %2755 = vmatpush2.xpose.msra.mxu0 0.0
    %2756 = vmatprep.subr.mxu0 0.0
    %2757 = vmatpush2.xpose.msra.mxu0 0.0
    %2758 = vmatprep.subr.mxu0 0.0
    %2759 = vmatpush2.xpose.msra.mxu0 0.0
    %2760 = vmatprep.subr.mxu0 0.0
    %2761 = vmatpush2.xpose.msra.mxu0 0.0
    %2762 = vmatprep.subr.mxu0 0.0
    %2763 = vmatpush2.xpose.msra.mxu0 0.0
    %2764 = vmatprep.subr.mxu0 0.0
    %2765 = vmatpush2.xpose.msra.mxu0 0.0
    %2766 = vmatprep.subr.mxu0 0.0
    %2767 = vmatpush2.xpose.msra.mxu0 0.0
    %2768 = vmatprep.subr.mxu0 0.0
    %2769 = vmatpush2.xpose.msra.mxu0 0.0
    %2770 = vmatprep.subr.mxu0 0.0
    %2771 = vmatpush2.xpose.msra.mxu0 0.0
    %2772 = vmatprep.mubr.f32.mxu0 0.0
    %2773 = vmatmul.mubr.f32.gmra.mxu0 %v2704
    %v2774 = vpop.f32.mrf.mxu0
    %v2775 = vadd.f32 0.0, %v2774
    %v2776 = vpop.f32.mrf.mxu0
    %2777 = vdwg.mxu0
    %v2778 = vmul.f32 %v2775, 0.35355338
    %v2779 = vsel %vm197, %v2778, -inf
    %2780 = vmax.xlane.f32.xlu0 %v2779
    %v2781 = vpop.xlane.xlu0 %2780
    %v2782 = vsub.f32 %v2778, %v2781
    %v2783 = vmul.f32 %v2782, 1.442695
    %v2784 = vpow.pop %v2783
    %v2785 = vsel %vm197, %v2784, 0.0
    %2786 = vadd.xlane.f32.xlu0 %v2785
    %v2787 = vpop.xlane.xlu0 %2786
    %v2788 = vrcp.pop %v2787
    %v2789 = vmul.f32 %v2784, %v2788
    %2790 = vrot.lane.b32.xlu0 %v2020, 64
    %v2791 = vpop.permute.xlu0 %2790
    %v2794 = vsel %vm197, %v2789, 0
    %2796 = vmatprep.subr.mxu0 0.0
    %2797 = vmatpush1.msra.mxu0 0.0
    %2798 = vmatprep.subr.mxu0 0.0
    %2799 = vmatpush1.msra.mxu0 0.0
    %2800 = vmatprep.subr.mxu0 0.0
    %2801 = vmatpush1.msra.mxu0 0.0
    %2802 = vmatprep.subr.mxu0 0.0
    %2803 = vmatpush1.msra.mxu0 0.0
    %2804 = vmatprep.subr.mxu0 0.0
    %2805 = vmatpush1.msra.mxu0 0.0
    %2806 = vmatprep.subr.mxu0 0.0
    %2807 = vmatpush1.msra.mxu0 0.0
    %2808 = vmatprep.subr.mxu0 0.0
    %2809 = vmatpush1.msra.mxu0 0.0
    %2810 = vmatprep.subr.mxu0 0.0
    %2811 = vmatpush1.msra.mxu0 0.0
    %2812 = vmatprep.subr.mxu0 0.0
    %2813 = vmatpush1.msra.mxu0 0.0
    %2814 = vmatprep.subr.mxu0 0.0
    %2815 = vmatpush1.msra.mxu0 0.0
    %2816 = vmatprep.subr.mxu0 0.0
    %2817 = vmatpush1.msra.mxu0 0.0
    %2818 = vmatprep.subr.mxu0 0.0
    %2819 = vmatpush1.msra.mxu0 0.0
    %2820 = vmatprep.subr.mxu0 0.0
    %2821 = vmatpush1.msra.mxu0 0.0
    %2822 = vmatprep.subr.mxu0 0.0
    %2823 = vmatpush1.msra.mxu0 0.0
    %2824 = vmatprep.subr.mxu0 0.0
    %2825 = vmatpush1.msra.mxu0 0.0
    %2826 = vmatprep.subr.mxu0 0.0
    %2827 = vmatpush1.msra.mxu0 %v2791
    %2828 = vmatprep.subr.mxu0 0.0
    %2829 = vmatpush2.msra.mxu0 0.0
    %2830 = vmatprep.subr.mxu0 0.0
    %2831 = vmatpush2.msra.mxu0 0.0
    %2832 = vmatprep.subr.mxu0 0.0
    %2833 = vmatpush2.msra.mxu0 0.0
    %2834 = vmatprep.subr.mxu0 0.0
    %2835 = vmatpush2.msra.mxu0 0.0
    %2836 = vmatprep.subr.mxu0 0.0
    %2837 = vmatpush2.msra.mxu0 0.0
    %2838 = vmatprep.subr.mxu0 0.0
    %2839 = vmatpush2.msra.mxu0 0.0
    %2840 = vmatprep.subr.mxu0 0.0
    %2841 = vmatpush2.msra.mxu0 0.0
    %2842 = vmatprep.subr.mxu0 0.0
    %2843 = vmatpush2.msra.mxu0 0.0
    %2844 = vmatprep.subr.mxu0 0.0
    %2845 = vmatpush2.msra.mxu0 0.0
    %2846 = vmatprep.subr.mxu0 0.0
    %2847 = vmatpush2.msra.mxu0 0.0
    %2848 = vmatprep.subr.mxu0 0.0
    %2849 = vmatpush2.msra.mxu0 0.0
    %2850 = vmatprep.subr.mxu0 0.0
    %2851 = vmatpush2.msra.mxu0 0.0
    %2852 = vmatprep.subr.mxu0 0.0
    %2853 = vmatpush2.msra.mxu0 0.0
    %2854 = vmatprep.subr.mxu0 0.0
    %2855 = vmatpush2.msra.mxu0 0.0
    %2856 = vmatprep.subr.mxu0 0.0
    %2857 = vmatpush2.msra.mxu0 0.0
    %2858 = vmatprep.subr.mxu0 0.0
    %2859 = vmatpush2.msra.mxu0 0.0
    %2860 = vmatprep.mubr.f32.mxu0 0.0
    %2861 = vmatmul.mubr.f32.gmra.mxu0 %v2794
    %v2862 = vpop.f32.mrf.mxu0
    %v2863 = vadd.f32 0.0, %v2862
    %v2864 = vpop.f32.mrf.mxu0
    %2865 = vdwg.mxu0
    %2866 = vrot.lane.b32.xlu0 %v2020, 120
    %v2867 = vpop.permute.xlu0 %2866
    %2868 = vrot.lane.b32.xlu0 %v2020, 88
    %v2869 = vpop.permute.xlu0 %2868
    %v2870 = vsel %vm197, %v2867, 0
    %v2872 = vsel %vm197, %v2869, 0
    %2874 = vmatprep.subr.mxu0 0.0
    %2875 = vmatpush1.xpose.msra.mxu0 0.0
    %2876 = vmatprep.subr.mxu0 0.0
    %2877 = vmatpush1.xpose.msra.mxu0 0.0
    %2878 = vmatprep.subr.mxu0 0.0
    %2879 = vmatpush1.xpose.msra.mxu0 0.0
    %2880 = vmatprep.subr.mxu0 0.0
    %2881 = vmatpush1.xpose.msra.mxu0 0.0
    %2882 = vmatprep.subr.mxu0 0.0
    %2883 = vmatpush1.xpose.msra.mxu0 0.0
    %2884 = vmatprep.subr.mxu0 0.0
    %2885 = vmatpush1.xpose.msra.mxu0 0.0
    %2886 = vmatprep.subr.mxu0 0.0
    %2887 = vmatpush1.xpose.msra.mxu0 0.0
    %2888 = vmatprep.subr.mxu0 0.0
    %2889 = vmatpush1.xpose.msra.mxu0 0.0
    %2890 = vmatprep.subr.mxu0 0.0
    %2891 = vmatpush1.xpose.msra.mxu0 0.0
    %2892 = vmatprep.subr.mxu0 0.0
    %2893 = vmatpush1.xpose.msra.mxu0 0.0
    %2894 = vmatprep.subr.mxu0 0.0
    %2895 = vmatpush1.xpose.msra.mxu0 0.0
    %2896 = vmatprep.subr.mxu0 0.0
    %2897 = vmatpush1.xpose.msra.mxu0 0.0
    %2898 = vmatprep.subr.mxu0 0.0
    %2899 = vmatpush1.xpose.msra.mxu0 0.0
    %2900 = vmatprep.subr.mxu0 0.0
    %2901 = vmatpush1.xpose.msra.mxu0 0.0
    %2902 = vmatprep.subr.mxu0 0.0
    %2903 = vmatpush1.xpose.msra.mxu0 0.0
    %2904 = vmatprep.subr.mxu0 0.0
    %2905 = vmatpush1.xpose.msra.mxu0 %v2872
    %2906 = vmatprep.subr.mxu0 0.0
    %2907 = vmatpush2.xpose.msra.mxu0 0.0
    %2908 = vmatprep.subr.mxu0 0.0
    %2909 = vmatpush2.xpose.msra.mxu0 0.0
    %2910 = vmatprep.subr.mxu0 0.0
    %2911 = vmatpush2.xpose.msra.mxu0 0.0
    %2912 = vmatprep.subr.mxu0 0.0
    %2913 = vmatpush2.xpose.msra.mxu0 0.0
    %2914 = vmatprep.subr.mxu0 0.0
    %2915 = vmatpush2.xpose.msra.mxu0 0.0
    %2916 = vmatprep.subr.mxu0 0.0
    %2917 = vmatpush2.xpose.msra.mxu0 0.0
    %2918 = vmatprep.subr.mxu0 0.0
    %2919 = vmatpush2.xpose.msra.mxu0 0.0
    %2920 = vmatprep.subr.mxu0 0.0
    %2921 = vmatpush2.xpose.msra.mxu0 0.0
    %2922 = vmatprep.subr.mxu0 0.0
    %2923 = vmatpush2.xpose.msra.mxu0 0.0
    %2924 = vmatprep.subr.mxu0 0.0
    %2925 = vmatpush2.xpose.msra.mxu0 0.0
    %2926 = vmatprep.subr.mxu0 0.0
    %2927 = vmatpush2.xpose.msra.mxu0 0.0
    %2928 = vmatprep.subr.mxu0 0.0
    %2929 = vmatpush2.xpose.msra.mxu0 0.0
    %2930 = vmatprep.subr.mxu0 0.0
    %2931 = vmatpush2.xpose.msra.mxu0 0.0
    %2932 = vmatprep.subr.mxu0 0.0
    %2933 = vmatpush2.xpose.msra.mxu0 0.0
    %2934 = vmatprep.subr.mxu0 0.0
    %2935 = vmatpush2.xpose.msra.mxu0 0.0
    %2936 = vmatprep.subr.mxu0 0.0
    %2937 = vmatpush2.xpose.msra.mxu0 0.0
    %2938 = vmatprep.mubr.f32.mxu0 0.0
    %2939 = vmatmul.mubr.f32.gmra.mxu0 %v2870
    %v2940 = vpop.f32.mrf.mxu0
    %v2941 = vadd.f32 0.0, %v2940
    %v2942 = vpop.f32.mrf.mxu0
    %2943 = vdwg.mxu0
    %v2944 = vmul.f32 %v2941, 0.35355338
    %v2945 = vsel %vm197, %v2944, -inf
    %2946 = vmax.xlane.f32.xlu0 %v2945
    %v2947 = vpop.xlane.xlu0 %2946
    %v2948 = vsub.f32 %v2944, %v2947
    %v2949 = vmul.f32 %v2948, 1.442695
    %v2950 = vpow.pop %v2949
    %v2951 = vsel %vm197, %v2950, 0.0
    %2952 = vadd.xlane.f32.xlu0 %v2951
    %v2953 = vpop.xlane.xlu0 %2952
    %v2954 = vrcp.pop %v2953
    %v2955 = vmul.f32 %v2950, %v2954
    %2956 = vrot.lane.b32.xlu0 %v2020, 56
    %v2957 = vpop.permute.xlu0 %2956
    %v2960 = vsel %vm197, %v2955, 0
    %2962 = vmatprep.subr.mxu0 0.0
    %2963 = vmatpush1.msra.mxu0 0.0
    %2964 = vmatprep.subr.mxu0 0.0
    %2965 = vmatpush1.msra.mxu0 0.0
    %2966 = vmatprep.subr.mxu0 0.0
    %2967 = vmatpush1.msra.mxu0 0.0
    %2968 = vmatprep.subr.mxu0 0.0
    %2969 = vmatpush1.msra.mxu0 0.0
    %2970 = vmatprep.subr.mxu0 0.0
    %2971 = vmatpush1.msra.mxu0 0.0
    %2972 = vmatprep.subr.mxu0 0.0
    %2973 = vmatpush1.msra.mxu0 0.0
    %2974 = vmatprep.subr.mxu0 0.0
    %2975 = vmatpush1.msra.mxu0 0.0
    %2976 = vmatprep.subr.mxu0 0.0
    %2977 = vmatpush1.msra.mxu0 0.0
    %2978 = vmatprep.subr.mxu0 0.0
    %2979 = vmatpush1.msra.mxu0 0.0
    %2980 = vmatprep.subr.mxu0 0.0
    %2981 = vmatpush1.msra.mxu0 0.0
    %2982 = vmatprep.subr.mxu0 0.0
    %2983 = vmatpush1.msra.mxu0 0.0
    %2984 = vmatprep.subr.mxu0 0.0
    %2985 = vmatpush1.msra.mxu0 0.0
    %2986 = vmatprep.subr.mxu0 0.0
    %2987 = vmatpush1.msra.mxu0 0.0
    %2988 = vmatprep.subr.mxu0 0.0
    %2989 = vmatpush1.msra.mxu0 0.0
    %2990 = vmatprep.subr.mxu0 0.0
    %2991 = vmatpush1.msra.mxu0 0.0
    %2992 = vmatprep.subr.mxu0 0.0
    %2993 = vmatpush1.msra.mxu0 %v2957
    %2994 = vmatprep.subr.mxu0 0.0
    %2995 = vmatpush2.msra.mxu0 0.0
    %2996 = vmatprep.subr.mxu0 0.0
    %2997 = vmatpush2.msra.mxu0 0.0
    %2998 = vmatprep.subr.mxu0 0.0
    %2999 = vmatpush2.msra.mxu0 0.0
    %3000 = vmatprep.subr.mxu0 0.0
    %3001 = vmatpush2.msra.mxu0 0.0
    %3002 = vmatprep.subr.mxu0 0.0
    %3003 = vmatpush2.msra.mxu0 0.0
    %3004 = vmatprep.subr.mxu0 0.0
    %3005 = vmatpush2.msra.mxu0 0.0
    %3006 = vmatprep.subr.mxu0 0.0
    %3007 = vmatpush2.msra.mxu0 0.0
    %3008 = vmatprep.subr.mxu0 0.0
    %3009 = vmatpush2.msra.mxu0 0.0
    %3010 = vmatprep.subr.mxu0 0.0
    %3011 = vmatpush2.msra.mxu0 0.0
    %3012 = vmatprep.subr.mxu0 0.0
    %3013 = vmatpush2.msra.mxu0 0.0
    %3014 = vmatprep.subr.mxu0 0.0
    %3015 = vmatpush2.msra.mxu0 0.0
    %3016 = vmatprep.subr.mxu0 0.0
    %3017 = vmatpush2.msra.mxu0 0.0
    %3018 = vmatprep.subr.mxu0 0.0
    %3019 = vmatpush2.msra.mxu0 0.0
    %3020 = vmatprep.subr.mxu0 0.0
    %3021 = vmatpush2.msra.mxu0 0.0
    %3022 = vmatprep.subr.mxu0 0.0
    %3023 = vmatpush2.msra.mxu0 0.0
    %3024 = vmatprep.subr.mxu0 0.0
    %3025 = vmatpush2.msra.mxu0 0.0
    %3026 = vmatprep.mubr.f32.mxu0 0.0
    %3027 = vmatmul.mubr.f32.gmra.mxu0 %v2960
    %v3028 = vpop.f32.mrf.mxu0
    %v3029 = vadd.f32 0.0, %v3028
    %v3030 = vpop.f32.mrf.mxu0
    %3031 = vdwg.mxu0
    %3032 = vrot.lane.b32.xlu0 %v2020, 112
    %v3033 = vpop.permute.xlu0 %3032
    %3034 = vrot.lane.b32.xlu0 %v2020, 80
    %v3035 = vpop.permute.xlu0 %3034
    %v3036 = vsel %vm197, %v3033, 0
    %v3038 = vsel %vm197, %v3035, 0
    %3040 = vmatprep.subr.mxu0 0.0
    %3041 = vmatpush1.xpose.msra.mxu0 0.0
    %3042 = vmatprep.subr.mxu0 0.0
    %3043 = vmatpush1.xpose.msra.mxu0 0.0
    %3044 = vmatprep.subr.mxu0 0.0
    %3045 = vmatpush1.xpose.msra.mxu0 0.0
    %3046 = vmatprep.subr.mxu0 0.0
    %3047 = vmatpush1.xpose.msra.mxu0 0.0
    %3048 = vmatprep.subr.mxu0 0.0
    %3049 = vmatpush1.xpose.msra.mxu0 0.0
    %3050 = vmatprep.subr.mxu0 0.0
    %3051 = vmatpush1.xpose.msra.mxu0 0.0
    %3052 = vmatprep.subr.mxu0 0.0
    %3053 = vmatpush1.xpose.msra.mxu0 0.0
    %3054 = vmatprep.subr.mxu0 0.0
    %3055 = vmatpush1.xpose.msra.mxu0 0.0
    %3056 = vmatprep.subr.mxu0 0.0
    %3057 = vmatpush1.xpose.msra.mxu0 0.0
    %3058 = vmatprep.subr.mxu0 0.0
    %3059 = vmatpush1.xpose.msra.mxu0 0.0
    %3060 = vmatprep.subr.mxu0 0.0
    %3061 = vmatpush1.xpose.msra.mxu0 0.0
    %3062 = vmatprep.subr.mxu0 0.0
    %3063 = vmatpush1.xpose.msra.mxu0 0.0
    %3064 = vmatprep.subr.mxu0 0.0
    %3065 = vmatpush1.xpose.msra.mxu0 0.0
    %3066 = vmatprep.subr.mxu0 0.0
    %3067 = vmatpush1.xpose.msra.mxu0 0.0
    %3068 = vmatprep.subr.mxu0 0.0
    %3069 = vmatpush1.xpose.msra.mxu0 0.0
    %3070 = vmatprep.subr.mxu0 0.0
    %3071 = vmatpush1.xpose.msra.mxu0 %v3038
    %3072 = vmatprep.subr.mxu0 0.0
    %3073 = vmatpush2.xpose.msra.mxu0 0.0
    %3074 = vmatprep.subr.mxu0 0.0
    %3075 = vmatpush2.xpose.msra.mxu0 0.0
    %3076 = vmatprep.subr.mxu0 0.0
    %3077 = vmatpush2.xpose.msra.mxu0 0.0
    %3078 = vmatprep.subr.mxu0 0.0
    %3079 = vmatpush2.xpose.msra.mxu0 0.0
    %3080 = vmatprep.subr.mxu0 0.0
    %3081 = vmatpush2.xpose.msra.mxu0 0.0
    %3082 = vmatprep.subr.mxu0 0.0
    %3083 = vmatpush2.xpose.msra.mxu0 0.0
    %3084 = vmatprep.subr.mxu0 0.0
    %3085 = vmatpush2.xpose.msra.mxu0 0.0
    %3086 = vmatprep.subr.mxu0 0.0
    %3087 = vmatpush2.xpose.msra.mxu0 0.0
    %3088 = vmatprep.subr.mxu0 0.0
    %3089 = vmatpush2.xpose.msra.mxu0 0.0
    %3090 = vmatprep.subr.mxu0 0.0
    %3091 = vmatpush2.xpose.msra.mxu0 0.0
    %3092 = vmatprep.subr.mxu0 0.0
    %3093 = vmatpush2.xpose.msra.mxu0 0.0
    %3094 = vmatprep.subr.mxu0 0.0
    %3095 = vmatpush2.xpose.msra.mxu0 0.0
    %3096 = vmatprep.subr.mxu0 0.0
    %3097 = vmatpush2.xpose.msra.mxu0 0.0
    %3098 = vmatprep.subr.mxu0 0.0
    %3099 = vmatpush2.xpose.msra.mxu0 0.0
    %3100 = vmatprep.subr.mxu0 0.0
    %3101 = vmatpush2.xpose.msra.mxu0 0.0
    %3102 = vmatprep.subr.mxu0 0.0
    %3103 = vmatpush2.xpose.msra.mxu0 0.0
    %3104 = vmatprep.mubr.f32.mxu0 0.0
    %3105 = vmatmul.mubr.f32.gmra.mxu0 %v3036
    %v3106 = vpop.f32.mrf.mxu0
    %v3107 = vadd.f32 0.0, %v3106
    %v3108 = vpop.f32.mrf.mxu0
    %3109 = vdwg.mxu0
    %v3110 = vmul.f32 %v3107, 0.35355338
    %v3111 = vsel %vm197, %v3110, -inf
    %3112 = vmax.xlane.f32.xlu0 %v3111
    %v3113 = vpop.xlane.xlu0 %3112
    %v3114 = vsub.f32 %v3110, %v3113
    %v3115 = vmul.f32 %v3114, 1.442695
    %v3116 = vpow.pop %v3115
    %v3117 = vsel %vm197, %v3116, 0.0
    %3118 = vadd.xlane.f32.xlu0 %v3117
    %v3119 = vpop.xlane.xlu0 %3118
    %v3120 = vrcp.pop %v3119
    %v3121 = vmul.f32 %v3116, %v3120
    %3122 = vrot.lane.b32.xlu0 %v2020, 48
    %v3123 = vpop.permute.xlu0 %3122
    %v3126 = vsel %vm197, %v3121, 0
    %3128 = vmatprep.subr.mxu0 0.0
    %3129 = vmatpush1.msra.mxu0 0.0
    %3130 = vmatprep.subr.mxu0 0.0
    %3131 = vmatpush1.msra.mxu0 0.0
    %3132 = vmatprep.subr.mxu0 0.0
    %3133 = vmatpush1.msra.mxu0 0.0
    %3134 = vmatprep.subr.mxu0 0.0
    %3135 = vmatpush1.msra.mxu0 0.0
    %3136 = vmatprep.subr.mxu0 0.0
    %3137 = vmatpush1.msra.mxu0 0.0
    %3138 = vmatprep.subr.mxu0 0.0
    %3139 = vmatpush1.msra.mxu0 0.0
    %3140 = vmatprep.subr.mxu0 0.0
    %3141 = vmatpush1.msra.mxu0 0.0
    %3142 = vmatprep.subr.mxu0 0.0
    %3143 = vmatpush1.msra.mxu0 0.0
    %3144 = vmatprep.subr.mxu0 0.0
    %3145 = vmatpush1.msra.mxu0 0.0
    %3146 = vmatprep.subr.mxu0 0.0
    %3147 = vmatpush1.msra.mxu0 0.0
    %3148 = vmatprep.subr.mxu0 0.0
    %3149 = vmatpush1.msra.mxu0 0.0
    %3150 = vmatprep.subr.mxu0 0.0
    %3151 = vmatpush1.msra.mxu0 0.0
    %3152 = vmatprep.subr.mxu0 0.0
    %3153 = vmatpush1.msra.mxu0 0.0
    %3154 = vmatprep.subr.mxu0 0.0
    %3155 = vmatpush1.msra.mxu0 0.0
    %3156 = vmatprep.subr.mxu0 0.0
    %3157 = vmatpush1.msra.mxu0 0.0
    %3158 = vmatprep.subr.mxu0 0.0
    %3159 = vmatpush1.msra.mxu0 %v3123
    %3160 = vmatprep.subr.mxu0 0.0
    %3161 = vmatpush2.msra.mxu0 0.0
    %3162 = vmatprep.subr.mxu0 0.0
    %3163 = vmatpush2.msra.mxu0 0.0
    %3164 = vmatprep.subr.mxu0 0.0
    %3165 = vmatpush2.msra.mxu0 0.0
    %3166 = vmatprep.subr.mxu0 0.0
    %3167 = vmatpush2.msra.mxu0 0.0
    %3168 = vmatprep.subr.mxu0 0.0
    %3169 = vmatpush2.msra.mxu0 0.0
    %3170 = vmatprep.subr.mxu0 0.0
    %3171 = vmatpush2.msra.mxu0 0.0
    %3172 = vmatprep.subr.mxu0 0.0
    %3173 = vmatpush2.msra.mxu0 0.0
    %3174 = vmatprep.subr.mxu0 0.0
    %3175 = vmatpush2.msra.mxu0 0.0
    %3176 = vmatprep.subr.mxu0 0.0
    %3177 = vmatpush2.msra.mxu0 0.0
    %3178 = vmatprep.subr.mxu0 0.0
    %3179 = vmatpush2.msra.mxu0 0.0
    %3180 = vmatprep.subr.mxu0 0.0
    %3181 = vmatpush2.msra.mxu0 0.0
    %3182 = vmatprep.subr.mxu0 0.0
    %3183 = vmatpush2.msra.mxu0 0.0
    %3184 = vmatprep.subr.mxu0 0.0
    %3185 = vmatpush2.msra.mxu0 0.0
    %3186 = vmatprep.subr.mxu0 0.0
    %3187 = vmatpush2.msra.mxu0 0.0
    %3188 = vmatprep.subr.mxu0 0.0
    %3189 = vmatpush2.msra.mxu0 0.0
    %3190 = vmatprep.subr.mxu0 0.0
    %3191 = vmatpush2.msra.mxu0 0.0
    %3192 = vmatprep.mubr.f32.mxu0 0.0
    %3193 = vmatmul.mubr.f32.gmra.mxu0 %v3126
    %v3194 = vpop.f32.mrf.mxu0
    %v3195 = vadd.f32 0.0, %v3194
    %v3196 = vpop.f32.mrf.mxu0
    %3197 = vdwg.mxu0
    %3198 = vrot.lane.b32.xlu0 %v2020, 104
    %v3199 = vpop.permute.xlu0 %3198
    %3200 = vrot.lane.b32.xlu0 %v2020, 72
    %v3201 = vpop.permute.xlu0 %3200
    %v3202 = vsel %vm197, %v3199, 0
    %v3204 = vsel %vm197, %v3201, 0
    %3206 = vmatprep.subr.mxu0 0.0
    %3207 = vmatpush1.xpose.msra.mxu0 0.0
    %3208 = vmatprep.subr.mxu0 0.0
    %3209 = vmatpush1.xpose.msra.mxu0 0.0
    %3210 = vmatprep.subr.mxu0 0.0
    %3211 = vmatpush1.xpose.msra.mxu0 0.0
    %3212 = vmatprep.subr.mxu0 0.0
    %3213 = vmatpush1.xpose.msra.mxu0 0.0
    %3214 = vmatprep.subr.mxu0 0.0
    %3215 = vmatpush1.xpose.msra.mxu0 0.0
    %3216 = vmatprep.subr.mxu0 0.0
    %3217 = vmatpush1.xpose.msra.mxu0 0.0
    %3218 = vmatprep.subr.mxu0 0.0
    %3219 = vmatpush1.xpose.msra.mxu0 0.0
    %3220 = vmatprep.subr.mxu0 0.0
    %3221 = vmatpush1.xpose.msra.mxu0 0.0
    %3222 = vmatprep.subr.mxu0 0.0
    %3223 = vmatpush1.xpose.msra.mxu0 0.0
    %3224 = vmatprep.subr.mxu0 0.0
    %3225 = vmatpush1.xpose.msra.mxu0 0.0
    %3226 = vmatprep.subr.mxu0 0.0
    %3227 = vmatpush1.xpose.msra.mxu0 0.0
    %3228 = vmatprep.subr.mxu0 0.0
    %3229 = vmatpush1.xpose.msra.mxu0 0.0
    %3230 = vmatprep.subr.mxu0 0.0
    %3231 = vmatpush1.xpose.msra.mxu0 0.0
    %3232 = vmatprep.subr.mxu0 0.0
    %3233 = vmatpush1.xpose.msra.mxu0 0.0
    %3234 = vmatprep.subr.mxu0 0.0
    %3235 = vmatpush1.xpose.msra.mxu0 0.0
    %3236 = vmatprep.subr.mxu0 0.0
    %3237 = vmatpush1.xpose.msra.mxu0 %v3204
    %3238 = vmatprep.subr.mxu0 0.0
    %3239 = vmatpush2.xpose.msra.mxu0 0.0
    %3240 = vmatprep.subr.mxu0 0.0
    %3241 = vmatpush2.xpose.msra.mxu0 0.0
    %3242 = vmatprep.subr.mxu0 0.0
    %3243 = vmatpush2.xpose.msra.mxu0 0.0
    %3244 = vmatprep.subr.mxu0 0.0
    %3245 = vmatpush2.xpose.msra.mxu0 0.0
    %3246 = vmatprep.subr.mxu0 0.0
    %3247 = vmatpush2.xpose.msra.mxu0 0.0
    %3248 = vmatprep.subr.mxu0 0.0
    %3249 = vmatpush2.xpose.msra.mxu0 0.0
    %3250 = vmatprep.subr.mxu0 0.0
    %3251 = vmatpush2.xpose.msra.mxu0 0.0
    %3252 = vmatprep.subr.mxu0 0.0
    %3253 = vmatpush2.xpose.msra.mxu0 0.0
    %3254 = vmatprep.subr.mxu0 0.0
    %3255 = vmatpush2.xpose.msra.mxu0 0.0
    %3256 = vmatprep.subr.mxu0 0.0
    %3257 = vmatpush2.xpose.msra.mxu0 0.0
    %3258 = vmatprep.subr.mxu0 0.0
    %3259 = vmatpush2.xpose.msra.mxu0 0.0
    %3260 = vmatprep.subr.mxu0 0.0
    %3261 = vmatpush2.xpose.msra.mxu0 0.0
    %3262 = vmatprep.subr.mxu0 0.0
    %3263 = vmatpush2.xpose.msra.mxu0 0.0
    %3264 = vmatprep.subr.mxu0 0.0
    %3265 = vmatpush2.xpose.msra.mxu0 0.0
    %3266 = vmatprep.subr.mxu0 0.0
    %3267 = vmatpush2.xpose.msra.mxu0 0.0
    %3268 = vmatprep.subr.mxu0 0.0
    %3269 = vmatpush2.xpose.msra.mxu0 0.0
    %3270 = vmatprep.mubr.f32.mxu0 0.0
    %3271 = vmatmul.mubr.f32.gmra.mxu0 %v3202
    %v3272 = vpop.f32.mrf.mxu0
    %v3273 = vadd.f32 0.0, %v3272
    %v3274 = vpop.f32.mrf.mxu0
    %3275 = vdwg.mxu0
    %v3276 = vmul.f32 %v3273, 0.35355338
    %v3277 = vsel %vm197, %v3276, -inf
    %3278 = vmax.xlane.f32.xlu0 %v3277
    %v3279 = vpop.xlane.xlu0 %3278
    %v3280 = vsub.f32 %v3276, %v3279
    %v3281 = vmul.f32 %v3280, 1.442695
    %v3282 = vpow.pop %v3281
    %v3283 = vsel %vm197, %v3282, 0.0
    %3284 = vadd.xlane.f32.xlu0 %v3283
    %v3285 = vpop.xlane.xlu0 %3284
    %v3286 = vrcp.pop %v3285
    %v3287 = vmul.f32 %v3282, %v3286
    %3288 = vrot.lane.b32.xlu0 %v2020, 40
    %v3289 = vpop.permute.xlu0 %3288
    %v3292 = vsel %vm197, %v3287, 0
    %3294 = vmatprep.subr.mxu0 0.0
    %3295 = vmatpush1.msra.mxu0 0.0
    %3296 = vmatprep.subr.mxu0 0.0
    %3297 = vmatpush1.msra.mxu0 0.0
    %3298 = vmatprep.subr.mxu0 0.0
    %3299 = vmatpush1.msra.mxu0 0.0
    %3300 = vmatprep.subr.mxu0 0.0
    %3301 = vmatpush1.msra.mxu0 0.0
    %3302 = vmatprep.subr.mxu0 0.0
    %3303 = vmatpush1.msra.mxu0 0.0
    %3304 = vmatprep.subr.mxu0 0.0
    %3305 = vmatpush1.msra.mxu0 0.0
    %3306 = vmatprep.subr.mxu0 0.0
    %3307 = vmatpush1.msra.mxu0 0.0
    %3308 = vmatprep.subr.mxu0 0.0
    %3309 = vmatpush1.msra.mxu0 0.0
    %3310 = vmatprep.subr.mxu0 0.0
    %3311 = vmatpush1.msra.mxu0 0.0
    %3312 = vmatprep.subr.mxu0 0.0
    %3313 = vmatpush1.msra.mxu0 0.0
    %3314 = vmatprep.subr.mxu0 0.0
    %3315 = vmatpush1.msra.mxu0 0.0
    %3316 = vmatprep.subr.mxu0 0.0
    %3317 = vmatpush1.msra.mxu0 0.0
    %3318 = vmatprep.subr.mxu0 0.0
    %3319 = vmatpush1.msra.mxu0 0.0
    %3320 = vmatprep.subr.mxu0 0.0
    %3321 = vmatpush1.msra.mxu0 0.0
    %3322 = vmatprep.subr.mxu0 0.0
    %3323 = vmatpush1.msra.mxu0 0.0
    %3324 = vmatprep.subr.mxu0 0.0
    %3325 = vmatpush1.msra.mxu0 %v3289
    %3326 = vmatprep.subr.mxu0 0.0
    %3327 = vmatpush2.msra.mxu0 0.0
    %3328 = vmatprep.subr.mxu0 0.0
    %3329 = vmatpush2.msra.mxu0 0.0
    %3330 = vmatprep.subr.mxu0 0.0
    %3331 = vmatpush2.msra.mxu0 0.0
    %3332 = vmatprep.subr.mxu0 0.0
    %3333 = vmatpush2.msra.mxu0 0.0
    %3334 = vmatprep.subr.mxu0 0.0
    %3335 = vmatpush2.msra.mxu0 0.0
    %3336 = vmatprep.subr.mxu0 0.0
    %3337 = vmatpush2.msra.mxu0 0.0
    %3338 = vmatprep.subr.mxu0 0.0
    %3339 = vmatpush2.msra.mxu0 0.0
    %3340 = vmatprep.subr.mxu0 0.0
    %3341 = vmatpush2.msra.mxu0 0.0
    %3342 = vmatprep.subr.mxu0 0.0
    %3343 = vmatpush2.msra.mxu0 0.0
    %3344 = vmatprep.subr.mxu0 0.0
    %3345 = vmatpush2.msra.mxu0 0.0
    %3346 = vmatprep.subr.mxu0 0.0
    %3347 = vmatpush2.msra.mxu0 0.0
    %3348 = vmatprep.subr.mxu0 0.0
    %3349 = vmatpush2.msra.mxu0 0.0
    %3350 = vmatprep.subr.mxu0 0.0
    %3351 = vmatpush2.msra.mxu0 0.0
    %3352 = vmatprep.subr.mxu0 0.0
    %3353 = vmatpush2.msra.mxu0 0.0
    %3354 = vmatprep.subr.mxu0 0.0
    %3355 = vmatpush2.msra.mxu0 0.0
    %3356 = vmatprep.subr.mxu0 0.0
    %3357 = vmatpush2.msra.mxu0 0.0
    %3358 = vmatprep.mubr.f32.mxu0 0.0
    %3359 = vmatmul.mubr.f32.gmra.mxu0 %v3292
    %v3360 = vpop.f32.mrf.mxu0
    %v3361 = vadd.f32 0.0, %v3360
    %v3362 = vpop.f32.mrf.mxu0
    %3363 = vdwg.mxu0
    %3365 = vrot.lane.b32.xlu0 %v3029, 8
    %v3366 = vpop.permute.xlu0 %3365
    %3369 = vrot.lane.b32.xlu0 %v3195, 16
    %v3370 = vpop.permute.xlu0 %3369
    %3373 = vrot.lane.b32.xlu0 %v3361, 24
    %v3374 = vpop.permute.xlu0 %3373
    %v3376 = vsel %vm197, %v2863, %v3366
    %v3377 = vsel %vm871, %v3376, %v3370
    %v3378 = vsel %vm873, %v3377, %v3374
    %s3379 = scalar_lea.vmem %s4, 32
    %v3380 = vld [vmem:[%s3379] sm:$0xff]
    %v3381 = vld [vmem:[%s3379 + $0x8] sm:$0xff]
    %v3382 = vld [vmem:[%s3379 + $0x10] sm:$0xff]
    %v3383 = vld [vmem:[%s3379 + $0x18] sm:$0xff]
    %s3384 = scalar_lea.vmem %s5, 1
    %v3385 = vld [vmem:[%s3384] sm:$0x1]
    %v3387 = vlaneseq
    %v3388 = vshrl.u32 %v3387, 7
    %v3389 = vsub.s32 0, %v3388
    %v3390 = vrot.slane %v3385, %v3389
    %v3393 = vsel %vm112, %v2700, 0
    %v3396 = vsel %vm112, %v3378, 0
    %3398 = vmatprep.subr.mxu0 0.0
    %3399 = vmatpush1.msra.mxu0 0.0
    %3400 = vmatprep.subr.mxu0 0.0
    %3401 = vmatpush1.msra.mxu0 0.0
    %3402 = vmatprep.subr.mxu0 0.0
    %3403 = vmatpush1.msra.mxu0 0.0
    %3404 = vmatprep.subr.mxu0 0.0
    %3405 = vmatpush1.msra.mxu0 0.0
    %3406 = vmatprep.subr.mxu0 0.0
    %3407 = vmatpush1.msra.mxu0 0.0
    %3408 = vmatprep.subr.mxu0 0.0
    %3409 = vmatpush1.msra.mxu0 0.0
    %3410 = vmatprep.subr.mxu0 0.0
    %3411 = vmatpush1.msra.mxu0 0.0
    %3412 = vmatprep.subr.mxu0 0.0
    %3413 = vmatpush1.msra.mxu0 0.0
    %3414 = vmatprep.subr.mxu0 0.0
    %3415 = vmatpush1.msra.mxu0 0.0
    %3416 = vmatprep.subr.mxu0 0.0
    %3417 = vmatpush1.msra.mxu0 0.0
    %3418 = vmatprep.subr.mxu0 0.0
    %3419 = vmatpush1.msra.mxu0 0.0
    %3420 = vmatprep.subr.mxu0 0.0
    %3421 = vmatpush1.msra.mxu0 0.0
    %3422 = vmatprep.subr.mxu0 0.0
    %3423 = vmatpush1.msra.mxu0 %v3383
    %3424 = vmatprep.subr.mxu0 0.0
    %3425 = vmatpush1.msra.mxu0 %v3382
    %3426 = vmatprep.subr.mxu0 0.0
    %3427 = vmatpush1.msra.mxu0 %v3381
    %3428 = vmatprep.subr.mxu0 0.0
    %3429 = vmatpush1.msra.mxu0 %v3380
    %3430 = vmatprep.subr.mxu0 0.0
    %3431 = vmatpush2.msra.mxu0 0.0
    %3432 = vmatprep.subr.mxu0 0.0
    %3433 = vmatpush2.msra.mxu0 0.0
    %3434 = vmatprep.subr.mxu0 0.0
    %3435 = vmatpush2.msra.mxu0 0.0
    %3436 = vmatprep.subr.mxu0 0.0
    %3437 = vmatpush2.msra.mxu0 0.0
    %3438 = vmatprep.subr.mxu0 0.0
    %3439 = vmatpush2.msra.mxu0 0.0
    %3440 = vmatprep.subr.mxu0 0.0
    %3441 = vmatpush2.msra.mxu0 0.0
    %3442 = vmatprep.subr.mxu0 0.0
    %3443 = vmatpush2.msra.mxu0 0.0
    %3444 = vmatprep.subr.mxu0 0.0
    %3445 = vmatpush2.msra.mxu0 0.0
    %3446 = vmatprep.subr.mxu0 0.0
    %3447 = vmatpush2.msra.mxu0 0.0
    %3448 = vmatprep.subr.mxu0 0.0
    %3449 = vmatpush2.msra.mxu0 0.0
    %3450 = vmatprep.subr.mxu0 0.0
    %3451 = vmatpush2.msra.mxu0 0.0
    %3452 = vmatprep.subr.mxu0 0.0
    %3453 = vmatpush2.msra.mxu0 0.0
    %3454 = vmatprep.subr.mxu0 0.0
    %3455 = vmatpush2.msra.mxu0 0.0
    %3456 = vmatprep.subr.mxu0 0.0
    %3457 = vmatpush2.msra.mxu0 0.0
    %3458 = vmatprep.subr.mxu0 0.0
    %3459 = vmatpush2.msra.mxu0 0.0
    %3460 = vmatprep.subr.mxu0 0.0
    %3461 = vmatpush2.msra.mxu0 0.0
    %3462 = vmatprep.mubr.f32.mxu0 0.0
    %3463 = vmatmul.mubr.f32.gmra.mxu0 %v3393
    %v3464 = vpop.f32.mrf.mxu0
    %v3465 = vadd.f32 %v3390, %v3464
    %v3466 = vpop.f32.mrf.mxu0
    %3467 = vmatprep.mubr.f32.mxu0 0.0
    %3468 = vmatmul.mubr.f32.gmra.mxu0 %v3396
    %v3469 = vpop.f32.mrf.mxu0
    %v3470 = vadd.f32 %v3390, %v3469
    %v3471 = vpop.f32.mrf.mxu0
    %3472 = vdwg.mxu0
    %v3473 = vadd.f32 %v1927, %v3465
    %v3474 = vadd.f32 %v1928, %v3470
    %s3475 = scalar_lea.vmem %s6, 1
    %v3476 = vld [vmem:[%s3475] sm:$0x1]
    %s3477 = scalar_lea.vmem %s7, 1
    %v3478 = vld [vmem:[%s3477] sm:$0x1]
    %v3479 = vsel %vm112, %v3473, 0.0
    %3480 = vadd.xlane.f32.xlu0 %v3479
    %v3481 = vpop.xlane.xlu0 %3480
    %v3482 = vsel %vm112, %v3474, 0.0
    %3483 = vadd.xlane.f32.xlu0 %v3482
    %v3484 = vpop.xlane.xlu0 %3483
    %v3485 = vmul.f32 %v3481, %v1655
    %v3486 = vmul.f32 %v3484, %v1655
    %v3487 = vsub.f32 %v3473, %v3485
    %v3488 = vsub.f32 %v3474, %v3486
    %v3489 = vmul.f32 %v3487, %v3487
    %v3490 = vmul.f32 %v3488, %v3488
    %v3491 = vsel %vm112, %v3489, 0.0
    %3492 = vadd.xlane.f32.xlu0 %v3491
    %v3493 = vpop.xlane.xlu0 %3492
    %v3494 = vsel %vm112, %v3490, 0.0
    %3495 = vadd.xlane.f32.xlu0 %v3494
    %v3496 = vpop.xlane.xlu0 %3495
    %v3497 = vmul.f32 %v3493, %v1655
    %v3498 = vmul.f32 %v3496, %v1655
    %v3499 = vadd.f32 %v3497, 1e-05
    %v3500 = vadd.f32 %v3498, 1e-05
    %v3501 = vrsqrt.pop %v3499
    %v3502 = vrsqrt.pop %v3500
    %v3503 = vmul.f32 %v3487, %v3501
    %v3504 = vmul.f32 %v3488, %v3502
    %v3506 = vlaneseq
    %v3507 = vshrl.u32 %v3506, 7
    %v3508 = vsub.s32 0, %v3507
    %v3509 = vrot.slane %v3476, %v3508
    %v3511 = vmul.f32 %v3503, %v3509
    %v3512 = vmul.f32 %v3504, %v3509
    %v3514 = vlaneseq
    %v3515 = vshrl.u32 %v3514, 7
    %v3516 = vsub.s32 0, %v3515
    %v3517 = vrot.slane %v3478, %v3516
    %v3519 = vadd.f32 %v3511, %v3517
    %v3520 = vadd.f32 %v3512, %v3517
    %s3521 = scalar_lea.vmem %s8, 32
    %v3522 = vld [vmem:[%s3521] sm:$0xff]
    %v3523 = vld [vmem:[%s3521 + $0x8] sm:$0xff]
    %v3524 = vld [vmem:[%s3521 + $0x10] sm:$0xff]
    %v3525 = vld [vmem:[%s3521 + $0x18] sm:$0xff]
    %s3526 = scalar_lea.vmem %s9, 1
    %v3527 = vld [vmem:[%s3526] sm:$0x1]
    %v3529 = vlaneseq
    %v3530 = vshrl.u32 %v3529, 7
    %v3531 = vsub.s32 0, %v3530
    %v3532 = vrot.slane %v3527, %v3531
    %v3535 = vsel %vm112, %v3519, 0
    %v3538 = vsel %vm112, %v3520, 0
    %3540 = vmatprep.subr.mxu0 0.0
    %3541 = vmatpush1.msra.mxu0 0.0
    %3542 = vmatprep.subr.mxu0 0.0
    %3543 = vmatpush1.msra.mxu0 0.0
    %3544 = vmatprep.subr.mxu0 0.0
    %3545 = vmatpush1.msra.mxu0 0.0
    %3546 = vmatprep.subr.mxu0 0.0
    %3547 = vmatpush1.msra.mxu0 0.0
    %3548 = vmatprep.subr.mxu0 0.0
    %3549 = vmatpush1.msra.mxu0 0.0
    %3550 = vmatprep.subr.mxu0 0.0
    %3551 = vmatpush1.msra.mxu0 0.0
    %3552 = vmatprep.subr.mxu0 0.0
    %3553 = vmatpush1.msra.mxu0 0.0
    %3554 = vmatprep.subr.mxu0 0.0
    %3555 = vmatpush1.msra.mxu0 0.0
    %3556 = vmatprep.subr.mxu0 0.0
    %3557 = vmatpush1.msra.mxu0 0.0
    %3558 = vmatprep.subr.mxu0 0.0
    %3559 = vmatpush1.msra.mxu0 0.0
    %3560 = vmatprep.subr.mxu0 0.0
    %3561 = vmatpush1.msra.mxu0 0.0
    %3562 = vmatprep.subr.mxu0 0.0
    %3563 = vmatpush1.msra.mxu0 0.0
    %3564 = vmatprep.subr.mxu0 0.0
    %3565 = vmatpush1.msra.mxu0 %v3525
    %3566 = vmatprep.subr.mxu0 0.0
    %3567 = vmatpush1.msra.mxu0 %v3524
    %3568 = vmatprep.subr.mxu0 0.0
    %3569 = vmatpush1.msra.mxu0 %v3523
    %3570 = vmatprep.subr.mxu0 0.0
    %3571 = vmatpush1.msra.mxu0 %v3522
    %3572 = vmatprep.subr.mxu0 0.0
    %3573 = vmatpush2.msra.mxu0 0.0
    %3574 = vmatprep.subr.mxu0 0.0
    %3575 = vmatpush2.msra.mxu0 0.0
    %3576 = vmatprep.subr.mxu0 0.0
    %3577 = vmatpush2.msra.mxu0 0.0
    %3578 = vmatprep.subr.mxu0 0.0
    %3579 = vmatpush2.msra.mxu0 0.0
    %3580 = vmatprep.subr.mxu0 0.0
    %3581 = vmatpush2.msra.mxu0 0.0
    %3582 = vmatprep.subr.mxu0 0.0
    %3583 = vmatpush2.msra.mxu0 0.0
    %3584 = vmatprep.subr.mxu0 0.0
    %3585 = vmatpush2.msra.mxu0 0.0
    %3586 = vmatprep.subr.mxu0 0.0
    %3587 = vmatpush2.msra.mxu0 0.0
    %3588 = vmatprep.subr.mxu0 0.0
    %3589 = vmatpush2.msra.mxu0 0.0
    %3590 = vmatprep.subr.mxu0 0.0
    %3591 = vmatpush2.msra.mxu0 0.0
    %3592 = vmatprep.subr.mxu0 0.0
    %3593 = vmatpush2.msra.mxu0 0.0
    %3594 = vmatprep.subr.mxu0 0.0
    %3595 = vmatpush2.msra.mxu0 0.0
    %3596 = vmatprep.subr.mxu0 0.0
    %3597 = vmatpush2.msra.mxu0 0.0
    %3598 = vmatprep.subr.mxu0 0.0
    %3599 = vmatpush2.msra.mxu0 0.0
    %3600 = vmatprep.subr.mxu0 0.0
    %3601 = vmatpush2.msra.mxu0 0.0
    %3602 = vmatprep.subr.mxu0 0.0
    %3603 = vmatpush2.msra.mxu0 0.0
    %3604 = vmatprep.mubr.f32.mxu0 0.0
    %3605 = vmatmul.mubr.f32.gmra.mxu0 %v3535
    %v3606 = vpop.f32.mrf.mxu0
    %v3607 = vadd.f32 %v3532, %v3606
    %v3608 = vpop.f32.mrf.mxu0
    %3609 = vmatprep.mubr.f32.mxu0 0.0
    %3610 = vmatmul.mubr.f32.gmra.mxu0 %v3538
    %v3611 = vpop.f32.mrf.mxu0
    %v3612 = vadd.f32 %v3532, %v3611
    %v3613 = vpop.f32.mrf.mxu0
    %3614 = vdwg.mxu0
    %v3615 = vmax.f32 %v3607, 0.0
    %v3616 = vmax.f32 %v3612, 0.0
    %s3617 = scalar_lea.vmem %s10, 64
    %v3618 = vld [vmem:[%s3617] sm:$0xff]
    %v3619 = vld [vmem:[%s3617 + $0x8] sm:$0xff]
    %v3620 = vld [vmem:[%s3617 + $0x10] sm:$0xff]
    %v3621 = vld [vmem:[%s3617 + $0x18] sm:$0xff]
    %v3622 = vld [vmem:[%s3617 + $0x20] sm:$0xff]
    %v3623 = vld [vmem:[%s3617 + $0x28] sm:$0xff]
    %v3624 = vld [vmem:[%s3617 + $0x30] sm:$0xff]
    %v3625 = vld [vmem:[%s3617 + $0x38] sm:$0xff]
    %s3626 = scalar_lea.vmem %s11, 1
    %v3627 = vld [vmem:[%s3626] sm:$0x1]
    %v3629 = vlaneseq
    %v3630 = vshrl.u32 %v3629, 7
    %v3631 = vsub.s32 0, %v3630
    %v3632 = vrot.slane %v3627, %v3631
    %v3635 = vsel %vm1801, %v3615, 0
    %v3638 = vsel %vm1801, %v3616, 0
    %3640 = vmatprep.subr.mxu0 0.0
    %3641 = vmatpush1.msra.mxu0 0.0
    %3642 = vmatprep.subr.mxu0 0.0
    %3643 = vmatpush1.msra.mxu0 0.0
    %3644 = vmatprep.subr.mxu0 0.0
    %3645 = vmatpush1.msra.mxu0 0.0
    %3646 = vmatprep.subr.mxu0 0.0
    %3647 = vmatpush1.msra.mxu0 0.0
    %3648 = vmatprep.subr.mxu0 0.0
    %3649 = vmatpush1.msra.mxu0 0.0
    %3650 = vmatprep.subr.mxu0 0.0
    %3651 = vmatpush1.msra.mxu0 0.0
    %3652 = vmatprep.subr.mxu0 0.0
    %3653 = vmatpush1.msra.mxu0 0.0
    %3654 = vmatprep.subr.mxu0 0.0
    %3655 = vmatpush1.msra.mxu0 0.0
    %3656 = vmatprep.subr.mxu0 0.0
    %3657 = vmatpush1.msra.mxu0 %v3625
    %3658 = vmatprep.subr.mxu0 0.0
    %3659 = vmatpush1.msra.mxu0 %v3624
    %3660 = vmatprep.subr.mxu0 0.0
    %3661 = vmatpush1.msra.mxu0 %v3623
    %3662 = vmatprep.subr.mxu0 0.0
    %3663 = vmatpush1.msra.mxu0 %v3622
    %3664 = vmatprep.subr.mxu0 0.0
    %3665 = vmatpush1.msra.mxu0 %v3621
    %3666 = vmatprep.subr.mxu0 0.0
    %3667 = vmatpush1.msra.mxu0 %v3620
    %3668 = vmatprep.subr.mxu0 0.0
    %3669 = vmatpush1.msra.mxu0 %v3619
    %3670 = vmatprep.subr.mxu0 0.0
    %3671 = vmatpush1.msra.mxu0 %v3618
    %3672 = vmatprep.subr.mxu0 0.0
    %3673 = vmatpush2.msra.mxu0 0.0
    %3674 = vmatprep.subr.mxu0 0.0
    %3675 = vmatpush2.msra.mxu0 0.0
    %3676 = vmatprep.subr.mxu0 0.0
    %3677 = vmatpush2.msra.mxu0 0.0
    %3678 = vmatprep.subr.mxu0 0.0
    %3679 = vmatpush2.msra.mxu0 0.0
    %3680 = vmatprep.subr.mxu0 0.0
    %3681 = vmatpush2.msra.mxu0 0.0
    %3682 = vmatprep.subr.mxu0 0.0
    %3683 = vmatpush2.msra.mxu0 0.0
    %3684 = vmatprep.subr.mxu0 0.0
    %3685 = vmatpush2.msra.mxu0 0.0
    %3686 = vmatprep.subr.mxu0 0.0
    %3687 = vmatpush2.msra.mxu0 0.0
    %3688 = vmatprep.subr.mxu0 0.0
    %3689 = vmatpush2.msra.mxu0 0.0
    %3690 = vmatprep.subr.mxu0 0.0
    %3691 = vmatpush2.msra.mxu0 0.0
    %3692 = vmatprep.subr.mxu0 0.0
    %3693 = vmatpush2.msra.mxu0 0.0
    %3694 = vmatprep.subr.mxu0 0.0
    %3695 = vmatpush2.msra.mxu0 0.0
    %3696 = vmatprep.subr.mxu0 0.0
    %3697 = vmatpush2.msra.mxu0 0.0
    %3698 = vmatprep.subr.mxu0 0.0
    %3699 = vmatpush2.msra.mxu0 0.0
    %3700 = vmatprep.subr.mxu0 0.0
    %3701 = vmatpush2.msra.mxu0 0.0
    %3702 = vmatprep.subr.mxu0 0.0
    %3703 = vmatpush2.msra.mxu0 0.0
    %3704 = vmatprep.mubr.f32.mxu0 0.0
    %3705 = vmatmul.mubr.f32.gmra.mxu0 %v3635
    %v3706 = vpop.f32.mrf.mxu0
    %v3707 = vadd.f32 %v3632, %v3706
    %v3708 = vpop.f32.mrf.mxu0
    %3709 = vmatprep.mubr.f32.mxu0 0.0
    %3710 = vmatmul.mubr.f32.gmra.mxu0 %v3638
    %v3711 = vpop.f32.mrf.mxu0
    %v3712 = vadd.f32 %v3632, %v3711
    %v3713 = vpop.f32.mrf.mxu0
    %3714 = vdwg.mxu0
    %v3715 = vadd.f32 %v3519, %v3707
    %v3716 = vadd.f32 %v3520, %v3712
    %s3717 = scalar_lea.vmem %s12, 1
    %v3718 = vld [vmem:[%s3717] sm:$0x1]
    %s3719 = scalar_lea.vmem %s13, 1
    %v3720 = vld [vmem:[%s3719] sm:$0x1]
    %v3721 = vsel %vm112, %v3715, 0.0
    %3722 = vadd.xlane.f32.xlu0 %v3721
    %v3723 = vpop.xlane.xlu0 %3722
    %v3724 = vsel %vm112, %v3716, 0.0
    %3725 = vadd.xlane.f32.xlu0 %v3724
    %v3726 = vpop.xlane.xlu0 %3725
    %v3727 = vmul.f32 %v3723, %v1655
    %v3728 = vmul.f32 %v3726, %v1655
    %v3729 = vsub.f32 %v3715, %v3727
    %v3730 = vsub.f32 %v3716, %v3728
    %v3731 = vmul.f32 %v3729, %v3729
    %v3732 = vmul.f32 %v3730, %v3730
    %v3733 = vsel %vm112, %v3731, 0.0
    %3734 = vadd.xlane.f32.xlu0 %v3733
    %v3735 = vpop.xlane.xlu0 %3734
    %v3736 = vsel %vm112, %v3732, 0.0
    %3737 = vadd.xlane.f32.xlu0 %v3736
    %v3738 = vpop.xlane.xlu0 %3737
    %v3739 = vmul.f32 %v3735, %v1655
    %v3740 = vmul.f32 %v3738, %v1655
    %v3741 = vadd.f32 %v3739, 1e-05
    %v3742 = vadd.f32 %v3740, 1e-05
    %v3743 = vrsqrt.pop %v3741
    %v3744 = vrsqrt.pop %v3742
    %v3745 = vmul.f32 %v3729, %v3743
    %v3746 = vmul.f32 %v3730, %v3744
    %v3748 = vlaneseq
    %v3749 = vshrl.u32 %v3748, 7
    %v3750 = vsub.s32 0, %v3749
    %v3751 = vrot.slane %v3718, %v3750
    %v3753 = vmul.f32 %v3745, %v3751
    %v3754 = vmul.f32 %v3746, %v3751
    %v3756 = vlaneseq
    %v3757 = vshrl.u32 %v3756, 7
    %v3758 = vsub.s32 0, %v3757
    %v3759 = vrot.slane %v3720, %v3758
    %v3761 = vadd.f32 %v3753, %v3759
    %v3762 = vadd.f32 %v3754, %v3759
    %v3763 = vsel %vm112, %v3761, -inf
    %v3764 = vrot.slane %v3763, 4
    %v3765 = vmax.f32 %v3763, %v3764
    %v3766 = vrot.slane %v3765, 2
    %v3767 = vmax.f32 %v3765, %v3766
    %v3768 = vrot.slane %v3767, 1
    %v3769 = vmax.f32 %v3767, %v3768
    %v3770 = vsel %vm112, %v3762, -inf
    %v3771 = vrot.slane %v3770, 4
    %v3772 = vmax.f32 %v3770, %v3771
    %v3773 = vrot.slane %v3772, 2
    %v3774 = vmax.f32 %v3772, %v3773
    %v3775 = vrot.slane %v3774, 1
    %v3776 = vmax.f32 %v3774, %v3775
    %vm3777 = vcmask 1040384
    %v3778 = vsel %vm3777, %v3769, %v3776
    %v3779 = vld [vmem:[#allocation7] sm:$0xff]
    %v3780 = vld [vmem:[#allocation7 + $0x8] sm:$0xff]
    %v3781 = vld [vmem:[#allocation7 + $0x10] sm:$0xff]
    %v3782 = vld [vmem:[#allocation7 + $0x18] sm:$0xff]
    %v3783 = vld [vmem:[%s15] sm:$0x1]
    %v3785 = vlaneseq
    %v3786 = vshrl.u32 %v3785, 7
    %v3787 = vsub.s32 0, %v3786
    %v3788 = vrot.slane %v3783, %v3787
    %v3791 = vsel %vm112, %v3778, 0
    %3793 = vmatprep.subr.mxu0 0.0
    %3794 = vmatpush1.msra.mxu0 0.0
    %3795 = vmatprep.subr.mxu0 0.0
    %3796 = vmatpush1.msra.mxu0 0.0
    %3797 = vmatprep.subr.mxu0 0.0
    %3798 = vmatpush1.msra.mxu0 0.0
    %3799 = vmatprep.subr.mxu0 0.0
    %3800 = vmatpush1.msra.mxu0 0.0
    %3801 = vmatprep.subr.mxu0 0.0
    %3802 = vmatpush1.msra.mxu0 0.0
    %3803 = vmatprep.subr.mxu0 0.0
    %3804 = vmatpush1.msra.mxu0 0.0
    %3805 = vmatprep.subr.mxu0 0.0
    %3806 = vmatpush1.msra.mxu0 0.0
    %3807 = vmatprep.subr.mxu0 0.0
    %3808 = vmatpush1.msra.mxu0 0.0
    %3809 = vmatprep.subr.mxu0 0.0
    %3810 = vmatpush1.msra.mxu0 0.0
    %3811 = vmatprep.subr.mxu0 0.0
    %3812 = vmatpush1.msra.mxu0 0.0
    %3813 = vmatprep.subr.mxu0 0.0
    %3814 = vmatpush1.msra.mxu0 0.0
    %3815 = vmatprep.subr.mxu0 0.0
    %3816 = vmatpush1.msra.mxu0 0.0
    %3817 = vmatprep.subr.mxu0 0.0
    %3818 = vmatpush1.msra.mxu0 %v3782
    %3819 = vmatprep.subr.mxu0 0.0
    %3820 = vmatpush1.msra.mxu0 %v3781
    %3821 = vmatprep.subr.mxu0 0.0
    %3822 = vmatpush1.msra.mxu0 %v3780
    %3823 = vmatprep.subr.mxu0 0.0
    %3824 = vmatpush1.msra.mxu0 %v3779
    %3825 = vmatprep.subr.mxu0 0.0
    %3826 = vmatpush2.msra.mxu0 0.0
    %3827 = vmatprep.subr.mxu0 0.0
    %3828 = vmatpush2.msra.mxu0 0.0
    %3829 = vmatprep.subr.mxu0 0.0
    %3830 = vmatpush2.msra.mxu0 0.0
    %3831 = vmatprep.subr.mxu0 0.0
    %3832 = vmatpush2.msra.mxu0 0.0
    %3833 = vmatprep.subr.mxu0 0.0
    %3834 = vmatpush2.msra.mxu0 0.0
    %3835 = vmatprep.subr.mxu0 0.0
    %3836 = vmatpush2.msra.mxu0 0.0
    %3837 = vmatprep.subr.mxu0 0.0
    %3838 = vmatpush2.msra.mxu0 0.0
    %3839 = vmatprep.subr.mxu0 0.0
    %3840 = vmatpush2.msra.mxu0 0.0
    %3841 = vmatprep.subr.mxu0 0.0
    %3842 = vmatpush2.msra.mxu0 0.0
    %3843 = vmatprep.subr.mxu0 0.0
    %3844 = vmatpush2.msra.mxu0 0.0
    %3845 = vmatprep.subr.mxu0 0.0
    %3846 = vmatpush2.msra.mxu0 0.0
    %3847 = vmatprep.subr.mxu0 0.0
    %3848 = vmatpush2.msra.mxu0 0.0
    %3849 = vmatprep.subr.mxu0 0.0
    %3850 = vmatpush2.msra.mxu0 0.0
    %3851 = vmatprep.subr.mxu0 0.0
    %3852 = vmatpush2.msra.mxu0 0.0
    %3853 = vmatprep.subr.mxu0 0.0
    %3854 = vmatpush2.msra.mxu0 0.0
    %3855 = vmatprep.subr.mxu0 0.0
    %3856 = vmatpush2.msra.mxu0 0.0
    %3857 = vmatprep.mubr.f32.mxu0 0.0
    %3858 = vmatmul.mubr.f32.gmra.mxu0 %v3791
    %v3859 = vpop.f32.mrf.mxu0
    %v3860 = vadd.f32 %v3788, %v3859
    %v3861 = vpop.f32.mrf.mxu0
    %3862 = vdwg.mxu0
    %vm3863 = vcmask 254976
    %3864 = vst.msk [vmem:[#allocation8] sm:$0x3] %vm3863, %v3860
    // Predicated region
    $region78: #{tpu_custom_call.1} parent=1 // pred_check
      _
    $region79: #{tpu_custom_call.1} parent=1 // pred_check_branch
      %3866 = sbr.rel (0) target = $region81
    $region80: #{tpu_custom_call.1} parent=1 // pred_region
      %s3868 = ssub.s32 32, 32
      %3869 = vsyncadd [#allocation4], %s3868
      %s3871 = sshll.u32 [#allocation8], 4
      %s3872 = int_to_ptr.vmem [resolvable:$true] %s3871
      %3874 = dma.vmem_to_hbm [thread:$0]  %s3872, 32, %s16, [#allocation4]
    $region81: #{tpu_custom_call.1} parent=1 // pred_fallthru
      _
    // Predicated region
    $region82: #{tpu_custom_call.1} parent=1 // pred_check
      _
    $region83: #{tpu_custom_call.1} parent=1 // pred_check_branch
      %3876 = sbr.rel (0) target = $region85
    $region84: #{tpu_custom_call.1} parent=1 // pred_region
      %3877 = dma.done [#allocation4], 32
    $region85: #{tpu_custom_call.1} parent=1 // pred_fallthru
      _
    %3878 = vsyncpa [#allocation3], 1
    %3879 = vsyncpa [#allocation6], 1
    %3880 = vsyncpa [#allocation4], 1

</llo_original>
